<compile_context>
chip_gen: v6e
topology: v6e:2x2x1
jax: 0.10.0
libtpu: 0.0.40
codegen_flags: <defaults>
</compile_context>

<pallas_src>
import functools

import jax
import jax.numpy as jnp
from jax.experimental import pallas as pl
from jax.experimental.pallas import tpu as pltpu


def _attention_kernel(x_ref, wqkv_ref, wo_ref, bo_ref, o_ref, *,
                      heads, head_dim, scale):
    # x_ref:    (G, N, D)       tile of G = bp_tile (batch*patch) slices
    # wqkv_ref: (D, 3*inner)    resident (constant index_map)
    # wo_ref:   (inner, D)      resident
    # bo_ref:   (1, D)
    # o_ref:    (G, N, D)
    G, N, D = x_ref.shape
    inner = heads * head_dim

    x = x_ref[...]                                  # native dtype -> full-rate MXU
    x2 = x.reshape(G * N, D)

    # Fused QKV projection: one big matmul, f32 accumulation on the MXU.
    qkv = jnp.dot(x2, wqkv_ref[...], preferred_element_type=jnp.float32)
    qkv = qkv.astype(x.dtype)                       # keep MXU operands in input dtype

    # Fold the softmax scale into Q once (cheaper than scaling the N x N scores).
    q = (qkv[:, 0 * inner:1 * inner] * jnp.asarray(scale, x.dtype)).reshape(G, N, inner)
    k = qkv[:, 1 * inner:2 * inner].reshape(G, N, inner)
    v = qkv[:, 2 * inner:3 * inner].reshape(G, N, inner)

    # Accumulate the output projection per head:  out @ Wo == sum_h O_h @ Wo[h*d:(h+1)*d].
    y_acc = jnp.zeros((G * N, D), jnp.float32)
    for h in range(heads):                          # static unroll over heads
        sl = slice(h * head_dim, (h + 1) * head_dim)
        qh = q[..., sl]                             # (G, N, d)
        kh = k[..., sl]
        vh = v[..., sl]

        # scores: (G, N, N), f32 (scale already folded into q)
        s = jnp.einsum('gnd,gmd->gnm', qh, kh,
                       preferred_element_type=jnp.float32)
        # numerically-stable softmax, normalization deferred past the AV matmul
        s = s - jnp.max(s, axis=-1, keepdims=True)
        p = jnp.exp(s)                              # EUP, overlaps MXU work
        denom = jnp.sum(p, axis=-1, keepdims=True)  # (G, N, 1) f32

        # un-normalized P @ V : (G, N, d), f32 accumulation
        oh = jnp.einsum('gnm,gmd->gnd', p.astype(x.dtype), vh,
                        preferred_element_type=jnp.float32)
        oh = oh / denom                             # normalize N*d values, not N*N

        # partial output projection for this head's slice of Wo
        y_acc = y_acc + jnp.dot(oh.reshape(G * N, head_dim).astype(x.dtype),
                                wo_ref[sl, :],
                                preferred_element_type=jnp.float32)

    y = y_acc + bo_ref[...].astype(jnp.float32)     # (1, D) broadcasts over rows
    # TODO(synk): nn.Dropout after the projection is identity in eval mode.
    o_ref[...] = y.reshape(G, N, D).astype(o_ref.dtype)


def attention(x, w_qkv, w_out, b_out, *, heads, head_dim, bp_tile=None):
    """x: (b, p, n, dim) -> (b, p, n, dim)."""
    b, p, n, dim = x.shape
    inner = heads * head_dim
    scale = float(head_dim) ** -0.5
    BP = b * p

    if bp_tile is None:
        # largest divisor of BP whose tile keeps ~<=512 rows per QKV matmul
        bp_tile = 1
        for cand in range(min(BP, 512), 0, -1):
            if BP % cand == 0 and cand * n <= 512:
                bp_tile = cand
                break
    assert BP % bp_tile == 0, "b*p must be divisible by bp_tile"

    x3 = x.reshape(BP, n, dim)
    grid = (BP // bp_tile,)

    kernel = functools.partial(_attention_kernel,
                               heads=heads, head_dim=head_dim, scale=scale)

    # flops: qkv proj + (QK^T + AV) per head + output proj
    flops = (2 * BP * n * dim * 3 * inner
             + 2 * 2 * BP * heads * n * n * head_dim
             + 2 * BP * n * inner * dim)
    transcendentals = BP * heads * n * n            # exp in softmax
    bytes_accessed = int(
        x3.size * x3.dtype.itemsize
        + w_qkv.size * w_qkv.dtype.itemsize
        + w_out.size * w_out.dtype.itemsize
        + b_out.size * b_out.dtype.itemsize
        + BP * n * dim * x3.dtype.itemsize)

    out3 = pl.pallas_call(
        kernel,
        out_shape=jax.ShapeDtypeStruct((BP, n, dim), x.dtype),
        grid_spec=pltpu.PrefetchScalarGridSpec(
            num_scalar_prefetch=0,
            grid=grid,
            in_specs=[
                pl.BlockSpec((bp_tile, n, dim), lambda i: (i, 0, 0)),   # x tile
                pl.BlockSpec((dim, 3 * inner), lambda i: (0, 0)),       # W_qkv (resident)
                pl.BlockSpec((inner, dim), lambda i: (0, 0)),           # W_out (resident)
                pl.BlockSpec((1, dim), lambda i: (0, 0)),               # b_out
            ],
            out_specs=pl.BlockSpec((bp_tile, n, dim), lambda i: (i, 0, 0)),
        ),
        compiler_params=pltpu.CompilerParams(
            dimension_semantics=("parallel",)),
        cost_estimate=pl.CostEstimate(flops=flops,
                                      transcendentals=transcendentals,
                                      bytes_accessed=bytes_accessed),
    )(x3, w_qkv, w_out, b_out)
    return out3.reshape(b, p, n, dim)


def init_params(key, dim, heads, head_dim, dtype=jnp.float32):
    """nn.Linear-shaped params (weights stored transposed as (in, out))."""
    inner = heads * head_dim
    k1, k2, k3 = jax.random.split(key, 3)
    bq = 1.0 / (dim ** 0.5)
    bo = 1.0 / (inner ** 0.5)
    w_qkv = jax.random.uniform(k1, (dim, 3 * inner), dtype, -bq, bq)
    w_out = jax.random.uniform(k2, (inner, dim), dtype, -bo, bo)
    b_out = jax.random.uniform(k3, (1, dim), dtype, -bo, bo)
    return w_qkv, w_out, b_out


def reference_attention(x, w_qkv, w_out, b_out, *, heads, head_dim):
    """Plain-JAX replica of the PyTorch forward (eval mode)."""
    b, p, n, dim = x.shape
    inner = heads * head_dim
    scale = float(head_dim) ** -0.5
    xf = x.astype(jnp.float32)
    qkv = xf @ w_qkv.astype(jnp.float32)                       # (b,p,n,3*inner)
    q, k, v = jnp.split(qkv, 3, axis=-1)

    def split_heads(t):                                        # b p n (h d) -> b p h n d
        return t.reshape(b, p, n, heads, head_dim).transpose(0, 1, 3, 2, 4)

    q, k, v = map(split_heads, (q, k, v))
    dots = jnp.einsum('bphnd,bphmd->bphnm', q, k) * scale
    attn = jax.nn.softmax(dots, axis=-1)
    out = jnp.einsum('bphnm,bphmd->bphnd', attn, v)
    out = out.transpose(0, 1, 3, 2, 4).reshape(b, p, n, inner)  # b p n (h d)
    y = out @ w_out.astype(jnp.float32) + b_out.astype(jnp.float32)
    return y.astype(x.dtype)


if __name__ == "__main__":
    batch, patches, seq, dim = 2, 4, 8, 32
    heads, head_dim = 4, 8          # inner_dim = 32, project_out = True

    key = jax.random.PRNGKey(0)
    kx, kp = jax.random.split(key)
    x = jax.random.normal(kx, (batch, patches, seq, dim), jnp.float32)
    w_qkv, w_out, b_out = init_params(kp, dim, heads, head_dim)
    # Note: if project_out were False (heads==1 and head_dim==dim), pass
    # w_out = identity(inner), b_out = zeros -> mathematically the Identity path.

    out = attention(x, w_qkv, w_out, b_out, heads=heads, head_dim=head_dim)
    jax.block_until_ready(out)

    ref = reference_attention(x, w_qkv, w_out, b_out, heads=heads, head_dim=head_dim)
    assert out.shape == (batch, patches, seq, dim)
    assert jnp.allclose(out, ref, atol=5e-5, rtol=1e-5), "mismatch vs reference"

    print("KERNEL_OK")
</pallas_src>

<mosaic_0001>
module attributes {stable_mosaic.version = 11 : i64} {
  func.func @_attention_kernel(%arg0: i32, %arg1: memref<8x8x32xf32, #tpu.memory_space<vmem>>, %arg2: memref<32x96xf32, #tpu.memory_space<vmem>>, %arg3: memref<32x32xf32, #tpu.memory_space<vmem>>, %arg4: memref<1x32xf32, #tpu.memory_space<vmem>>, %arg5: memref<8x8x32xf32, #tpu.memory_space<vmem>>) attributes {dimension_semantics = [#tpu.dimension_semantics<parallel>], iteration_bounds = array<i64: 1>, scalar_prefetch = 0 : i64, scratch_operands = 0 : i64, tpu.core_type = #tpu.core_type<tc>, window_params = [{transform_indices = @transform_0, window_bounds = array<i64: 8, 8, 32>}, {pipeline_mode = #tpu.pipeline_mode<synchronous>, transform_indices = @transform_1, window_bounds = array<i64: 32, 96>}, {pipeline_mode = #tpu.pipeline_mode<synchronous>, transform_indices = @transform_2, window_bounds = array<i64: 32, 32>}, {pipeline_mode = #tpu.pipeline_mode<synchronous>, transform_indices = @transform_3, window_bounds = array<i64: 1, 32>}, {transform_indices = @transform_4, window_bounds = array<i64: 8, 8, 32>}]} {
    %c0 = arith.constant 0 : index
    %c0_0 = arith.constant 0 : index
    %c0_1 = arith.constant 0 : index
    %0 = vector.load %arg1[%c0, %c0_0, %c0_1] : memref<8x8x32xf32, #tpu.memory_space<vmem>>, vector<8x8x32xf32>
    %1 = vector.shape_cast %0 : vector<8x8x32xf32> to vector<64x32xf32>
    %c0_2 = arith.constant 0 : index
    %c0_3 = arith.constant 0 : index
    %2 = vector.load %arg2[%c0_2, %c0_3] : memref<32x96xf32, #tpu.memory_space<vmem>>, vector<32x96xf32>
    %cst = arith.constant dense<0.000000e+00> : vector<64x96xf32>
    %3 = tpu.matmul %1, %2, %cst {dimension_numbers = #tpu.dot_dimension_numbers<[1], [0], [0], [1], [0, 0, 1, 1], [], []>} : vector<64x32xf32>, vector<32x96xf32>, vector<64x96xf32> -> vector<64x96xf32>
    %4 = vector.extract_strided_slice %3 {offsets = [0, 0], sizes = [64, 32], strides = [1, 1]} : vector<64x96xf32> to vector<64x32xf32>
    %cst_4 = arith.constant 0.353553385 : f32
    %5 = vector.broadcast %cst_4 : f32 to vector<64x32xf32>
    %6 = arith.mulf %4, %5 : vector<64x32xf32>
    %7 = vector.shape_cast %6 : vector<64x32xf32> to vector<8x8x32xf32>
    %8 = vector.extract_strided_slice %3 {offsets = [0, 32], sizes = [64, 32], strides = [1, 1]} : vector<64x96xf32> to vector<64x32xf32>
    %9 = vector.shape_cast %8 : vector<64x32xf32> to vector<8x8x32xf32>
    %10 = vector.extract_strided_slice %3 {offsets = [0, 64], sizes = [64, 32], strides = [1, 1]} : vector<64x96xf32> to vector<64x32xf32>
    %11 = vector.shape_cast %10 : vector<64x32xf32> to vector<8x8x32xf32>
    %cst_5 = arith.constant 0.000000e+00 : f32
    %12 = vector.broadcast %cst_5 : f32 to vector<64x32xf32>
    %13 = vector.extract_strided_slice %7 {offsets = [0, 0, 0], sizes = [8, 8, 8], strides = [1, 1, 1]} : vector<8x8x32xf32> to vector<8x8x8xf32>
    %14 = vector.extract_strided_slice %9 {offsets = [0, 0, 0], sizes = [8, 8, 8], strides = [1, 1, 1]} : vector<8x8x32xf32> to vector<8x8x8xf32>
    %15 = vector.extract_strided_slice %11 {offsets = [0, 0, 0], sizes = [8, 8, 8], strides = [1, 1, 1]} : vector<8x8x32xf32> to vector<8x8x8xf32>
    "tpu.trace_start"() <{level = 10 : i32, message = "gnd,gmd->gnm"}> : () -> ()
    %cst_6 = arith.constant dense<0.000000e+00> : vector<8x8x8xf32>
    %16 = tpu.matmul %13, %14, %cst_6 {dimension_numbers = #tpu.dot_dimension_numbers<[2], [2], [1], [1], [0, 0, 0, 1, 1, 1], [0], [0]>} : vector<8x8x8xf32>, vector<8x8x8xf32>, vector<8x8x8xf32> -> vector<8x8x8xf32>
    "tpu.trace_stop"() : () -> ()
    %cst_7 = arith.constant dense<0xFF800000> : vector<8x8xf32>
    %17 = vector.multi_reduction <maximumf>, %16, %cst_7 [2] : vector<8x8x8xf32> to vector<8x8xf32>
    %18 = vector.shape_cast %17 : vector<8x8xf32> to vector<8x8x1xf32>
    %19 = vector.broadcast %18 : vector<8x8x1xf32> to vector<8x8x8xf32>
    %20 = arith.subf %16, %19 : vector<8x8x8xf32>
    %21 = math.exp %20 : vector<8x8x8xf32>
    %cst_8 = arith.constant dense<0.000000e+00> : vector<8x8xf32>
    %22 = vector.multi_reduction <add>, %21, %cst_8 [2] : vector<8x8x8xf32> to vector<8x8xf32>
    %23 = vector.shape_cast %22 : vector<8x8xf32> to vector<8x8x1xf32>
    "tpu.trace_start"() <{level = 10 : i32, message = "gnm,gmd->gnd"}> : () -> ()
    %cst_9 = arith.constant dense<0.000000e+00> : vector<8x8x8xf32>
    %24 = tpu.matmul %21, %15, %cst_9 {dimension_numbers = #tpu.dot_dimension_numbers<[2], [1], [1], [2], [0, 0, 0, 1, 1, 2], [0], [0]>} : vector<8x8x8xf32>, vector<8x8x8xf32>, vector<8x8x8xf32> -> vector<8x8x8xf32>
    "tpu.trace_stop"() : () -> ()
    %25 = vector.broadcast %23 : vector<8x8x1xf32> to vector<8x8x8xf32>
    %26 = arith.divf %24, %25 : vector<8x8x8xf32>
    %27 = vector.shape_cast %26 : vector<8x8x8xf32> to vector<64x8xf32>
    %c0_10 = arith.constant 0 : index
    %c0_11 = arith.constant 0 : index
    %28 = vector.load %arg3[%c0_10, %c0_11] : memref<32x32xf32, #tpu.memory_space<vmem>>, vector<8x32xf32>
    %cst_12 = arith.constant dense<0.000000e+00> : vector<64x32xf32>
    %29 = tpu.matmul %27, %28, %cst_12 {dimension_numbers = #tpu.dot_dimension_numbers<[1], [0], [0], [1], [0, 0, 1, 1], [], []>} : vector<64x8xf32>, vector<8x32xf32>, vector<64x32xf32> -> vector<64x32xf32>
    %30 = arith.addf %12, %29 : vector<64x32xf32>
    %31 = vector.extract_strided_slice %7 {offsets = [0, 0, 8], sizes = [8, 8, 8], strides = [1, 1, 1]} : vector<8x8x32xf32> to vector<8x8x8xf32>
    %32 = vector.extract_strided_slice %9 {offsets = [0, 0, 8], sizes = [8, 8, 8], strides = [1, 1, 1]} : vector<8x8x32xf32> to vector<8x8x8xf32>
    %33 = vector.extract_strided_slice %11 {offsets = [0, 0, 8], sizes = [8, 8, 8], strides = [1, 1, 1]} : vector<8x8x32xf32> to vector<8x8x8xf32>
    "tpu.trace_start"() <{level = 10 : i32, message = "gnd,gmd->gnm"}> : () -> ()
    %cst_13 = arith.constant dense<0.000000e+00> : vector<8x8x8xf32>
    %34 = tpu.matmul %31, %32, %cst_13 {dimension_numbers = #tpu.dot_dimension_numbers<[2], [2], [1], [1], [0, 0, 0, 1, 1, 1], [0], [0]>} : vector<8x8x8xf32>, vector<8x8x8xf32>, vector<8x8x8xf32> -> vector<8x8x8xf32>
    "tpu.trace_stop"() : () -> ()
    %cst_14 = arith.constant dense<0xFF800000> : vector<8x8xf32>
    %35 = vector.multi_reduction <maximumf>, %34, %cst_14 [2] : vector<8x8x8xf32> to vector<8x8xf32>
    %36 = vector.shape_cast %35 : vector<8x8xf32> to vector<8x8x1xf32>
    %37 = vector.broadcast %36 : vector<8x8x1xf32> to vector<8x8x8xf32>
    %38 = arith.subf %34, %37 : vector<8x8x8xf32>
    %39 = math.exp %38 : vector<8x8x8xf32>
    %cst_15 = arith.constant dense<0.000000e+00> : vector<8x8xf32>
    %40 = vector.multi_reduction <add>, %39, %cst_15 [2] : vector<8x8x8xf32> to vector<8x8xf32>
    %41 = vector.shape_cast %40 : vector<8x8xf32> to vector<8x8x1xf32>
    "tpu.trace_start"() <{level = 10 : i32, message = "gnm,gmd->gnd"}> : () -> ()
    %cst_16 = arith.constant dense<0.000000e+00> : vector<8x8x8xf32>
    %42 = tpu.matmul %39, %33, %cst_16 {dimension_numbers = #tpu.dot_dimension_numbers<[2], [1], [1], [2], [0, 0, 0, 1, 1, 2], [0], [0]>} : vector<8x8x8xf32>, vector<8x8x8xf32>, vector<8x8x8xf32> -> vector<8x8x8xf32>
    "tpu.trace_stop"() : () -> ()
    %43 = vector.broadcast %41 : vector<8x8x1xf32> to vector<8x8x8xf32>
    %44 = arith.divf %42, %43 : vector<8x8x8xf32>
    %45 = vector.shape_cast %44 : vector<8x8x8xf32> to vector<64x8xf32>
    %c8 = arith.constant 8 : index
    %c0_17 = arith.constant 0 : index
    %46 = vector.load %arg3[%c8, %c0_17] : memref<32x32xf32, #tpu.memory_space<vmem>>, vector<8x32xf32>
    %cst_18 = arith.constant dense<0.000000e+00> : vector<64x32xf32>
    %47 = tpu.matmul %45, %46, %cst_18 {dimension_numbers = #tpu.dot_dimension_numbers<[1], [0], [0], [1], [0, 0, 1, 1], [], []>} : vector<64x8xf32>, vector<8x32xf32>, vector<64x32xf32> -> vector<64x32xf32>
    %48 = arith.addf %30, %47 : vector<64x32xf32>
    %49 = vector.extract_strided_slice %7 {offsets = [0, 0, 16], sizes = [8, 8, 8], strides = [1, 1, 1]} : vector<8x8x32xf32> to vector<8x8x8xf32>
    %50 = vector.extract_strided_slice %9 {offsets = [0, 0, 16], sizes = [8, 8, 8], strides = [1, 1, 1]} : vector<8x8x32xf32> to vector<8x8x8xf32>
    %51 = vector.extract_strided_slice %11 {offsets = [0, 0, 16], sizes = [8, 8, 8], strides = [1, 1, 1]} : vector<8x8x32xf32> to vector<8x8x8xf32>
    "tpu.trace_start"() <{level = 10 : i32, message = "gnd,gmd->gnm"}> : () -> ()
    %cst_19 = arith.constant dense<0.000000e+00> : vector<8x8x8xf32>
    %52 = tpu.matmul %49, %50, %cst_19 {dimension_numbers = #tpu.dot_dimension_numbers<[2], [2], [1], [1], [0, 0, 0, 1, 1, 1], [0], [0]>} : vector<8x8x8xf32>, vector<8x8x8xf32>, vector<8x8x8xf32> -> vector<8x8x8xf32>
    "tpu.trace_stop"() : () -> ()
    %cst_20 = arith.constant dense<0xFF800000> : vector<8x8xf32>
    %53 = vector.multi_reduction <maximumf>, %52, %cst_20 [2] : vector<8x8x8xf32> to vector<8x8xf32>
    %54 = vector.shape_cast %53 : vector<8x8xf32> to vector<8x8x1xf32>
    %55 = vector.broadcast %54 : vector<8x8x1xf32> to vector<8x8x8xf32>
    %56 = arith.subf %52, %55 : vector<8x8x8xf32>
    %57 = math.exp %56 : vector<8x8x8xf32>
    %cst_21 = arith.constant dense<0.000000e+00> : vector<8x8xf32>
    %58 = vector.multi_reduction <add>, %57, %cst_21 [2] : vector<8x8x8xf32> to vector<8x8xf32>
    %59 = vector.shape_cast %58 : vector<8x8xf32> to vector<8x8x1xf32>
    "tpu.trace_start"() <{level = 10 : i32, message = "gnm,gmd->gnd"}> : () -> ()
    %cst_22 = arith.constant dense<0.000000e+00> : vector<8x8x8xf32>
    %60 = tpu.matmul %57, %51, %cst_22 {dimension_numbers = #tpu.dot_dimension_numbers<[2], [1], [1], [2], [0, 0, 0, 1, 1, 2], [0], [0]>} : vector<8x8x8xf32>, vector<8x8x8xf32>, vector<8x8x8xf32> -> vector<8x8x8xf32>
    "tpu.trace_stop"() : () -> ()
    %61 = vector.broadcast %59 : vector<8x8x1xf32> to vector<8x8x8xf32>
    %62 = arith.divf %60, %61 : vector<8x8x8xf32>
    %63 = vector.shape_cast %62 : vector<8x8x8xf32> to vector<64x8xf32>
    %c16 = arith.constant 16 : index
    %c0_23 = arith.constant 0 : index
    %64 = vector.load %arg3[%c16, %c0_23] : memref<32x32xf32, #tpu.memory_space<vmem>>, vector<8x32xf32>
    %cst_24 = arith.constant dense<0.000000e+00> : vector<64x32xf32>
    %65 = tpu.matmul %63, %64, %cst_24 {dimension_numbers = #tpu.dot_dimension_numbers<[1], [0], [0], [1], [0, 0, 1, 1], [], []>} : vector<64x8xf32>, vector<8x32xf32>, vector<64x32xf32> -> vector<64x32xf32>
    %66 = arith.addf %48, %65 : vector<64x32xf32>
    %67 = vector.extract_strided_slice %7 {offsets = [0, 0, 24], sizes = [8, 8, 8], strides = [1, 1, 1]} : vector<8x8x32xf32> to vector<8x8x8xf32>
    %68 = vector.extract_strided_slice %9 {offsets = [0, 0, 24], sizes = [8, 8, 8], strides = [1, 1, 1]} : vector<8x8x32xf32> to vector<8x8x8xf32>
    %69 = vector.extract_strided_slice %11 {offsets = [0, 0, 24], sizes = [8, 8, 8], strides = [1, 1, 1]} : vector<8x8x32xf32> to vector<8x8x8xf32>
    "tpu.trace_start"() <{level = 10 : i32, message = "gnd,gmd->gnm"}> : () -> ()
    %cst_25 = arith.constant dense<0.000000e+00> : vector<8x8x8xf32>
    %70 = tpu.matmul %67, %68, %cst_25 {dimension_numbers = #tpu.dot_dimension_numbers<[2], [2], [1], [1], [0, 0, 0, 1, 1, 1], [0], [0]>} : vector<8x8x8xf32>, vector<8x8x8xf32>, vector<8x8x8xf32> -> vector<8x8x8xf32>
    "tpu.trace_stop"() : () -> ()
    %cst_26 = arith.constant dense<0xFF800000> : vector<8x8xf32>
    %71 = vector.multi_reduction <maximumf>, %70, %cst_26 [2] : vector<8x8x8xf32> to vector<8x8xf32>
    %72 = vector.shape_cast %71 : vector<8x8xf32> to vector<8x8x1xf32>
    %73 = vector.broadcast %72 : vector<8x8x1xf32> to vector<8x8x8xf32>
    %74 = arith.subf %70, %73 : vector<8x8x8xf32>
    %75 = math.exp %74 : vector<8x8x8xf32>
    %cst_27 = arith.constant dense<0.000000e+00> : vector<8x8xf32>
    %76 = vector.multi_reduction <add>, %75, %cst_27 [2] : vector<8x8x8xf32> to vector<8x8xf32>
    %77 = vector.shape_cast %76 : vector<8x8xf32> to vector<8x8x1xf32>
    "tpu.trace_start"() <{level = 10 : i32, message = "gnm,gmd->gnd"}> : () -> ()
    %cst_28 = arith.constant dense<0.000000e+00> : vector<8x8x8xf32>
    %78 = tpu.matmul %75, %69, %cst_28 {dimension_numbers = #tpu.dot_dimension_numbers<[2], [1], [1], [2], [0, 0, 0, 1, 1, 2], [0], [0]>} : vector<8x8x8xf32>, vector<8x8x8xf32>, vector<8x8x8xf32> -> vector<8x8x8xf32>
    "tpu.trace_stop"() : () -> ()
    %79 = vector.broadcast %77 : vector<8x8x1xf32> to vector<8x8x8xf32>
    %80 = arith.divf %78, %79 : vector<8x8x8xf32>
    %81 = vector.shape_cast %80 : vector<8x8x8xf32> to vector<64x8xf32>
    %c24 = arith.constant 24 : index
    %c0_29 = arith.constant 0 : index
    %82 = vector.load %arg3[%c24, %c0_29] : memref<32x32xf32, #tpu.memory_space<vmem>>, vector<8x32xf32>
    %cst_30 = arith.constant dense<0.000000e+00> : vector<64x32xf32>
    %83 = tpu.matmul %81, %82, %cst_30 {dimension_numbers = #tpu.dot_dimension_numbers<[1], [0], [0], [1], [0, 0, 1, 1], [], []>} : vector<64x8xf32>, vector<8x32xf32>, vector<64x32xf32> -> vector<64x32xf32>
    %84 = arith.addf %66, %83 : vector<64x32xf32>
    %c0_31 = arith.constant 0 : index
    %c0_32 = arith.constant 0 : index
    %85 = vector.load %arg4[%c0_31, %c0_32] : memref<1x32xf32, #tpu.memory_space<vmem>>, vector<1x32xf32>
    %86 = vector.broadcast %85 : vector<1x32xf32> to vector<64x32xf32>
    %87 = arith.addf %84, %86 : vector<64x32xf32>
    %88 = vector.shape_cast %87 : vector<64x32xf32> to vector<8x8x32xf32>
    %c0_33 = arith.constant 0 : index
    %c0_34 = arith.constant 0 : index
    %c0_35 = arith.constant 0 : index
    %89 = vector.load %arg5[%c0_33, %c0_34, %c0_35] : memref<8x8x32xf32, #tpu.memory_space<vmem>>, vector<8x8x32xf32>
    tpu.vector_store %arg5[%c0_33, %c0_34, %c0_35], %88 {strides = array<i32>} : memref<8x8x32xf32, #tpu.memory_space<vmem>>, vector<8x8x32xf32>,
    return
  }
  func.func @transform_0(%arg0: i32) -> (i32, i32, i32) {
    %c0_i32 = arith.constant 0 : i32
    %c0_i32_0 = arith.constant 0 : i32
    %c0_i32_1 = arith.constant 0 : i32
    return %arg0, %c0_i32, %c0_i32_0 : i32, i32, i32
  }
  func.func @transform_1(%arg0: i32) -> (i32, i32) {
    %c0_i32 = arith.constant 0 : i32
    %c0_i32_0 = arith.constant 0 : i32
    %c0_i32_1 = arith.constant 0 : i32
    return %c0_i32, %c0_i32_0 : i32, i32
  }
  func.func @transform_2(%arg0: i32) -> (i32, i32) {
    %c0_i32 = arith.constant 0 : i32
    %c0_i32_0 = arith.constant 0 : i32
    %c0_i32_1 = arith.constant 0 : i32
    return %c0_i32, %c0_i32_0 : i32, i32
  }
  func.func @transform_3(%arg0: i32) -> (i32, i32) {
    %c0_i32 = arith.constant 0 : i32
    %c0_i32_0 = arith.constant 0 : i32
    %c0_i32_1 = arith.constant 0 : i32
    return %c0_i32, %c0_i32_0 : i32, i32
  }
  func.func @transform_4(%arg0: i32) -> (i32, i32, i32) {
    %c0_i32 = arith.constant 0 : i32
    %c0_i32_0 = arith.constant 0 : i32
    %c0_i32_1 = arith.constant 0 : i32
    return %arg0, %c0_i32, %c0_i32_0 : i32, i32, i32
  }
}

</mosaic_0001>

<llo_original>
// kernel: tpu_custom_call.1
$region0: #{tpu_custom_call.1}
  #allocation0 [shape = 'u32[]', space=smem, size = 0x4, offset = 0x4, fixed_abs, tag = 'smem constant byte address 0x4 - core index']
  #allocation1 [shape = 'u32[144,128]{1,0:T(1,128)}', space=vmem, size = 0x12000, scoped, tag = 'internal scratch']
  %s0 = inlined_call_operand.hbm [shape: f32[8,8,32], index: 0, kind: input, shape index: {}]
  %s1 = inlined_call_operand.hbm [shape: f32[32,96], index: 1, kind: input, shape index: {}]
  %s2 = inlined_call_operand.hbm [shape: f32[32,32], index: 2, kind: input, shape index: {}]
  %s3 = inlined_call_operand.vmem [shape: f32[1,32], index: 3, kind: input, shape index: {}]
  %s4 = inlined_call_operand.hbm [shape: f32[8,8,32], index: 4, kind: output, shape index: {}]
  %s5 = sld [smem:[#allocation0]]
  $region38: #{tpu_custom_call.1} parent=0
    _
  %s7 = ssub.s32 1, %s5
  %s8 = scalar_select 0, %s7, %s5
  $region1: #{tpu_custom_call.1} parent=0
    #allocation2 [shape = 'u8[32768]{0}', space=vmem, size = 0x8000, scoped, tag = 'input window, operand 0, single buffered']
    #allocation3 [shape = 's32[1]{0}', space=sflag, size = 0x4, scoped, tag = 'scoped memory for tpu_custom_call.1']
    #allocation4 [shape = 's32[1]{0}', space=sflag, size = 0x4, scoped, tag = 'scoped memory for tpu_custom_call.1']
    #allocation5 [shape = 'u8[16384]{0}', space=vmem, size = 0x4000, scoped, tag = 'input window, operand 1, single buffered']
    #allocation6 [shape = 's32[1]{0}', space=sflag, size = 0x4, scoped, tag = 'scoped memory for tpu_custom_call.1']
    #allocation7 [shape = 'u8[16384]{0}', space=vmem, size = 0x4000, scoped, tag = 'input window, operand 2, single buffered']
    #allocation8 [shape = 'u8[32768]{0}', space=vmem, size = 0x8000, scoped, tag = 'output window, operand 0, single buffered']
    %9 = vsyncpa [#allocation3], 0
    %10 = vsyncpa [#allocation6], 0
    %11 = vsyncpa [#allocation4], 0
    // Predicated region
    $region2: #{tpu_custom_call.1} parent=1 // pred_check
      _
    $region3: #{tpu_custom_call.1} parent=1 // pred_check_branch
      %13 = sbr.rel (0) target = $region5
    $region4: #{tpu_custom_call.1} parent=1 // pred_region
      %s15 = ssub.s32 1024, 1024
      %16 = vsyncadd [#allocation3], %s15
      %s17 = sshll.u32 [#allocation2], 4
      %s18 = int_to_ptr.vmem [resolvable:$true] %s17
      %23 = dma.hbm_to_vmem [thread:$0]  %s0, 1024, %s18, [#allocation3], 128, 128, 8
    $region5: #{tpu_custom_call.1} parent=1 // pred_fallthru
      _
    // Predicated region
    $region6: #{tpu_custom_call.1} parent=1 // pred_check
      _
    $region7: #{tpu_custom_call.1} parent=1 // pred_check_branch
      %25 = sbr.rel (0) target = $region9
    $region8: #{tpu_custom_call.1} parent=1 // pred_region
      %s27 = ssub.s32 512, 512
      %28 = vsyncadd [#allocation6], %s27
      %s29 = sshll.u32 [#allocation5], 4
      %s30 = int_to_ptr.vmem [resolvable:$true] %s29
      %35 = dma.hbm_to_vmem [thread:$0]  %s1, 512, %s30, [#allocation6], 128, 128, 8
    $region9: #{tpu_custom_call.1} parent=1 // pred_fallthru
      _
    // Predicated region
    $region10: #{tpu_custom_call.1} parent=1 // pred_check
      _
    $region11: #{tpu_custom_call.1} parent=1 // pred_check_branch
      %37 = sbr.rel (0) target = $region13
    $region12: #{tpu_custom_call.1} parent=1 // pred_region
      %s39 = ssub.s32 512, 512
      %40 = vsyncadd [#allocation6], %s39
      %s41 = sshll.u32 [#allocation7], 4
      %s42 = int_to_ptr.vmem [resolvable:$true] %s41
      %47 = dma.hbm_to_vmem [thread:$0]  %s2, 512, %s42, [#allocation6], 128, 128, 8
    $region13: #{tpu_custom_call.1} parent=1 // pred_fallthru
      _
    // Predicated region
    $region14: #{tpu_custom_call.1} parent=1 // pred_check
      _
    $region15: #{tpu_custom_call.1} parent=1 // pred_check_branch
      %49 = sbr.rel (0) target = $region17
    $region16: #{tpu_custom_call.1} parent=1 // pred_region
      _
    $region17: #{tpu_custom_call.1} parent=1 // pred_fallthru
      _
    // Predicated region
    $region18: #{tpu_custom_call.1} parent=1 // pred_check
      _
    $region19: #{tpu_custom_call.1} parent=1 // pred_check_branch
      %51 = sbr.rel (0) target = $region21
    $region20: #{tpu_custom_call.1} parent=1 // pred_region
      %52 = dma.done [#allocation3], 1024
    $region21: #{tpu_custom_call.1} parent=1 // pred_fallthru
      _
    // Predicated region
    $region22: #{tpu_custom_call.1} parent=1 // pred_check
      _
    $region23: #{tpu_custom_call.1} parent=1 // pred_check_branch
      %54 = sbr.rel (0) target = $region25
    $region24: #{tpu_custom_call.1} parent=1 // pred_region
      %55 = dma.done [#allocation6], 512
    $region25: #{tpu_custom_call.1} parent=1 // pred_fallthru
      _
    // Predicated region
    $region26: #{tpu_custom_call.1} parent=1 // pred_check
      _
    $region27: #{tpu_custom_call.1} parent=1 // pred_check_branch
      %57 = sbr.rel (0) target = $region29
    $region28: #{tpu_custom_call.1} parent=1 // pred_region
      %58 = dma.done [#allocation6], 512
    $region29: #{tpu_custom_call.1} parent=1 // pred_fallthru
      _
    %v59 = vld [vmem:[#allocation2] sm:$0xff]
    %v60 = vld [vmem:[#allocation2 + $0x8] sm:$0xff]
    %v61 = vld [vmem:[#allocation2 + $0x10] sm:$0xff]
    %v62 = vld [vmem:[#allocation2 + $0x18] sm:$0xff]
    %v63 = vld [vmem:[#allocation2 + $0x20] sm:$0xff]
    %v64 = vld [vmem:[#allocation2 + $0x28] sm:$0xff]
    %v65 = vld [vmem:[#allocation2 + $0x30] sm:$0xff]
    %v66 = vld [vmem:[#allocation2 + $0x38] sm:$0xff]
    %v67 = vld [vmem:[#allocation5] sm:$0xff]
    %v68 = vld [vmem:[#allocation5 + $0x8] sm:$0xff]
    %v69 = vld [vmem:[#allocation5 + $0x10] sm:$0xff]
    %v70 = vld [vmem:[#allocation5 + $0x18] sm:$0xff]
    %vm71 = vcmask 261120
    %v73 = vsel %vm71, %v59, 0
    %v76 = vsel %vm71, %v60, 0
    %v79 = vsel %vm71, %v61, 0
    %v82 = vsel %vm71, %v62, 0
    %v85 = vsel %vm71, %v63, 0
    %v88 = vsel %vm71, %v64, 0
    %v91 = vsel %vm71, %v65, 0
    %v94 = vsel %vm71, %v66, 0
    %96 = vmatprep.subr.mxu0 0.0
    %97 = vmatpush1.msra.mxu0 0.0
    %98 = vmatprep.subr.mxu0 0.0
    %99 = vmatpush1.msra.mxu0 0.0
    %100 = vmatprep.subr.mxu0 0.0
    %101 = vmatpush1.msra.mxu0 0.0
    %102 = vmatprep.subr.mxu0 0.0
    %103 = vmatpush1.msra.mxu0 0.0
    %104 = vmatprep.subr.mxu0 0.0
    %105 = vmatpush1.msra.mxu0 0.0
    %106 = vmatprep.subr.mxu0 0.0
    %107 = vmatpush1.msra.mxu0 0.0
    %108 = vmatprep.subr.mxu0 0.0
    %109 = vmatpush1.msra.mxu0 0.0
    %110 = vmatprep.subr.mxu0 0.0
    %111 = vmatpush1.msra.mxu0 0.0
    %112 = vmatprep.subr.mxu0 0.0
    %113 = vmatpush1.msra.mxu0 0.0
    %114 = vmatprep.subr.mxu0 0.0
    %115 = vmatpush1.msra.mxu0 0.0
    %116 = vmatprep.subr.mxu0 0.0
    %117 = vmatpush1.msra.mxu0 0.0
    %118 = vmatprep.subr.mxu0 0.0
    %119 = vmatpush1.msra.mxu0 0.0
    %120 = vmatprep.subr.mxu0 0.0
    %121 = vmatpush1.msra.mxu0 %v70
    %122 = vmatprep.subr.mxu0 0.0
    %123 = vmatpush1.msra.mxu0 %v69
    %124 = vmatprep.subr.mxu0 0.0
    %125 = vmatpush1.msra.mxu0 %v68
    %126 = vmatprep.subr.mxu0 0.0
    %127 = vmatpush1.msra.mxu0 %v67
    %128 = vmatprep.subr.mxu0 0.0
    %129 = vmatpush2.msra.mxu0 0.0
    %130 = vmatprep.subr.mxu0 0.0
    %131 = vmatpush2.msra.mxu0 0.0
    %132 = vmatprep.subr.mxu0 0.0
    %133 = vmatpush2.msra.mxu0 0.0
    %134 = vmatprep.subr.mxu0 0.0
    %135 = vmatpush2.msra.mxu0 0.0
    %136 = vmatprep.subr.mxu0 0.0
    %137 = vmatpush2.msra.mxu0 0.0
    %138 = vmatprep.subr.mxu0 0.0
    %139 = vmatpush2.msra.mxu0 0.0
    %140 = vmatprep.subr.mxu0 0.0
    %141 = vmatpush2.msra.mxu0 0.0
    %142 = vmatprep.subr.mxu0 0.0
    %143 = vmatpush2.msra.mxu0 0.0
    %144 = vmatprep.subr.mxu0 0.0
    %145 = vmatpush2.msra.mxu0 0.0
    %146 = vmatprep.subr.mxu0 0.0
    %147 = vmatpush2.msra.mxu0 0.0
    %148 = vmatprep.subr.mxu0 0.0
    %149 = vmatpush2.msra.mxu0 0.0
    %150 = vmatprep.subr.mxu0 0.0
    %151 = vmatpush2.msra.mxu0 0.0
    %152 = vmatprep.subr.mxu0 0.0
    %153 = vmatpush2.msra.mxu0 0.0
    %154 = vmatprep.subr.mxu0 0.0
    %155 = vmatpush2.msra.mxu0 0.0
    %156 = vmatprep.subr.mxu0 0.0
    %157 = vmatpush2.msra.mxu0 0.0
    %158 = vmatprep.subr.mxu0 0.0
    %159 = vmatpush2.msra.mxu0 0.0
    %160 = vmatprep.mubr.f32.mxu0 0.0
    %161 = vmatmul.mubr.f32.gmra.mxu0 %v73
    %v162 = vpop.f32.mrf.mxu0
    %v163 = vadd.f32 0.0, %v162
    %v164 = vpop.f32.mrf.mxu0
    %165 = vmatprep.mubr.f32.mxu0 0.0
    %166 = vmatmul.mubr.f32.gmra.mxu0 %v76
    %v167 = vpop.f32.mrf.mxu0
    %v168 = vadd.f32 0.0, %v167
    %v169 = vpop.f32.mrf.mxu0
    %170 = vmatprep.mubr.f32.mxu0 0.0
    %171 = vmatmul.mubr.f32.gmra.mxu0 %v79
    %v172 = vpop.f32.mrf.mxu0
    %v173 = vadd.f32 0.0, %v172
    %v174 = vpop.f32.mrf.mxu0
    %175 = vmatprep.mubr.f32.mxu0 0.0
    %176 = vmatmul.mubr.f32.gmra.mxu0 %v82
    %v177 = vpop.f32.mrf.mxu0
    %v178 = vadd.f32 0.0, %v177
    %v179 = vpop.f32.mrf.mxu0
    %180 = vmatprep.mubr.f32.mxu0 0.0
    %181 = vmatmul.mubr.f32.gmra.mxu0 %v85
    %v182 = vpop.f32.mrf.mxu0
    %v183 = vadd.f32 0.0, %v182
    %v184 = vpop.f32.mrf.mxu0
    %185 = vmatprep.mubr.f32.mxu0 0.0
    %186 = vmatmul.mubr.f32.gmra.mxu0 %v88
    %v187 = vpop.f32.mrf.mxu0
    %v188 = vadd.f32 0.0, %v187
    %v189 = vpop.f32.mrf.mxu0
    %190 = vmatprep.mubr.f32.mxu0 0.0
    %191 = vmatmul.mubr.f32.gmra.mxu0 %v91
    %v192 = vpop.f32.mrf.mxu0
    %v193 = vadd.f32 0.0, %v192
    %v194 = vpop.f32.mrf.mxu0
    %195 = vmatprep.mubr.f32.mxu0 0.0
    %196 = vmatmul.mubr.f32.gmra.mxu0 %v94
    %v197 = vpop.f32.mrf.mxu0
    %v198 = vadd.f32 0.0, %v197
    %v199 = vpop.f32.mrf.mxu0
    %200 = vdwg.mxu0
    %v201 = vmul.f32 %v163, 0.35355338
    %v202 = vmul.f32 %v168, 0.35355338
    %v203 = vmul.f32 %v173, 0.35355338
    %v204 = vmul.f32 %v178, 0.35355338
    %v205 = vmul.f32 %v183, 0.35355338
    %v206 = vmul.f32 %v188, 0.35355338
    %v207 = vmul.f32 %v193, 0.35355338
    %v208 = vmul.f32 %v198, 0.35355338
    %210 = vrot.lane.b32.xlu0 %v163, 96
    %v211 = vpop.permute.xlu0 %210
    %vm212 = vcmask 64512
    %v214 = vsel %vm212, %v201, 0
    %v216 = vsel %vm212, %v211, 0
    %218 = vmatprep.subr.mxu0 0.0
    %219 = vmatpush1.xpose.msra.mxu0 0.0
    %220 = vmatprep.subr.mxu0 0.0
    %221 = vmatpush1.xpose.msra.mxu0 0.0
    %222 = vmatprep.subr.mxu0 0.0
    %223 = vmatpush1.xpose.msra.mxu0 0.0
    %224 = vmatprep.subr.mxu0 0.0
    %225 = vmatpush1.xpose.msra.mxu0 0.0
    %226 = vmatprep.subr.mxu0 0.0
    %227 = vmatpush1.xpose.msra.mxu0 0.0
    %228 = vmatprep.subr.mxu0 0.0
    %229 = vmatpush1.xpose.msra.mxu0 0.0
    %230 = vmatprep.subr.mxu0 0.0
    %231 = vmatpush1.xpose.msra.mxu0 0.0
    %232 = vmatprep.subr.mxu0 0.0
    %233 = vmatpush1.xpose.msra.mxu0 0.0
    %234 = vmatprep.subr.mxu0 0.0
    %235 = vmatpush1.xpose.msra.mxu0 0.0
    %236 = vmatprep.subr.mxu0 0.0
    %237 = vmatpush1.xpose.msra.mxu0 0.0
    %238 = vmatprep.subr.mxu0 0.0
    %239 = vmatpush1.xpose.msra.mxu0 0.0
    %240 = vmatprep.subr.mxu0 0.0
    %241 = vmatpush1.xpose.msra.mxu0 0.0
    %242 = vmatprep.subr.mxu0 0.0
    %243 = vmatpush1.xpose.msra.mxu0 0.0
    %244 = vmatprep.subr.mxu0 0.0
    %245 = vmatpush1.xpose.msra.mxu0 0.0
    %246 = vmatprep.subr.mxu0 0.0
    %247 = vmatpush1.xpose.msra.mxu0 0.0
    %248 = vmatprep.subr.mxu0 0.0
    %249 = vmatpush1.xpose.msra.mxu0 %v216
    %250 = vmatprep.subr.mxu0 0.0
    %251 = vmatpush2.xpose.msra.mxu0 0.0
    %252 = vmatprep.subr.mxu0 0.0
    %253 = vmatpush2.xpose.msra.mxu0 0.0
    %254 = vmatprep.subr.mxu0 0.0
    %255 = vmatpush2.xpose.msra.mxu0 0.0
    %256 = vmatprep.subr.mxu0 0.0
    %257 = vmatpush2.xpose.msra.mxu0 0.0
    %258 = vmatprep.subr.mxu0 0.0
    %259 = vmatpush2.xpose.msra.mxu0 0.0
    %260 = vmatprep.subr.mxu0 0.0
    %261 = vmatpush2.xpose.msra.mxu0 0.0
    %262 = vmatprep.subr.mxu0 0.0
    %263 = vmatpush2.xpose.msra.mxu0 0.0
    %264 = vmatprep.subr.mxu0 0.0
    %265 = vmatpush2.xpose.msra.mxu0 0.0
    %266 = vmatprep.subr.mxu0 0.0
    %267 = vmatpush2.xpose.msra.mxu0 0.0
    %268 = vmatprep.subr.mxu0 0.0
    %269 = vmatpush2.xpose.msra.mxu0 0.0
    %270 = vmatprep.subr.mxu0 0.0
    %271 = vmatpush2.xpose.msra.mxu0 0.0
    %272 = vmatprep.subr.mxu0 0.0
    %273 = vmatpush2.xpose.msra.mxu0 0.0
    %274 = vmatprep.subr.mxu0 0.0
    %275 = vmatpush2.xpose.msra.mxu0 0.0
    %276 = vmatprep.subr.mxu0 0.0
    %277 = vmatpush2.xpose.msra.mxu0 0.0
    %278 = vmatprep.subr.mxu0 0.0
    %279 = vmatpush2.xpose.msra.mxu0 0.0
    %280 = vmatprep.subr.mxu0 0.0
    %281 = vmatpush2.xpose.msra.mxu0 0.0
    %282 = vmatprep.mubr.f32.mxu0 0.0
    %283 = vmatmul.mubr.f32.gmra.mxu0 %v214
    %v284 = vpop.f32.mrf.mxu0
    %v285 = vadd.f32 0.0, %v284
    %v286 = vpop.f32.mrf.mxu0
    %287 = vdwg.mxu0
    %289 = vrot.lane.b32.xlu0 %v168, 96
    %v290 = vpop.permute.xlu0 %289
    %v292 = vsel %vm212, %v202, 0
    %v294 = vsel %vm212, %v290, 0
    %296 = vmatprep.subr.mxu0 0.0
    %297 = vmatpush1.xpose.msra.mxu0 0.0
    %298 = vmatprep.subr.mxu0 0.0
    %299 = vmatpush1.xpose.msra.mxu0 0.0
    %300 = vmatprep.subr.mxu0 0.0
    %301 = vmatpush1.xpose.msra.mxu0 0.0
    %302 = vmatprep.subr.mxu0 0.0
    %303 = vmatpush1.xpose.msra.mxu0 0.0
    %304 = vmatprep.subr.mxu0 0.0
    %305 = vmatpush1.xpose.msra.mxu0 0.0
    %306 = vmatprep.subr.mxu0 0.0
    %307 = vmatpush1.xpose.msra.mxu0 0.0
    %308 = vmatprep.subr.mxu0 0.0
    %309 = vmatpush1.xpose.msra.mxu0 0.0
    %310 = vmatprep.subr.mxu0 0.0
    %311 = vmatpush1.xpose.msra.mxu0 0.0
    %312 = vmatprep.subr.mxu0 0.0
    %313 = vmatpush1.xpose.msra.mxu0 0.0
    %314 = vmatprep.subr.mxu0 0.0
    %315 = vmatpush1.xpose.msra.mxu0 0.0
    %316 = vmatprep.subr.mxu0 0.0
    %317 = vmatpush1.xpose.msra.mxu0 0.0
    %318 = vmatprep.subr.mxu0 0.0
    %319 = vmatpush1.xpose.msra.mxu0 0.0
    %320 = vmatprep.subr.mxu0 0.0
    %321 = vmatpush1.xpose.msra.mxu0 0.0
    %322 = vmatprep.subr.mxu0 0.0
    %323 = vmatpush1.xpose.msra.mxu0 0.0
    %324 = vmatprep.subr.mxu0 0.0
    %325 = vmatpush1.xpose.msra.mxu0 0.0
    %326 = vmatprep.subr.mxu0 0.0
    %327 = vmatpush1.xpose.msra.mxu0 %v294
    %328 = vmatprep.subr.mxu0 0.0
    %329 = vmatpush2.xpose.msra.mxu0 0.0
    %330 = vmatprep.subr.mxu0 0.0
    %331 = vmatpush2.xpose.msra.mxu0 0.0
    %332 = vmatprep.subr.mxu0 0.0
    %333 = vmatpush2.xpose.msra.mxu0 0.0
    %334 = vmatprep.subr.mxu0 0.0
    %335 = vmatpush2.xpose.msra.mxu0 0.0
    %336 = vmatprep.subr.mxu0 0.0
    %337 = vmatpush2.xpose.msra.mxu0 0.0
    %338 = vmatprep.subr.mxu0 0.0
    %339 = vmatpush2.xpose.msra.mxu0 0.0
    %340 = vmatprep.subr.mxu0 0.0
    %341 = vmatpush2.xpose.msra.mxu0 0.0
    %342 = vmatprep.subr.mxu0 0.0
    %343 = vmatpush2.xpose.msra.mxu0 0.0
    %344 = vmatprep.subr.mxu0 0.0
    %345 = vmatpush2.xpose.msra.mxu0 0.0
    %346 = vmatprep.subr.mxu0 0.0
    %347 = vmatpush2.xpose.msra.mxu0 0.0
    %348 = vmatprep.subr.mxu0 0.0
    %349 = vmatpush2.xpose.msra.mxu0 0.0
    %350 = vmatprep.subr.mxu0 0.0
    %351 = vmatpush2.xpose.msra.mxu0 0.0
    %352 = vmatprep.subr.mxu0 0.0
    %353 = vmatpush2.xpose.msra.mxu0 0.0
    %354 = vmatprep.subr.mxu0 0.0
    %355 = vmatpush2.xpose.msra.mxu0 0.0
    %356 = vmatprep.subr.mxu0 0.0
    %357 = vmatpush2.xpose.msra.mxu0 0.0
    %358 = vmatprep.subr.mxu0 0.0
    %359 = vmatpush2.xpose.msra.mxu0 0.0
    %360 = vmatprep.mubr.f32.mxu0 0.0
    %361 = vmatmul.mubr.f32.gmra.mxu0 %v292
    %v362 = vpop.f32.mrf.mxu0
    %v363 = vadd.f32 0.0, %v362
    %v364 = vpop.f32.mrf.mxu0
    %365 = vdwg.mxu0
    %367 = vrot.lane.b32.xlu0 %v173, 96
    %v368 = vpop.permute.xlu0 %367
    %v370 = vsel %vm212, %v203, 0
    %v372 = vsel %vm212, %v368, 0
    %374 = vmatprep.subr.mxu0 0.0
    %375 = vmatpush1.xpose.msra.mxu0 0.0
    %376 = vmatprep.subr.mxu0 0.0
    %377 = vmatpush1.xpose.msra.mxu0 0.0
    %378 = vmatprep.subr.mxu0 0.0
    %379 = vmatpush1.xpose.msra.mxu0 0.0
    %380 = vmatprep.subr.mxu0 0.0
    %381 = vmatpush1.xpose.msra.mxu0 0.0
    %382 = vmatprep.subr.mxu0 0.0
    %383 = vmatpush1.xpose.msra.mxu0 0.0
    %384 = vmatprep.subr.mxu0 0.0
    %385 = vmatpush1.xpose.msra.mxu0 0.0
    %386 = vmatprep.subr.mxu0 0.0
    %387 = vmatpush1.xpose.msra.mxu0 0.0
    %388 = vmatprep.subr.mxu0 0.0
    %389 = vmatpush1.xpose.msra.mxu0 0.0
    %390 = vmatprep.subr.mxu0 0.0
    %391 = vmatpush1.xpose.msra.mxu0 0.0
    %392 = vmatprep.subr.mxu0 0.0
    %393 = vmatpush1.xpose.msra.mxu0 0.0
    %394 = vmatprep.subr.mxu0 0.0
    %395 = vmatpush1.xpose.msra.mxu0 0.0
    %396 = vmatprep.subr.mxu0 0.0
    %397 = vmatpush1.xpose.msra.mxu0 0.0
    %398 = vmatprep.subr.mxu0 0.0
    %399 = vmatpush1.xpose.msra.mxu0 0.0
    %400 = vmatprep.subr.mxu0 0.0
    %401 = vmatpush1.xpose.msra.mxu0 0.0
    %402 = vmatprep.subr.mxu0 0.0
    %403 = vmatpush1.xpose.msra.mxu0 0.0
    %404 = vmatprep.subr.mxu0 0.0
    %405 = vmatpush1.xpose.msra.mxu0 %v372
    %406 = vmatprep.subr.mxu0 0.0
    %407 = vmatpush2.xpose.msra.mxu0 0.0
    %408 = vmatprep.subr.mxu0 0.0
    %409 = vmatpush2.xpose.msra.mxu0 0.0
    %410 = vmatprep.subr.mxu0 0.0
    %411 = vmatpush2.xpose.msra.mxu0 0.0
    %412 = vmatprep.subr.mxu0 0.0
    %413 = vmatpush2.xpose.msra.mxu0 0.0
    %414 = vmatprep.subr.mxu0 0.0
    %415 = vmatpush2.xpose.msra.mxu0 0.0
    %416 = vmatprep.subr.mxu0 0.0
    %417 = vmatpush2.xpose.msra.mxu0 0.0
    %418 = vmatprep.subr.mxu0 0.0
    %419 = vmatpush2.xpose.msra.mxu0 0.0
    %420 = vmatprep.subr.mxu0 0.0
    %421 = vmatpush2.xpose.msra.mxu0 0.0
    %422 = vmatprep.subr.mxu0 0.0
    %423 = vmatpush2.xpose.msra.mxu0 0.0
    %424 = vmatprep.subr.mxu0 0.0
    %425 = vmatpush2.xpose.msra.mxu0 0.0
    %426 = vmatprep.subr.mxu0 0.0
    %427 = vmatpush2.xpose.msra.mxu0 0.0
    %428 = vmatprep.subr.mxu0 0.0
    %429 = vmatpush2.xpose.msra.mxu0 0.0
    %430 = vmatprep.subr.mxu0 0.0
    %431 = vmatpush2.xpose.msra.mxu0 0.0
    %432 = vmatprep.subr.mxu0 0.0
    %433 = vmatpush2.xpose.msra.mxu0 0.0
    %434 = vmatprep.subr.mxu0 0.0
    %435 = vmatpush2.xpose.msra.mxu0 0.0
    %436 = vmatprep.subr.mxu0 0.0
    %437 = vmatpush2.xpose.msra.mxu0 0.0
    %438 = vmatprep.mubr.f32.mxu0 0.0
    %439 = vmatmul.mubr.f32.gmra.mxu0 %v370
    %v440 = vpop.f32.mrf.mxu0
    %v441 = vadd.f32 0.0, %v440
    %v442 = vpop.f32.mrf.mxu0
    %443 = vdwg.mxu0
    %445 = vrot.lane.b32.xlu0 %v178, 96
    %v446 = vpop.permute.xlu0 %445
    %v448 = vsel %vm212, %v204, 0
    %v450 = vsel %vm212, %v446, 0
    %452 = vmatprep.subr.mxu0 0.0
    %453 = vmatpush1.xpose.msra.mxu0 0.0
    %454 = vmatprep.subr.mxu0 0.0
    %455 = vmatpush1.xpose.msra.mxu0 0.0
    %456 = vmatprep.subr.mxu0 0.0
    %457 = vmatpush1.xpose.msra.mxu0 0.0
    %458 = vmatprep.subr.mxu0 0.0
    %459 = vmatpush1.xpose.msra.mxu0 0.0
    %460 = vmatprep.subr.mxu0 0.0
    %461 = vmatpush1.xpose.msra.mxu0 0.0
    %462 = vmatprep.subr.mxu0 0.0
    %463 = vmatpush1.xpose.msra.mxu0 0.0
    %464 = vmatprep.subr.mxu0 0.0
    %465 = vmatpush1.xpose.msra.mxu0 0.0
    %466 = vmatprep.subr.mxu0 0.0
    %467 = vmatpush1.xpose.msra.mxu0 0.0
    %468 = vmatprep.subr.mxu0 0.0
    %469 = vmatpush1.xpose.msra.mxu0 0.0
    %470 = vmatprep.subr.mxu0 0.0
    %471 = vmatpush1.xpose.msra.mxu0 0.0
    %472 = vmatprep.subr.mxu0 0.0
    %473 = vmatpush1.xpose.msra.mxu0 0.0
    %474 = vmatprep.subr.mxu0 0.0
    %475 = vmatpush1.xpose.msra.mxu0 0.0
    %476 = vmatprep.subr.mxu0 0.0
    %477 = vmatpush1.xpose.msra.mxu0 0.0
    %478 = vmatprep.subr.mxu0 0.0
    %479 = vmatpush1.xpose.msra.mxu0 0.0
    %480 = vmatprep.subr.mxu0 0.0
    %481 = vmatpush1.xpose.msra.mxu0 0.0
    %482 = vmatprep.subr.mxu0 0.0
    %483 = vmatpush1.xpose.msra.mxu0 %v450
    %484 = vmatprep.subr.mxu0 0.0
    %485 = vmatpush2.xpose.msra.mxu0 0.0
    %486 = vmatprep.subr.mxu0 0.0
    %487 = vmatpush2.xpose.msra.mxu0 0.0
    %488 = vmatprep.subr.mxu0 0.0
    %489 = vmatpush2.xpose.msra.mxu0 0.0
    %490 = vmatprep.subr.mxu0 0.0
    %491 = vmatpush2.xpose.msra.mxu0 0.0
    %492 = vmatprep.subr.mxu0 0.0
    %493 = vmatpush2.xpose.msra.mxu0 0.0
    %494 = vmatprep.subr.mxu0 0.0
    %495 = vmatpush2.xpose.msra.mxu0 0.0
    %496 = vmatprep.subr.mxu0 0.0
    %497 = vmatpush2.xpose.msra.mxu0 0.0
    %498 = vmatprep.subr.mxu0 0.0
    %499 = vmatpush2.xpose.msra.mxu0 0.0
    %500 = vmatprep.subr.mxu0 0.0
    %501 = vmatpush2.xpose.msra.mxu0 0.0
    %502 = vmatprep.subr.mxu0 0.0
    %503 = vmatpush2.xpose.msra.mxu0 0.0
    %504 = vmatprep.subr.mxu0 0.0
    %505 = vmatpush2.xpose.msra.mxu0 0.0
    %506 = vmatprep.subr.mxu0 0.0
    %507 = vmatpush2.xpose.msra.mxu0 0.0
    %508 = vmatprep.subr.mxu0 0.0
    %509 = vmatpush2.xpose.msra.mxu0 0.0
    %510 = vmatprep.subr.mxu0 0.0
    %511 = vmatpush2.xpose.msra.mxu0 0.0
    %512 = vmatprep.subr.mxu0 0.0
    %513 = vmatpush2.xpose.msra.mxu0 0.0
    %514 = vmatprep.subr.mxu0 0.0
    %515 = vmatpush2.xpose.msra.mxu0 0.0
    %516 = vmatprep.mubr.f32.mxu0 0.0
    %517 = vmatmul.mubr.f32.gmra.mxu0 %v448
    %v518 = vpop.f32.mrf.mxu0
    %v519 = vadd.f32 0.0, %v518
    %v520 = vpop.f32.mrf.mxu0
    %521 = vdwg.mxu0
    %523 = vrot.lane.b32.xlu0 %v183, 96
    %v524 = vpop.permute.xlu0 %523
    %v526 = vsel %vm212, %v205, 0
    %v528 = vsel %vm212, %v524, 0
    %530 = vmatprep.subr.mxu0 0.0
    %531 = vmatpush1.xpose.msra.mxu0 0.0
    %532 = vmatprep.subr.mxu0 0.0
    %533 = vmatpush1.xpose.msra.mxu0 0.0
    %534 = vmatprep.subr.mxu0 0.0
    %535 = vmatpush1.xpose.msra.mxu0 0.0
    %536 = vmatprep.subr.mxu0 0.0
    %537 = vmatpush1.xpose.msra.mxu0 0.0
    %538 = vmatprep.subr.mxu0 0.0
    %539 = vmatpush1.xpose.msra.mxu0 0.0
    %540 = vmatprep.subr.mxu0 0.0
    %541 = vmatpush1.xpose.msra.mxu0 0.0
    %542 = vmatprep.subr.mxu0 0.0
    %543 = vmatpush1.xpose.msra.mxu0 0.0
    %544 = vmatprep.subr.mxu0 0.0
    %545 = vmatpush1.xpose.msra.mxu0 0.0
    %546 = vmatprep.subr.mxu0 0.0
    %547 = vmatpush1.xpose.msra.mxu0 0.0
    %548 = vmatprep.subr.mxu0 0.0
    %549 = vmatpush1.xpose.msra.mxu0 0.0
    %550 = vmatprep.subr.mxu0 0.0
    %551 = vmatpush1.xpose.msra.mxu0 0.0
    %552 = vmatprep.subr.mxu0 0.0
    %553 = vmatpush1.xpose.msra.mxu0 0.0
    %554 = vmatprep.subr.mxu0 0.0
    %555 = vmatpush1.xpose.msra.mxu0 0.0
    %556 = vmatprep.subr.mxu0 0.0
    %557 = vmatpush1.xpose.msra.mxu0 0.0
    %558 = vmatprep.subr.mxu0 0.0
    %559 = vmatpush1.xpose.msra.mxu0 0.0
    %560 = vmatprep.subr.mxu0 0.0
    %561 = vmatpush1.xpose.msra.mxu0 %v528
    %562 = vmatprep.subr.mxu0 0.0
    %563 = vmatpush2.xpose.msra.mxu0 0.0
    %564 = vmatprep.subr.mxu0 0.0
    %565 = vmatpush2.xpose.msra.mxu0 0.0
    %566 = vmatprep.subr.mxu0 0.0
    %567 = vmatpush2.xpose.msra.mxu0 0.0
    %568 = vmatprep.subr.mxu0 0.0
    %569 = vmatpush2.xpose.msra.mxu0 0.0
    %570 = vmatprep.subr.mxu0 0.0
    %571 = vmatpush2.xpose.msra.mxu0 0.0
    %572 = vmatprep.subr.mxu0 0.0
    %573 = vmatpush2.xpose.msra.mxu0 0.0
    %574 = vmatprep.subr.mxu0 0.0
    %575 = vmatpush2.xpose.msra.mxu0 0.0
    %576 = vmatprep.subr.mxu0 0.0
    %577 = vmatpush2.xpose.msra.mxu0 0.0
    %578 = vmatprep.subr.mxu0 0.0
    %579 = vmatpush2.xpose.msra.mxu0 0.0
    %580 = vmatprep.subr.mxu0 0.0
    %581 = vmatpush2.xpose.msra.mxu0 0.0
    %582 = vmatprep.subr.mxu0 0.0
    %583 = vmatpush2.xpose.msra.mxu0 0.0
    %584 = vmatprep.subr.mxu0 0.0
    %585 = vmatpush2.xpose.msra.mxu0 0.0
    %586 = vmatprep.subr.mxu0 0.0
    %587 = vmatpush2.xpose.msra.mxu0 0.0
    %588 = vmatprep.subr.mxu0 0.0
    %589 = vmatpush2.xpose.msra.mxu0 0.0
    %590 = vmatprep.subr.mxu0 0.0
    %591 = vmatpush2.xpose.msra.mxu0 0.0
    %592 = vmatprep.subr.mxu0 0.0
    %593 = vmatpush2.xpose.msra.mxu0 0.0
    %594 = vmatprep.mubr.f32.mxu0 0.0
    %595 = vmatmul.mubr.f32.gmra.mxu0 %v526
    %v596 = vpop.f32.mrf.mxu0
    %v597 = vadd.f32 0.0, %v596
    %v598 = vpop.f32.mrf.mxu0
    %599 = vdwg.mxu0
    %601 = vrot.lane.b32.xlu0 %v188, 96
    %v602 = vpop.permute.xlu0 %601
    %v604 = vsel %vm212, %v206, 0
    %v606 = vsel %vm212, %v602, 0
    %608 = vmatprep.subr.mxu0 0.0
    %609 = vmatpush1.xpose.msra.mxu0 0.0
    %610 = vmatprep.subr.mxu0 0.0
    %611 = vmatpush1.xpose.msra.mxu0 0.0
    %612 = vmatprep.subr.mxu0 0.0
    %613 = vmatpush1.xpose.msra.mxu0 0.0
    %614 = vmatprep.subr.mxu0 0.0
    %615 = vmatpush1.xpose.msra.mxu0 0.0
    %616 = vmatprep.subr.mxu0 0.0
    %617 = vmatpush1.xpose.msra.mxu0 0.0
    %618 = vmatprep.subr.mxu0 0.0
    %619 = vmatpush1.xpose.msra.mxu0 0.0
    %620 = vmatprep.subr.mxu0 0.0
    %621 = vmatpush1.xpose.msra.mxu0 0.0
    %622 = vmatprep.subr.mxu0 0.0
    %623 = vmatpush1.xpose.msra.mxu0 0.0
    %624 = vmatprep.subr.mxu0 0.0
    %625 = vmatpush1.xpose.msra.mxu0 0.0
    %626 = vmatprep.subr.mxu0 0.0
    %627 = vmatpush1.xpose.msra.mxu0 0.0
    %628 = vmatprep.subr.mxu0 0.0
    %629 = vmatpush1.xpose.msra.mxu0 0.0
    %630 = vmatprep.subr.mxu0 0.0
    %631 = vmatpush1.xpose.msra.mxu0 0.0
    %632 = vmatprep.subr.mxu0 0.0
    %633 = vmatpush1.xpose.msra.mxu0 0.0
    %634 = vmatprep.subr.mxu0 0.0
    %635 = vmatpush1.xpose.msra.mxu0 0.0
    %636 = vmatprep.subr.mxu0 0.0
    %637 = vmatpush1.xpose.msra.mxu0 0.0
    %638 = vmatprep.subr.mxu0 0.0
    %639 = vmatpush1.xpose.msra.mxu0 %v606
    %640 = vmatprep.subr.mxu0 0.0
    %641 = vmatpush2.xpose.msra.mxu0 0.0
    %642 = vmatprep.subr.mxu0 0.0
    %643 = vmatpush2.xpose.msra.mxu0 0.0
    %644 = vmatprep.subr.mxu0 0.0
    %645 = vmatpush2.xpose.msra.mxu0 0.0
    %646 = vmatprep.subr.mxu0 0.0
    %647 = vmatpush2.xpose.msra.mxu0 0.0
    %648 = vmatprep.subr.mxu0 0.0
    %649 = vmatpush2.xpose.msra.mxu0 0.0
    %650 = vmatprep.subr.mxu0 0.0
    %651 = vmatpush2.xpose.msra.mxu0 0.0
    %652 = vmatprep.subr.mxu0 0.0
    %653 = vmatpush2.xpose.msra.mxu0 0.0
    %654 = vmatprep.subr.mxu0 0.0
    %655 = vmatpush2.xpose.msra.mxu0 0.0
    %656 = vmatprep.subr.mxu0 0.0
    %657 = vmatpush2.xpose.msra.mxu0 0.0
    %658 = vmatprep.subr.mxu0 0.0
    %659 = vmatpush2.xpose.msra.mxu0 0.0
    %660 = vmatprep.subr.mxu0 0.0
    %661 = vmatpush2.xpose.msra.mxu0 0.0
    %662 = vmatprep.subr.mxu0 0.0
    %663 = vmatpush2.xpose.msra.mxu0 0.0
    %664 = vmatprep.subr.mxu0 0.0
    %665 = vmatpush2.xpose.msra.mxu0 0.0
    %666 = vmatprep.subr.mxu0 0.0
    %667 = vmatpush2.xpose.msra.mxu0 0.0
    %668 = vmatprep.subr.mxu0 0.0
    %669 = vmatpush2.xpose.msra.mxu0 0.0
    %670 = vmatprep.subr.mxu0 0.0
    %671 = vmatpush2.xpose.msra.mxu0 0.0
    %672 = vmatprep.mubr.f32.mxu0 0.0
    %673 = vmatmul.mubr.f32.gmra.mxu0 %v604
    %v674 = vpop.f32.mrf.mxu0
    %v675 = vadd.f32 0.0, %v674
    %v676 = vpop.f32.mrf.mxu0
    %677 = vdwg.mxu0
    %679 = vrot.lane.b32.xlu0 %v193, 96
    %v680 = vpop.permute.xlu0 %679
    %v682 = vsel %vm212, %v207, 0
    %v684 = vsel %vm212, %v680, 0
    %686 = vmatprep.subr.mxu0 0.0
    %687 = vmatpush1.xpose.msra.mxu0 0.0
    %688 = vmatprep.subr.mxu0 0.0
    %689 = vmatpush1.xpose.msra.mxu0 0.0
    %690 = vmatprep.subr.mxu0 0.0
    %691 = vmatpush1.xpose.msra.mxu0 0.0
    %692 = vmatprep.subr.mxu0 0.0
    %693 = vmatpush1.xpose.msra.mxu0 0.0
    %694 = vmatprep.subr.mxu0 0.0
    %695 = vmatpush1.xpose.msra.mxu0 0.0
    %696 = vmatprep.subr.mxu0 0.0
    %697 = vmatpush1.xpose.msra.mxu0 0.0
    %698 = vmatprep.subr.mxu0 0.0
    %699 = vmatpush1.xpose.msra.mxu0 0.0
    %700 = vmatprep.subr.mxu0 0.0
    %701 = vmatpush1.xpose.msra.mxu0 0.0
    %702 = vmatprep.subr.mxu0 0.0
    %703 = vmatpush1.xpose.msra.mxu0 0.0
    %704 = vmatprep.subr.mxu0 0.0
    %705 = vmatpush1.xpose.msra.mxu0 0.0
    %706 = vmatprep.subr.mxu0 0.0
    %707 = vmatpush1.xpose.msra.mxu0 0.0
    %708 = vmatprep.subr.mxu0 0.0
    %709 = vmatpush1.xpose.msra.mxu0 0.0
    %710 = vmatprep.subr.mxu0 0.0
    %711 = vmatpush1.xpose.msra.mxu0 0.0
    %712 = vmatprep.subr.mxu0 0.0
    %713 = vmatpush1.xpose.msra.mxu0 0.0
    %714 = vmatprep.subr.mxu0 0.0
    %715 = vmatpush1.xpose.msra.mxu0 0.0
    %716 = vmatprep.subr.mxu0 0.0
    %717 = vmatpush1.xpose.msra.mxu0 %v684
    %718 = vmatprep.subr.mxu0 0.0
    %719 = vmatpush2.xpose.msra.mxu0 0.0
    %720 = vmatprep.subr.mxu0 0.0
    %721 = vmatpush2.xpose.msra.mxu0 0.0
    %722 = vmatprep.subr.mxu0 0.0
    %723 = vmatpush2.xpose.msra.mxu0 0.0
    %724 = vmatprep.subr.mxu0 0.0
    %725 = vmatpush2.xpose.msra.mxu0 0.0
    %726 = vmatprep.subr.mxu0 0.0
    %727 = vmatpush2.xpose.msra.mxu0 0.0
    %728 = vmatprep.subr.mxu0 0.0
    %729 = vmatpush2.xpose.msra.mxu0 0.0
    %730 = vmatprep.subr.mxu0 0.0
    %731 = vmatpush2.xpose.msra.mxu0 0.0
    %732 = vmatprep.subr.mxu0 0.0
    %733 = vmatpush2.xpose.msra.mxu0 0.0
    %734 = vmatprep.subr.mxu0 0.0
    %735 = vmatpush2.xpose.msra.mxu0 0.0
    %736 = vmatprep.subr.mxu0 0.0
    %737 = vmatpush2.xpose.msra.mxu0 0.0
    %738 = vmatprep.subr.mxu0 0.0
    %739 = vmatpush2.xpose.msra.mxu0 0.0
    %740 = vmatprep.subr.mxu0 0.0
    %741 = vmatpush2.xpose.msra.mxu0 0.0
    %742 = vmatprep.subr.mxu0 0.0
    %743 = vmatpush2.xpose.msra.mxu0 0.0
    %744 = vmatprep.subr.mxu0 0.0
    %745 = vmatpush2.xpose.msra.mxu0 0.0
    %746 = vmatprep.subr.mxu0 0.0
    %747 = vmatpush2.xpose.msra.mxu0 0.0
    %748 = vmatprep.subr.mxu0 0.0
    %749 = vmatpush2.xpose.msra.mxu0 0.0
    %750 = vmatprep.mubr.f32.mxu0 0.0
    %751 = vmatmul.mubr.f32.gmra.mxu0 %v682
    %v752 = vpop.f32.mrf.mxu0
    %v753 = vadd.f32 0.0, %v752
    %v754 = vpop.f32.mrf.mxu0
    %755 = vdwg.mxu0
    %757 = vrot.lane.b32.xlu0 %v198, 96
    %v758 = vpop.permute.xlu0 %757
    %v760 = vsel %vm212, %v208, 0
    %v762 = vsel %vm212, %v758, 0
    %764 = vmatprep.subr.mxu0 0.0
    %765 = vmatpush1.xpose.msra.mxu0 0.0
    %766 = vmatprep.subr.mxu0 0.0
    %767 = vmatpush1.xpose.msra.mxu0 0.0
    %768 = vmatprep.subr.mxu0 0.0
    %769 = vmatpush1.xpose.msra.mxu0 0.0
    %770 = vmatprep.subr.mxu0 0.0
    %771 = vmatpush1.xpose.msra.mxu0 0.0
    %772 = vmatprep.subr.mxu0 0.0
    %773 = vmatpush1.xpose.msra.mxu0 0.0
    %774 = vmatprep.subr.mxu0 0.0
    %775 = vmatpush1.xpose.msra.mxu0 0.0
    %776 = vmatprep.subr.mxu0 0.0
    %777 = vmatpush1.xpose.msra.mxu0 0.0
    %778 = vmatprep.subr.mxu0 0.0
    %779 = vmatpush1.xpose.msra.mxu0 0.0
    %780 = vmatprep.subr.mxu0 0.0
    %781 = vmatpush1.xpose.msra.mxu0 0.0
    %782 = vmatprep.subr.mxu0 0.0
    %783 = vmatpush1.xpose.msra.mxu0 0.0
    %784 = vmatprep.subr.mxu0 0.0
    %785 = vmatpush1.xpose.msra.mxu0 0.0
    %786 = vmatprep.subr.mxu0 0.0
    %787 = vmatpush1.xpose.msra.mxu0 0.0
    %788 = vmatprep.subr.mxu0 0.0
    %789 = vmatpush1.xpose.msra.mxu0 0.0
    %790 = vmatprep.subr.mxu0 0.0
    %791 = vmatpush1.xpose.msra.mxu0 0.0
    %792 = vmatprep.subr.mxu0 0.0
    %793 = vmatpush1.xpose.msra.mxu0 0.0
    %794 = vmatprep.subr.mxu0 0.0
    %795 = vmatpush1.xpose.msra.mxu0 %v762
    %796 = vmatprep.subr.mxu0 0.0
    %797 = vmatpush2.xpose.msra.mxu0 0.0
    %798 = vmatprep.subr.mxu0 0.0
    %799 = vmatpush2.xpose.msra.mxu0 0.0
    %800 = vmatprep.subr.mxu0 0.0
    %801 = vmatpush2.xpose.msra.mxu0 0.0
    %802 = vmatprep.subr.mxu0 0.0
    %803 = vmatpush2.xpose.msra.mxu0 0.0
    %804 = vmatprep.subr.mxu0 0.0
    %805 = vmatpush2.xpose.msra.mxu0 0.0
    %806 = vmatprep.subr.mxu0 0.0
    %807 = vmatpush2.xpose.msra.mxu0 0.0
    %808 = vmatprep.subr.mxu0 0.0
    %809 = vmatpush2.xpose.msra.mxu0 0.0
    %810 = vmatprep.subr.mxu0 0.0
    %811 = vmatpush2.xpose.msra.mxu0 0.0
    %812 = vmatprep.subr.mxu0 0.0
    %813 = vmatpush2.xpose.msra.mxu0 0.0
    %814 = vmatprep.subr.mxu0 0.0
    %815 = vmatpush2.xpose.msra.mxu0 0.0
    %816 = vmatprep.subr.mxu0 0.0
    %817 = vmatpush2.xpose.msra.mxu0 0.0
    %818 = vmatprep.subr.mxu0 0.0
    %819 = vmatpush2.xpose.msra.mxu0 0.0
    %820 = vmatprep.subr.mxu0 0.0
    %821 = vmatpush2.xpose.msra.mxu0 0.0
    %822 = vmatprep.subr.mxu0 0.0
    %823 = vmatpush2.xpose.msra.mxu0 0.0
    %824 = vmatprep.subr.mxu0 0.0
    %825 = vmatpush2.xpose.msra.mxu0 0.0
    %826 = vmatprep.subr.mxu0 0.0
    %827 = vmatpush2.xpose.msra.mxu0 0.0
    %828 = vmatprep.mubr.f32.mxu0 0.0
    %829 = vmatmul.mubr.f32.gmra.mxu0 %v760
    %v830 = vpop.f32.mrf.mxu0
    %v831 = vadd.f32 0.0, %v830
    %v832 = vpop.f32.mrf.mxu0
    %833 = vdwg.mxu0
    %v834 = vsel %vm212, %v285, -inf
    %835 = vmax.xlane.f32.xlu0 %v834
    %v836 = vpop.xlane.xlu0 %835
    %v837 = vsel %vm212, %v363, -inf
    %838 = vmax.xlane.f32.xlu0 %v837
    %v839 = vpop.xlane.xlu0 %838
    %v840 = vsel %vm212, %v441, -inf
    %841 = vmax.xlane.f32.xlu0 %v840
    %v842 = vpop.xlane.xlu0 %841
    %v843 = vsel %vm212, %v519, -inf
    %844 = vmax.xlane.f32.xlu0 %v843
    %v845 = vpop.xlane.xlu0 %844
    %v846 = vsel %vm212, %v597, -inf
    %847 = vmax.xlane.f32.xlu0 %v846
    %v848 = vpop.xlane.xlu0 %847
    %v849 = vsel %vm212, %v675, -inf
    %850 = vmax.xlane.f32.xlu0 %v849
    %v851 = vpop.xlane.xlu0 %850
    %v852 = vsel %vm212, %v753, -inf
    %853 = vmax.xlane.f32.xlu0 %v852
    %v854 = vpop.xlane.xlu0 %853
    %v855 = vsel %vm212, %v831, -inf
    %856 = vmax.xlane.f32.xlu0 %v855
    %v857 = vpop.xlane.xlu0 %856
    %v858 = vsub.f32 %v285, %v836
    %v859 = vsub.f32 %v363, %v839
    %v860 = vsub.f32 %v441, %v842
    %v861 = vsub.f32 %v519, %v845
    %v862 = vsub.f32 %v597, %v848
    %v863 = vsub.f32 %v675, %v851
    %v864 = vsub.f32 %v753, %v854
    %v865 = vsub.f32 %v831, %v857
    %v866 = vmul.f32 %v858, 1.442695
    %v867 = vpow.pop %v866
    %v868 = vmul.f32 %v859, 1.442695
    %v869 = vpow.pop %v868
    %v870 = vmul.f32 %v860, 1.442695
    %v871 = vpow.pop %v870
    %v872 = vmul.f32 %v861, 1.442695
    %v873 = vpow.pop %v872
    %v874 = vmul.f32 %v862, 1.442695
    %v875 = vpow.pop %v874
    %v876 = vmul.f32 %v863, 1.442695
    %v877 = vpow.pop %v876
    %v878 = vmul.f32 %v864, 1.442695
    %v879 = vpow.pop %v878
    %v880 = vmul.f32 %v865, 1.442695
    %v881 = vpow.pop %v880
    %v882 = vsel %vm212, %v867, 0.0
    %883 = vadd.xlane.f32.xlu0 %v882
    %v884 = vpop.xlane.xlu0 %883
    %v885 = vsel %vm212, %v869, 0.0
    %886 = vadd.xlane.f32.xlu0 %v885
    %v887 = vpop.xlane.xlu0 %886
    %v888 = vsel %vm212, %v871, 0.0
    %889 = vadd.xlane.f32.xlu0 %v888
    %v890 = vpop.xlane.xlu0 %889
    %v891 = vsel %vm212, %v873, 0.0
    %892 = vadd.xlane.f32.xlu0 %v891
    %v893 = vpop.xlane.xlu0 %892
    %v894 = vsel %vm212, %v875, 0.0
    %895 = vadd.xlane.f32.xlu0 %v894
    %v896 = vpop.xlane.xlu0 %895
    %v897 = vsel %vm212, %v877, 0.0
    %898 = vadd.xlane.f32.xlu0 %v897
    %v899 = vpop.xlane.xlu0 %898
    %v900 = vsel %vm212, %v879, 0.0
    %901 = vadd.xlane.f32.xlu0 %v900
    %v902 = vpop.xlane.xlu0 %901
    %v903 = vsel %vm212, %v881, 0.0
    %904 = vadd.xlane.f32.xlu0 %v903
    %v905 = vpop.xlane.xlu0 %904
    %906 = vrot.lane.b32.xlu0 %v163, 64
    %v907 = vpop.permute.xlu0 %906
    %v910 = vsel %vm212, %v867, 0
    %912 = vmatprep.subr.mxu0 0.0
    %913 = vmatpush1.msra.mxu0 0.0
    %914 = vmatprep.subr.mxu0 0.0
    %915 = vmatpush1.msra.mxu0 0.0
    %916 = vmatprep.subr.mxu0 0.0
    %917 = vmatpush1.msra.mxu0 0.0
    %918 = vmatprep.subr.mxu0 0.0
    %919 = vmatpush1.msra.mxu0 0.0
    %920 = vmatprep.subr.mxu0 0.0
    %921 = vmatpush1.msra.mxu0 0.0
    %922 = vmatprep.subr.mxu0 0.0
    %923 = vmatpush1.msra.mxu0 0.0
    %924 = vmatprep.subr.mxu0 0.0
    %925 = vmatpush1.msra.mxu0 0.0
    %926 = vmatprep.subr.mxu0 0.0
    %927 = vmatpush1.msra.mxu0 0.0
    %928 = vmatprep.subr.mxu0 0.0
    %929 = vmatpush1.msra.mxu0 0.0
    %930 = vmatprep.subr.mxu0 0.0
    %931 = vmatpush1.msra.mxu0 0.0
    %932 = vmatprep.subr.mxu0 0.0
    %933 = vmatpush1.msra.mxu0 0.0
    %934 = vmatprep.subr.mxu0 0.0
    %935 = vmatpush1.msra.mxu0 0.0
    %936 = vmatprep.subr.mxu0 0.0
    %937 = vmatpush1.msra.mxu0 0.0
    %938 = vmatprep.subr.mxu0 0.0
    %939 = vmatpush1.msra.mxu0 0.0
    %940 = vmatprep.subr.mxu0 0.0
    %941 = vmatpush1.msra.mxu0 0.0
    %942 = vmatprep.subr.mxu0 0.0
    %943 = vmatpush1.msra.mxu0 %v907
    %944 = vmatprep.subr.mxu0 0.0
    %945 = vmatpush2.msra.mxu0 0.0
    %946 = vmatprep.subr.mxu0 0.0
    %947 = vmatpush2.msra.mxu0 0.0
    %948 = vmatprep.subr.mxu0 0.0
    %949 = vmatpush2.msra.mxu0 0.0
    %950 = vmatprep.subr.mxu0 0.0
    %951 = vmatpush2.msra.mxu0 0.0
    %952 = vmatprep.subr.mxu0 0.0
    %953 = vmatpush2.msra.mxu0 0.0
    %954 = vmatprep.subr.mxu0 0.0
    %955 = vmatpush2.msra.mxu0 0.0
    %956 = vmatprep.subr.mxu0 0.0
    %957 = vmatpush2.msra.mxu0 0.0
    %958 = vmatprep.subr.mxu0 0.0
    %959 = vmatpush2.msra.mxu0 0.0
    %960 = vmatprep.subr.mxu0 0.0
    %961 = vmatpush2.msra.mxu0 0.0
    %962 = vmatprep.subr.mxu0 0.0
    %963 = vmatpush2.msra.mxu0 0.0
    %964 = vmatprep.subr.mxu0 0.0
    %965 = vmatpush2.msra.mxu0 0.0
    %966 = vmatprep.subr.mxu0 0.0
    %967 = vmatpush2.msra.mxu0 0.0
    %968 = vmatprep.subr.mxu0 0.0
    %969 = vmatpush2.msra.mxu0 0.0
    %970 = vmatprep.subr.mxu0 0.0
    %971 = vmatpush2.msra.mxu0 0.0
    %972 = vmatprep.subr.mxu0 0.0
    %973 = vmatpush2.msra.mxu0 0.0
    %974 = vmatprep.subr.mxu0 0.0
    %975 = vmatpush2.msra.mxu0 0.0
    %976 = vmatprep.mubr.f32.mxu0 0.0
    %977 = vmatmul.mubr.f32.gmra.mxu0 %v910
    %v978 = vpop.f32.mrf.mxu0
    %v979 = vadd.f32 0.0, %v978
    %v980 = vpop.f32.mrf.mxu0
    %981 = vdwg.mxu0
    %982 = vrot.lane.b32.xlu0 %v168, 64
    %v983 = vpop.permute.xlu0 %982
    %v986 = vsel %vm212, %v869, 0
    %988 = vmatprep.subr.mxu0 0.0
    %989 = vmatpush1.msra.mxu0 0.0
    %990 = vmatprep.subr.mxu0 0.0
    %991 = vmatpush1.msra.mxu0 0.0
    %992 = vmatprep.subr.mxu0 0.0
    %993 = vmatpush1.msra.mxu0 0.0
    %994 = vmatprep.subr.mxu0 0.0
    %995 = vmatpush1.msra.mxu0 0.0
    %996 = vmatprep.subr.mxu0 0.0
    %997 = vmatpush1.msra.mxu0 0.0
    %998 = vmatprep.subr.mxu0 0.0
    %999 = vmatpush1.msra.mxu0 0.0
    %1000 = vmatprep.subr.mxu0 0.0
    %1001 = vmatpush1.msra.mxu0 0.0
    %1002 = vmatprep.subr.mxu0 0.0
    %1003 = vmatpush1.msra.mxu0 0.0
    %1004 = vmatprep.subr.mxu0 0.0
    %1005 = vmatpush1.msra.mxu0 0.0
    %1006 = vmatprep.subr.mxu0 0.0
    %1007 = vmatpush1.msra.mxu0 0.0
    %1008 = vmatprep.subr.mxu0 0.0
    %1009 = vmatpush1.msra.mxu0 0.0
    %1010 = vmatprep.subr.mxu0 0.0
    %1011 = vmatpush1.msra.mxu0 0.0
    %1012 = vmatprep.subr.mxu0 0.0
    %1013 = vmatpush1.msra.mxu0 0.0
    %1014 = vmatprep.subr.mxu0 0.0
    %1015 = vmatpush1.msra.mxu0 0.0
    %1016 = vmatprep.subr.mxu0 0.0
    %1017 = vmatpush1.msra.mxu0 0.0
    %1018 = vmatprep.subr.mxu0 0.0
    %1019 = vmatpush1.msra.mxu0 %v983
    %1020 = vmatprep.subr.mxu0 0.0
    %1021 = vmatpush2.msra.mxu0 0.0
    %1022 = vmatprep.subr.mxu0 0.0
    %1023 = vmatpush2.msra.mxu0 0.0
    %1024 = vmatprep.subr.mxu0 0.0
    %1025 = vmatpush2.msra.mxu0 0.0
    %1026 = vmatprep.subr.mxu0 0.0
    %1027 = vmatpush2.msra.mxu0 0.0
    %1028 = vmatprep.subr.mxu0 0.0
    %1029 = vmatpush2.msra.mxu0 0.0
    %1030 = vmatprep.subr.mxu0 0.0
    %1031 = vmatpush2.msra.mxu0 0.0
    %1032 = vmatprep.subr.mxu0 0.0
    %1033 = vmatpush2.msra.mxu0 0.0
    %1034 = vmatprep.subr.mxu0 0.0
    %1035 = vmatpush2.msra.mxu0 0.0
    %1036 = vmatprep.subr.mxu0 0.0
    %1037 = vmatpush2.msra.mxu0 0.0
    %1038 = vmatprep.subr.mxu0 0.0
    %1039 = vmatpush2.msra.mxu0 0.0
    %1040 = vmatprep.subr.mxu0 0.0
    %1041 = vmatpush2.msra.mxu0 0.0
    %1042 = vmatprep.subr.mxu0 0.0
    %1043 = vmatpush2.msra.mxu0 0.0
    %1044 = vmatprep.subr.mxu0 0.0
    %1045 = vmatpush2.msra.mxu0 0.0
    %1046 = vmatprep.subr.mxu0 0.0
    %1047 = vmatpush2.msra.mxu0 0.0
    %1048 = vmatprep.subr.mxu0 0.0
    %1049 = vmatpush2.msra.mxu0 0.0
    %1050 = vmatprep.subr.mxu0 0.0
    %1051 = vmatpush2.msra.mxu0 0.0
    %1052 = vmatprep.mubr.f32.mxu0 0.0
    %1053 = vmatmul.mubr.f32.gmra.mxu0 %v986
    %v1054 = vpop.f32.mrf.mxu0
    %v1055 = vadd.f32 0.0, %v1054
    %v1056 = vpop.f32.mrf.mxu0
    %1057 = vdwg.mxu0
    %1058 = vrot.lane.b32.xlu0 %v173, 64
    %v1059 = vpop.permute.xlu0 %1058
    %v1062 = vsel %vm212, %v871, 0
    %1064 = vmatprep.subr.mxu0 0.0
    %1065 = vmatpush1.msra.mxu0 0.0
    %1066 = vmatprep.subr.mxu0 0.0
    %1067 = vmatpush1.msra.mxu0 0.0
    %1068 = vmatprep.subr.mxu0 0.0
    %1069 = vmatpush1.msra.mxu0 0.0
    %1070 = vmatprep.subr.mxu0 0.0
    %1071 = vmatpush1.msra.mxu0 0.0
    %1072 = vmatprep.subr.mxu0 0.0
    %1073 = vmatpush1.msra.mxu0 0.0
    %1074 = vmatprep.subr.mxu0 0.0
    %1075 = vmatpush1.msra.mxu0 0.0
    %1076 = vmatprep.subr.mxu0 0.0
    %1077 = vmatpush1.msra.mxu0 0.0
    %1078 = vmatprep.subr.mxu0 0.0
    %1079 = vmatpush1.msra.mxu0 0.0
    %1080 = vmatprep.subr.mxu0 0.0
    %1081 = vmatpush1.msra.mxu0 0.0
    %1082 = vmatprep.subr.mxu0 0.0
    %1083 = vmatpush1.msra.mxu0 0.0
    %1084 = vmatprep.subr.mxu0 0.0
    %1085 = vmatpush1.msra.mxu0 0.0
    %1086 = vmatprep.subr.mxu0 0.0
    %1087 = vmatpush1.msra.mxu0 0.0
    %1088 = vmatprep.subr.mxu0 0.0
    %1089 = vmatpush1.msra.mxu0 0.0
    %1090 = vmatprep.subr.mxu0 0.0
    %1091 = vmatpush1.msra.mxu0 0.0
    %1092 = vmatprep.subr.mxu0 0.0
    %1093 = vmatpush1.msra.mxu0 0.0
    %1094 = vmatprep.subr.mxu0 0.0
    %1095 = vmatpush1.msra.mxu0 %v1059
    %1096 = vmatprep.subr.mxu0 0.0
    %1097 = vmatpush2.msra.mxu0 0.0
    %1098 = vmatprep.subr.mxu0 0.0
    %1099 = vmatpush2.msra.mxu0 0.0
    %1100 = vmatprep.subr.mxu0 0.0
    %1101 = vmatpush2.msra.mxu0 0.0
    %1102 = vmatprep.subr.mxu0 0.0
    %1103 = vmatpush2.msra.mxu0 0.0
    %1104 = vmatprep.subr.mxu0 0.0
    %1105 = vmatpush2.msra.mxu0 0.0
    %1106 = vmatprep.subr.mxu0 0.0
    %1107 = vmatpush2.msra.mxu0 0.0
    %1108 = vmatprep.subr.mxu0 0.0
    %1109 = vmatpush2.msra.mxu0 0.0
    %1110 = vmatprep.subr.mxu0 0.0
    %1111 = vmatpush2.msra.mxu0 0.0
    %1112 = vmatprep.subr.mxu0 0.0
    %1113 = vmatpush2.msra.mxu0 0.0
    %1114 = vmatprep.subr.mxu0 0.0
    %1115 = vmatpush2.msra.mxu0 0.0
    %1116 = vmatprep.subr.mxu0 0.0
    %1117 = vmatpush2.msra.mxu0 0.0
    %1118 = vmatprep.subr.mxu0 0.0
    %1119 = vmatpush2.msra.mxu0 0.0
    %1120 = vmatprep.subr.mxu0 0.0
    %1121 = vmatpush2.msra.mxu0 0.0
    %1122 = vmatprep.subr.mxu0 0.0
    %1123 = vmatpush2.msra.mxu0 0.0
    %1124 = vmatprep.subr.mxu0 0.0
    %1125 = vmatpush2.msra.mxu0 0.0
    %1126 = vmatprep.subr.mxu0 0.0
    %1127 = vmatpush2.msra.mxu0 0.0
    %1128 = vmatprep.mubr.f32.mxu0 0.0
    %1129 = vmatmul.mubr.f32.gmra.mxu0 %v1062
    %v1130 = vpop.f32.mrf.mxu0
    %v1131 = vadd.f32 0.0, %v1130
    %v1132 = vpop.f32.mrf.mxu0
    %1133 = vdwg.mxu0
    %1134 = vrot.lane.b32.xlu0 %v178, 64
    %v1135 = vpop.permute.xlu0 %1134
    %v1138 = vsel %vm212, %v873, 0
    %1140 = vmatprep.subr.mxu0 0.0
    %1141 = vmatpush1.msra.mxu0 0.0
    %1142 = vmatprep.subr.mxu0 0.0
    %1143 = vmatpush1.msra.mxu0 0.0
    %1144 = vmatprep.subr.mxu0 0.0
    %1145 = vmatpush1.msra.mxu0 0.0
    %1146 = vmatprep.subr.mxu0 0.0
    %1147 = vmatpush1.msra.mxu0 0.0
    %1148 = vmatprep.subr.mxu0 0.0
    %1149 = vmatpush1.msra.mxu0 0.0
    %1150 = vmatprep.subr.mxu0 0.0
    %1151 = vmatpush1.msra.mxu0 0.0
    %1152 = vmatprep.subr.mxu0 0.0
    %1153 = vmatpush1.msra.mxu0 0.0
    %1154 = vmatprep.subr.mxu0 0.0
    %1155 = vmatpush1.msra.mxu0 0.0
    %1156 = vmatprep.subr.mxu0 0.0
    %1157 = vmatpush1.msra.mxu0 0.0
    %1158 = vmatprep.subr.mxu0 0.0
    %1159 = vmatpush1.msra.mxu0 0.0
    %1160 = vmatprep.subr.mxu0 0.0
    %1161 = vmatpush1.msra.mxu0 0.0
    %1162 = vmatprep.subr.mxu0 0.0
    %1163 = vmatpush1.msra.mxu0 0.0
    %1164 = vmatprep.subr.mxu0 0.0
    %1165 = vmatpush1.msra.mxu0 0.0
    %1166 = vmatprep.subr.mxu0 0.0
    %1167 = vmatpush1.msra.mxu0 0.0
    %1168 = vmatprep.subr.mxu0 0.0
    %1169 = vmatpush1.msra.mxu0 0.0
    %1170 = vmatprep.subr.mxu0 0.0
    %1171 = vmatpush1.msra.mxu0 %v1135
    %1172 = vmatprep.subr.mxu0 0.0
    %1173 = vmatpush2.msra.mxu0 0.0
    %1174 = vmatprep.subr.mxu0 0.0
    %1175 = vmatpush2.msra.mxu0 0.0
    %1176 = vmatprep.subr.mxu0 0.0
    %1177 = vmatpush2.msra.mxu0 0.0
    %1178 = vmatprep.subr.mxu0 0.0
    %1179 = vmatpush2.msra.mxu0 0.0
    %1180 = vmatprep.subr.mxu0 0.0
    %1181 = vmatpush2.msra.mxu0 0.0
    %1182 = vmatprep.subr.mxu0 0.0
    %1183 = vmatpush2.msra.mxu0 0.0
    %1184 = vmatprep.subr.mxu0 0.0
    %1185 = vmatpush2.msra.mxu0 0.0
    %1186 = vmatprep.subr.mxu0 0.0
    %1187 = vmatpush2.msra.mxu0 0.0
    %1188 = vmatprep.subr.mxu0 0.0
    %1189 = vmatpush2.msra.mxu0 0.0
    %1190 = vmatprep.subr.mxu0 0.0
    %1191 = vmatpush2.msra.mxu0 0.0
    %1192 = vmatprep.subr.mxu0 0.0
    %1193 = vmatpush2.msra.mxu0 0.0
    %1194 = vmatprep.subr.mxu0 0.0
    %1195 = vmatpush2.msra.mxu0 0.0
    %1196 = vmatprep.subr.mxu0 0.0
    %1197 = vmatpush2.msra.mxu0 0.0
    %1198 = vmatprep.subr.mxu0 0.0
    %1199 = vmatpush2.msra.mxu0 0.0
    %1200 = vmatprep.subr.mxu0 0.0
    %1201 = vmatpush2.msra.mxu0 0.0
    %1202 = vmatprep.subr.mxu0 0.0
    %1203 = vmatpush2.msra.mxu0 0.0
    %1204 = vmatprep.mubr.f32.mxu0 0.0
    %1205 = vmatmul.mubr.f32.gmra.mxu0 %v1138
    %v1206 = vpop.f32.mrf.mxu0
    %v1207 = vadd.f32 0.0, %v1206
    %v1208 = vpop.f32.mrf.mxu0
    %1209 = vdwg.mxu0
    %1210 = vrot.lane.b32.xlu0 %v183, 64
    %v1211 = vpop.permute.xlu0 %1210
    %v1214 = vsel %vm212, %v875, 0
    %1216 = vmatprep.subr.mxu0 0.0
    %1217 = vmatpush1.msra.mxu0 0.0
    %1218 = vmatprep.subr.mxu0 0.0
    %1219 = vmatpush1.msra.mxu0 0.0
    %1220 = vmatprep.subr.mxu0 0.0
    %1221 = vmatpush1.msra.mxu0 0.0
    %1222 = vmatprep.subr.mxu0 0.0
    %1223 = vmatpush1.msra.mxu0 0.0
    %1224 = vmatprep.subr.mxu0 0.0
    %1225 = vmatpush1.msra.mxu0 0.0
    %1226 = vmatprep.subr.mxu0 0.0
    %1227 = vmatpush1.msra.mxu0 0.0
    %1228 = vmatprep.subr.mxu0 0.0
    %1229 = vmatpush1.msra.mxu0 0.0
    %1230 = vmatprep.subr.mxu0 0.0
    %1231 = vmatpush1.msra.mxu0 0.0
    %1232 = vmatprep.subr.mxu0 0.0
    %1233 = vmatpush1.msra.mxu0 0.0
    %1234 = vmatprep.subr.mxu0 0.0
    %1235 = vmatpush1.msra.mxu0 0.0
    %1236 = vmatprep.subr.mxu0 0.0
    %1237 = vmatpush1.msra.mxu0 0.0
    %1238 = vmatprep.subr.mxu0 0.0
    %1239 = vmatpush1.msra.mxu0 0.0
    %1240 = vmatprep.subr.mxu0 0.0
    %1241 = vmatpush1.msra.mxu0 0.0
    %1242 = vmatprep.subr.mxu0 0.0
    %1243 = vmatpush1.msra.mxu0 0.0
    %1244 = vmatprep.subr.mxu0 0.0
    %1245 = vmatpush1.msra.mxu0 0.0
    %1246 = vmatprep.subr.mxu0 0.0
    %1247 = vmatpush1.msra.mxu0 %v1211
    %1248 = vmatprep.subr.mxu0 0.0
    %1249 = vmatpush2.msra.mxu0 0.0
    %1250 = vmatprep.subr.mxu0 0.0
    %1251 = vmatpush2.msra.mxu0 0.0
    %1252 = vmatprep.subr.mxu0 0.0
    %1253 = vmatpush2.msra.mxu0 0.0
    %1254 = vmatprep.subr.mxu0 0.0
    %1255 = vmatpush2.msra.mxu0 0.0
    %1256 = vmatprep.subr.mxu0 0.0
    %1257 = vmatpush2.msra.mxu0 0.0
    %1258 = vmatprep.subr.mxu0 0.0
    %1259 = vmatpush2.msra.mxu0 0.0
    %1260 = vmatprep.subr.mxu0 0.0
    %1261 = vmatpush2.msra.mxu0 0.0
    %1262 = vmatprep.subr.mxu0 0.0
    %1263 = vmatpush2.msra.mxu0 0.0
    %1264 = vmatprep.subr.mxu0 0.0
    %1265 = vmatpush2.msra.mxu0 0.0
    %1266 = vmatprep.subr.mxu0 0.0
    %1267 = vmatpush2.msra.mxu0 0.0
    %1268 = vmatprep.subr.mxu0 0.0
    %1269 = vmatpush2.msra.mxu0 0.0
    %1270 = vmatprep.subr.mxu0 0.0
    %1271 = vmatpush2.msra.mxu0 0.0
    %1272 = vmatprep.subr.mxu0 0.0
    %1273 = vmatpush2.msra.mxu0 0.0
    %1274 = vmatprep.subr.mxu0 0.0
    %1275 = vmatpush2.msra.mxu0 0.0
    %1276 = vmatprep.subr.mxu0 0.0
    %1277 = vmatpush2.msra.mxu0 0.0
    %1278 = vmatprep.subr.mxu0 0.0
    %1279 = vmatpush2.msra.mxu0 0.0
    %1280 = vmatprep.mubr.f32.mxu0 0.0
    %1281 = vmatmul.mubr.f32.gmra.mxu0 %v1214
    %v1282 = vpop.f32.mrf.mxu0
    %v1283 = vadd.f32 0.0, %v1282
    %v1284 = vpop.f32.mrf.mxu0
    %1285 = vdwg.mxu0
    %1286 = vrot.lane.b32.xlu0 %v188, 64
    %v1287 = vpop.permute.xlu0 %1286
    %v1290 = vsel %vm212, %v877, 0
    %1292 = vmatprep.subr.mxu0 0.0
    %1293 = vmatpush1.msra.mxu0 0.0
    %1294 = vmatprep.subr.mxu0 0.0
    %1295 = vmatpush1.msra.mxu0 0.0
    %1296 = vmatprep.subr.mxu0 0.0
    %1297 = vmatpush1.msra.mxu0 0.0
    %1298 = vmatprep.subr.mxu0 0.0
    %1299 = vmatpush1.msra.mxu0 0.0
    %1300 = vmatprep.subr.mxu0 0.0
    %1301 = vmatpush1.msra.mxu0 0.0
    %1302 = vmatprep.subr.mxu0 0.0
    %1303 = vmatpush1.msra.mxu0 0.0
    %1304 = vmatprep.subr.mxu0 0.0
    %1305 = vmatpush1.msra.mxu0 0.0
    %1306 = vmatprep.subr.mxu0 0.0
    %1307 = vmatpush1.msra.mxu0 0.0
    %1308 = vmatprep.subr.mxu0 0.0
    %1309 = vmatpush1.msra.mxu0 0.0
    %1310 = vmatprep.subr.mxu0 0.0
    %1311 = vmatpush1.msra.mxu0 0.0
    %1312 = vmatprep.subr.mxu0 0.0
    %1313 = vmatpush1.msra.mxu0 0.0
    %1314 = vmatprep.subr.mxu0 0.0
    %1315 = vmatpush1.msra.mxu0 0.0
    %1316 = vmatprep.subr.mxu0 0.0
    %1317 = vmatpush1.msra.mxu0 0.0
    %1318 = vmatprep.subr.mxu0 0.0
    %1319 = vmatpush1.msra.mxu0 0.0
    %1320 = vmatprep.subr.mxu0 0.0
    %1321 = vmatpush1.msra.mxu0 0.0
    %1322 = vmatprep.subr.mxu0 0.0
    %1323 = vmatpush1.msra.mxu0 %v1287
    %1324 = vmatprep.subr.mxu0 0.0
    %1325 = vmatpush2.msra.mxu0 0.0
    %1326 = vmatprep.subr.mxu0 0.0
    %1327 = vmatpush2.msra.mxu0 0.0
    %1328 = vmatprep.subr.mxu0 0.0
    %1329 = vmatpush2.msra.mxu0 0.0
    %1330 = vmatprep.subr.mxu0 0.0
    %1331 = vmatpush2.msra.mxu0 0.0
    %1332 = vmatprep.subr.mxu0 0.0
    %1333 = vmatpush2.msra.mxu0 0.0
    %1334 = vmatprep.subr.mxu0 0.0
    %1335 = vmatpush2.msra.mxu0 0.0
    %1336 = vmatprep.subr.mxu0 0.0
    %1337 = vmatpush2.msra.mxu0 0.0
    %1338 = vmatprep.subr.mxu0 0.0
    %1339 = vmatpush2.msra.mxu0 0.0
    %1340 = vmatprep.subr.mxu0 0.0
    %1341 = vmatpush2.msra.mxu0 0.0
    %1342 = vmatprep.subr.mxu0 0.0
    %1343 = vmatpush2.msra.mxu0 0.0
    %1344 = vmatprep.subr.mxu0 0.0
    %1345 = vmatpush2.msra.mxu0 0.0
    %1346 = vmatprep.subr.mxu0 0.0
    %1347 = vmatpush2.msra.mxu0 0.0
    %1348 = vmatprep.subr.mxu0 0.0
    %1349 = vmatpush2.msra.mxu0 0.0
    %1350 = vmatprep.subr.mxu0 0.0
    %1351 = vmatpush2.msra.mxu0 0.0
    %1352 = vmatprep.subr.mxu0 0.0
    %1353 = vmatpush2.msra.mxu0 0.0
    %1354 = vmatprep.subr.mxu0 0.0
    %1355 = vmatpush2.msra.mxu0 0.0
    %1356 = vmatprep.mubr.f32.mxu0 0.0
    %1357 = vmatmul.mubr.f32.gmra.mxu0 %v1290
    %v1358 = vpop.f32.mrf.mxu0
    %v1359 = vadd.f32 0.0, %v1358
    %v1360 = vpop.f32.mrf.mxu0
    %1361 = vdwg.mxu0
    %1362 = vrot.lane.b32.xlu0 %v193, 64
    %v1363 = vpop.permute.xlu0 %1362
    %v1366 = vsel %vm212, %v879, 0
    %1368 = vmatprep.subr.mxu0 0.0
    %1369 = vmatpush1.msra.mxu0 0.0
    %1370 = vmatprep.subr.mxu0 0.0
    %1371 = vmatpush1.msra.mxu0 0.0
    %1372 = vmatprep.subr.mxu0 0.0
    %1373 = vmatpush1.msra.mxu0 0.0
    %1374 = vmatprep.subr.mxu0 0.0
    %1375 = vmatpush1.msra.mxu0 0.0
    %1376 = vmatprep.subr.mxu0 0.0
    %1377 = vmatpush1.msra.mxu0 0.0
    %1378 = vmatprep.subr.mxu0 0.0
    %1379 = vmatpush1.msra.mxu0 0.0
    %1380 = vmatprep.subr.mxu0 0.0
    %1381 = vmatpush1.msra.mxu0 0.0
    %1382 = vmatprep.subr.mxu0 0.0
    %1383 = vmatpush1.msra.mxu0 0.0
    %1384 = vmatprep.subr.mxu0 0.0
    %1385 = vmatpush1.msra.mxu0 0.0
    %1386 = vmatprep.subr.mxu0 0.0
    %1387 = vmatpush1.msra.mxu0 0.0
    %1388 = vmatprep.subr.mxu0 0.0
    %1389 = vmatpush1.msra.mxu0 0.0
    %1390 = vmatprep.subr.mxu0 0.0
    %1391 = vmatpush1.msra.mxu0 0.0
    %1392 = vmatprep.subr.mxu0 0.0
    %1393 = vmatpush1.msra.mxu0 0.0
    %1394 = vmatprep.subr.mxu0 0.0
    %1395 = vmatpush1.msra.mxu0 0.0
    %1396 = vmatprep.subr.mxu0 0.0
    %1397 = vmatpush1.msra.mxu0 0.0
    %1398 = vmatprep.subr.mxu0 0.0
    %1399 = vmatpush1.msra.mxu0 %v1363
    %1400 = vmatprep.subr.mxu0 0.0
    %1401 = vmatpush2.msra.mxu0 0.0
    %1402 = vmatprep.subr.mxu0 0.0
    %1403 = vmatpush2.msra.mxu0 0.0
    %1404 = vmatprep.subr.mxu0 0.0
    %1405 = vmatpush2.msra.mxu0 0.0
    %1406 = vmatprep.subr.mxu0 0.0
    %1407 = vmatpush2.msra.mxu0 0.0
    %1408 = vmatprep.subr.mxu0 0.0
    %1409 = vmatpush2.msra.mxu0 0.0
    %1410 = vmatprep.subr.mxu0 0.0
    %1411 = vmatpush2.msra.mxu0 0.0
    %1412 = vmatprep.subr.mxu0 0.0
    %1413 = vmatpush2.msra.mxu0 0.0
    %1414 = vmatprep.subr.mxu0 0.0
    %1415 = vmatpush2.msra.mxu0 0.0
    %1416 = vmatprep.subr.mxu0 0.0
    %1417 = vmatpush2.msra.mxu0 0.0
    %1418 = vmatprep.subr.mxu0 0.0
    %1419 = vmatpush2.msra.mxu0 0.0
    %1420 = vmatprep.subr.mxu0 0.0
    %1421 = vmatpush2.msra.mxu0 0.0
    %1422 = vmatprep.subr.mxu0 0.0
    %1423 = vmatpush2.msra.mxu0 0.0
    %1424 = vmatprep.subr.mxu0 0.0
    %1425 = vmatpush2.msra.mxu0 0.0
    %1426 = vmatprep.subr.mxu0 0.0
    %1427 = vmatpush2.msra.mxu0 0.0
    %1428 = vmatprep.subr.mxu0 0.0
    %1429 = vmatpush2.msra.mxu0 0.0
    %1430 = vmatprep.subr.mxu0 0.0
    %1431 = vmatpush2.msra.mxu0 0.0
    %1432 = vmatprep.mubr.f32.mxu0 0.0
    %1433 = vmatmul.mubr.f32.gmra.mxu0 %v1366
    %v1434 = vpop.f32.mrf.mxu0
    %v1435 = vadd.f32 0.0, %v1434
    %v1436 = vpop.f32.mrf.mxu0
    %1437 = vdwg.mxu0
    %1438 = vrot.lane.b32.xlu0 %v198, 64
    %v1439 = vpop.permute.xlu0 %1438
    %v1442 = vsel %vm212, %v881, 0
    %1444 = vmatprep.subr.mxu0 0.0
    %1445 = vmatpush1.msra.mxu0 0.0
    %1446 = vmatprep.subr.mxu0 0.0
    %1447 = vmatpush1.msra.mxu0 0.0
    %1448 = vmatprep.subr.mxu0 0.0
    %1449 = vmatpush1.msra.mxu0 0.0
    %1450 = vmatprep.subr.mxu0 0.0
    %1451 = vmatpush1.msra.mxu0 0.0
    %1452 = vmatprep.subr.mxu0 0.0
    %1453 = vmatpush1.msra.mxu0 0.0
    %1454 = vmatprep.subr.mxu0 0.0
    %1455 = vmatpush1.msra.mxu0 0.0
    %1456 = vmatprep.subr.mxu0 0.0
    %1457 = vmatpush1.msra.mxu0 0.0
    %1458 = vmatprep.subr.mxu0 0.0
    %1459 = vmatpush1.msra.mxu0 0.0
    %1460 = vmatprep.subr.mxu0 0.0
    %1461 = vmatpush1.msra.mxu0 0.0
    %1462 = vmatprep.subr.mxu0 0.0
    %1463 = vmatpush1.msra.mxu0 0.0
    %1464 = vmatprep.subr.mxu0 0.0
    %1465 = vmatpush1.msra.mxu0 0.0
    %1466 = vmatprep.subr.mxu0 0.0
    %1467 = vmatpush1.msra.mxu0 0.0
    %1468 = vmatprep.subr.mxu0 0.0
    %1469 = vmatpush1.msra.mxu0 0.0
    %1470 = vmatprep.subr.mxu0 0.0
    %1471 = vmatpush1.msra.mxu0 0.0
    %1472 = vmatprep.subr.mxu0 0.0
    %1473 = vmatpush1.msra.mxu0 0.0
    %1474 = vmatprep.subr.mxu0 0.0
    %1475 = vmatpush1.msra.mxu0 %v1439
    %1476 = vmatprep.subr.mxu0 0.0
    %1477 = vmatpush2.msra.mxu0 0.0
    %1478 = vmatprep.subr.mxu0 0.0
    %1479 = vmatpush2.msra.mxu0 0.0
    %1480 = vmatprep.subr.mxu0 0.0
    %1481 = vmatpush2.msra.mxu0 0.0
    %1482 = vmatprep.subr.mxu0 0.0
    %1483 = vmatpush2.msra.mxu0 0.0
    %1484 = vmatprep.subr.mxu0 0.0
    %1485 = vmatpush2.msra.mxu0 0.0
    %1486 = vmatprep.subr.mxu0 0.0
    %1487 = vmatpush2.msra.mxu0 0.0
    %1488 = vmatprep.subr.mxu0 0.0
    %1489 = vmatpush2.msra.mxu0 0.0
    %1490 = vmatprep.subr.mxu0 0.0
    %1491 = vmatpush2.msra.mxu0 0.0
    %1492 = vmatprep.subr.mxu0 0.0
    %1493 = vmatpush2.msra.mxu0 0.0
    %1494 = vmatprep.subr.mxu0 0.0
    %1495 = vmatpush2.msra.mxu0 0.0
    %1496 = vmatprep.subr.mxu0 0.0
    %1497 = vmatpush2.msra.mxu0 0.0
    %1498 = vmatprep.subr.mxu0 0.0
    %1499 = vmatpush2.msra.mxu0 0.0
    %1500 = vmatprep.subr.mxu0 0.0
    %1501 = vmatpush2.msra.mxu0 0.0
    %1502 = vmatprep.subr.mxu0 0.0
    %1503 = vmatpush2.msra.mxu0 0.0
    %1504 = vmatprep.subr.mxu0 0.0
    %1505 = vmatpush2.msra.mxu0 0.0
    %1506 = vmatprep.subr.mxu0 0.0
    %1507 = vmatpush2.msra.mxu0 0.0
    %1508 = vmatprep.mubr.f32.mxu0 0.0
    %1509 = vmatmul.mubr.f32.gmra.mxu0 %v1442
    %v1510 = vpop.f32.mrf.mxu0
    %v1511 = vadd.f32 0.0, %v1510
    %v1512 = vpop.f32.mrf.mxu0
    %1513 = vdwg.mxu0
    %v1514 = vrcp.pop %v884
    %v1515 = vmul.f32 %v979, %v1514
    %v1516 = vrcp.pop %v887
    %v1517 = vmul.f32 %v1055, %v1516
    %v1518 = vrcp.pop %v890
    %v1519 = vmul.f32 %v1131, %v1518
    %v1520 = vrcp.pop %v893
    %v1521 = vmul.f32 %v1207, %v1520
    %v1522 = vrcp.pop %v896
    %v1523 = vmul.f32 %v1283, %v1522
    %v1524 = vrcp.pop %v899
    %v1525 = vmul.f32 %v1359, %v1524
    %v1526 = vrcp.pop %v902
    %v1527 = vmul.f32 %v1435, %v1526
    %v1528 = vrcp.pop %v905
    %v1529 = vmul.f32 %v1511, %v1528
    %v1530 = vld [vmem:[#allocation7] sm:$0xff]
    %1531 = vrot.lane.b32.xlu0 %v201, 120
    %v1532 = vpop.permute.xlu0 %1531
    %1533 = vrot.lane.b32.xlu0 %v163, 88
    %v1534 = vpop.permute.xlu0 %1533
    %v1535 = vsel %vm212, %v1532, 0
    %v1537 = vsel %vm212, %v1534, 0
    %1539 = vmatprep.subr.mxu0 0.0
    %1540 = vmatpush1.xpose.msra.mxu0 0.0
    %1541 = vmatprep.subr.mxu0 0.0
    %1542 = vmatpush1.xpose.msra.mxu0 0.0
    %1543 = vmatprep.subr.mxu0 0.0
    %1544 = vmatpush1.xpose.msra.mxu0 0.0
    %1545 = vmatprep.subr.mxu0 0.0
    %1546 = vmatpush1.xpose.msra.mxu0 0.0
    %1547 = vmatprep.subr.mxu0 0.0
    %1548 = vmatpush1.xpose.msra.mxu0 0.0
    %1549 = vmatprep.subr.mxu0 0.0
    %1550 = vmatpush1.xpose.msra.mxu0 0.0
    %1551 = vmatprep.subr.mxu0 0.0
    %1552 = vmatpush1.xpose.msra.mxu0 0.0
    %1553 = vmatprep.subr.mxu0 0.0
    %1554 = vmatpush1.xpose.msra.mxu0 0.0
    %1555 = vmatprep.subr.mxu0 0.0
    %1556 = vmatpush1.xpose.msra.mxu0 0.0
    %1557 = vmatprep.subr.mxu0 0.0
    %1558 = vmatpush1.xpose.msra.mxu0 0.0
    %1559 = vmatprep.subr.mxu0 0.0
    %1560 = vmatpush1.xpose.msra.mxu0 0.0
    %1561 = vmatprep.subr.mxu0 0.0
    %1562 = vmatpush1.xpose.msra.mxu0 0.0
    %1563 = vmatprep.subr.mxu0 0.0
    %1564 = vmatpush1.xpose.msra.mxu0 0.0
    %1565 = vmatprep.subr.mxu0 0.0
    %1566 = vmatpush1.xpose.msra.mxu0 0.0
    %1567 = vmatprep.subr.mxu0 0.0
    %1568 = vmatpush1.xpose.msra.mxu0 0.0
    %1569 = vmatprep.subr.mxu0 0.0
    %1570 = vmatpush1.xpose.msra.mxu0 %v1537
    %1571 = vmatprep.subr.mxu0 0.0
    %1572 = vmatpush2.xpose.msra.mxu0 0.0
    %1573 = vmatprep.subr.mxu0 0.0
    %1574 = vmatpush2.xpose.msra.mxu0 0.0
    %1575 = vmatprep.subr.mxu0 0.0
    %1576 = vmatpush2.xpose.msra.mxu0 0.0
    %1577 = vmatprep.subr.mxu0 0.0
    %1578 = vmatpush2.xpose.msra.mxu0 0.0
    %1579 = vmatprep.subr.mxu0 0.0
    %1580 = vmatpush2.xpose.msra.mxu0 0.0
    %1581 = vmatprep.subr.mxu0 0.0
    %1582 = vmatpush2.xpose.msra.mxu0 0.0
    %1583 = vmatprep.subr.mxu0 0.0
    %1584 = vmatpush2.xpose.msra.mxu0 0.0
    %1585 = vmatprep.subr.mxu0 0.0
    %1586 = vmatpush2.xpose.msra.mxu0 0.0
    %1587 = vmatprep.subr.mxu0 0.0
    %1588 = vmatpush2.xpose.msra.mxu0 0.0
    %1589 = vmatprep.subr.mxu0 0.0
    %1590 = vmatpush2.xpose.msra.mxu0 0.0
    %1591 = vmatprep.subr.mxu0 0.0
    %1592 = vmatpush2.xpose.msra.mxu0 0.0
    %1593 = vmatprep.subr.mxu0 0.0
    %1594 = vmatpush2.xpose.msra.mxu0 0.0
    %1595 = vmatprep.subr.mxu0 0.0
    %1596 = vmatpush2.xpose.msra.mxu0 0.0
    %1597 = vmatprep.subr.mxu0 0.0
    %1598 = vmatpush2.xpose.msra.mxu0 0.0
    %1599 = vmatprep.subr.mxu0 0.0
    %1600 = vmatpush2.xpose.msra.mxu0 0.0
    %1601 = vmatprep.subr.mxu0 0.0
    %1602 = vmatpush2.xpose.msra.mxu0 0.0
    %1603 = vmatprep.mubr.f32.mxu0 0.0
    %1604 = vmatmul.mubr.f32.gmra.mxu0 %v1535
    %v1605 = vpop.f32.mrf.mxu0
    %v1606 = vadd.f32 0.0, %v1605
    %v1607 = vpop.f32.mrf.mxu0
    %1608 = vdwg.mxu0
    %1609 = vrot.lane.b32.xlu0 %v202, 120
    %v1610 = vpop.permute.xlu0 %1609
    %1611 = vrot.lane.b32.xlu0 %v168, 88
    %v1612 = vpop.permute.xlu0 %1611
    %v1613 = vsel %vm212, %v1610, 0
    %v1615 = vsel %vm212, %v1612, 0
    %1617 = vmatprep.subr.mxu0 0.0
    %1618 = vmatpush1.xpose.msra.mxu0 0.0
    %1619 = vmatprep.subr.mxu0 0.0
    %1620 = vmatpush1.xpose.msra.mxu0 0.0
    %1621 = vmatprep.subr.mxu0 0.0
    %1622 = vmatpush1.xpose.msra.mxu0 0.0
    %1623 = vmatprep.subr.mxu0 0.0
    %1624 = vmatpush1.xpose.msra.mxu0 0.0
    %1625 = vmatprep.subr.mxu0 0.0
    %1626 = vmatpush1.xpose.msra.mxu0 0.0
    %1627 = vmatprep.subr.mxu0 0.0
    %1628 = vmatpush1.xpose.msra.mxu0 0.0
    %1629 = vmatprep.subr.mxu0 0.0
    %1630 = vmatpush1.xpose.msra.mxu0 0.0
    %1631 = vmatprep.subr.mxu0 0.0
    %1632 = vmatpush1.xpose.msra.mxu0 0.0
    %1633 = vmatprep.subr.mxu0 0.0
    %1634 = vmatpush1.xpose.msra.mxu0 0.0
    %1635 = vmatprep.subr.mxu0 0.0
    %1636 = vmatpush1.xpose.msra.mxu0 0.0
    %1637 = vmatprep.subr.mxu0 0.0
    %1638 = vmatpush1.xpose.msra.mxu0 0.0
    %1639 = vmatprep.subr.mxu0 0.0
    %1640 = vmatpush1.xpose.msra.mxu0 0.0
    %1641 = vmatprep.subr.mxu0 0.0
    %1642 = vmatpush1.xpose.msra.mxu0 0.0
    %1643 = vmatprep.subr.mxu0 0.0
    %1644 = vmatpush1.xpose.msra.mxu0 0.0
    %1645 = vmatprep.subr.mxu0 0.0
    %1646 = vmatpush1.xpose.msra.mxu0 0.0
    %1647 = vmatprep.subr.mxu0 0.0
    %1648 = vmatpush1.xpose.msra.mxu0 %v1615
    %1649 = vmatprep.subr.mxu0 0.0
    %1650 = vmatpush2.xpose.msra.mxu0 0.0
    %1651 = vmatprep.subr.mxu0 0.0
    %1652 = vmatpush2.xpose.msra.mxu0 0.0
    %1653 = vmatprep.subr.mxu0 0.0
    %1654 = vmatpush2.xpose.msra.mxu0 0.0
    %1655 = vmatprep.subr.mxu0 0.0
    %1656 = vmatpush2.xpose.msra.mxu0 0.0
    %1657 = vmatprep.subr.mxu0 0.0
    %1658 = vmatpush2.xpose.msra.mxu0 0.0
    %1659 = vmatprep.subr.mxu0 0.0
    %1660 = vmatpush2.xpose.msra.mxu0 0.0
    %1661 = vmatprep.subr.mxu0 0.0
    %1662 = vmatpush2.xpose.msra.mxu0 0.0
    %1663 = vmatprep.subr.mxu0 0.0
    %1664 = vmatpush2.xpose.msra.mxu0 0.0
    %1665 = vmatprep.subr.mxu0 0.0
    %1666 = vmatpush2.xpose.msra.mxu0 0.0
    %1667 = vmatprep.subr.mxu0 0.0
    %1668 = vmatpush2.xpose.msra.mxu0 0.0
    %1669 = vmatprep.subr.mxu0 0.0
    %1670 = vmatpush2.xpose.msra.mxu0 0.0
    %1671 = vmatprep.subr.mxu0 0.0
    %1672 = vmatpush2.xpose.msra.mxu0 0.0
    %1673 = vmatprep.subr.mxu0 0.0
    %1674 = vmatpush2.xpose.msra.mxu0 0.0
    %1675 = vmatprep.subr.mxu0 0.0
    %1676 = vmatpush2.xpose.msra.mxu0 0.0
    %1677 = vmatprep.subr.mxu0 0.0
    %1678 = vmatpush2.xpose.msra.mxu0 0.0
    %1679 = vmatprep.subr.mxu0 0.0
    %1680 = vmatpush2.xpose.msra.mxu0 0.0
    %1681 = vmatprep.mubr.f32.mxu0 0.0
    %1682 = vmatmul.mubr.f32.gmra.mxu0 %v1613
    %v1683 = vpop.f32.mrf.mxu0
    %v1684 = vadd.f32 0.0, %v1683
    %v1685 = vpop.f32.mrf.mxu0
    %1686 = vdwg.mxu0
    %1687 = vrot.lane.b32.xlu0 %v203, 120
    %v1688 = vpop.permute.xlu0 %1687
    %1689 = vrot.lane.b32.xlu0 %v173, 88
    %v1690 = vpop.permute.xlu0 %1689
    %v1691 = vsel %vm212, %v1688, 0
    %v1693 = vsel %vm212, %v1690, 0
    %1695 = vmatprep.subr.mxu0 0.0
    %1696 = vmatpush1.xpose.msra.mxu0 0.0
    %1697 = vmatprep.subr.mxu0 0.0
    %1698 = vmatpush1.xpose.msra.mxu0 0.0
    %1699 = vmatprep.subr.mxu0 0.0
    %1700 = vmatpush1.xpose.msra.mxu0 0.0
    %1701 = vmatprep.subr.mxu0 0.0
    %1702 = vmatpush1.xpose.msra.mxu0 0.0
    %1703 = vmatprep.subr.mxu0 0.0
    %1704 = vmatpush1.xpose.msra.mxu0 0.0
    %1705 = vmatprep.subr.mxu0 0.0
    %1706 = vmatpush1.xpose.msra.mxu0 0.0
    %1707 = vmatprep.subr.mxu0 0.0
    %1708 = vmatpush1.xpose.msra.mxu0 0.0
    %1709 = vmatprep.subr.mxu0 0.0
    %1710 = vmatpush1.xpose.msra.mxu0 0.0
    %1711 = vmatprep.subr.mxu0 0.0
    %1712 = vmatpush1.xpose.msra.mxu0 0.0
    %1713 = vmatprep.subr.mxu0 0.0
    %1714 = vmatpush1.xpose.msra.mxu0 0.0
    %1715 = vmatprep.subr.mxu0 0.0
    %1716 = vmatpush1.xpose.msra.mxu0 0.0
    %1717 = vmatprep.subr.mxu0 0.0
    %1718 = vmatpush1.xpose.msra.mxu0 0.0
    %1719 = vmatprep.subr.mxu0 0.0
    %1720 = vmatpush1.xpose.msra.mxu0 0.0
    %1721 = vmatprep.subr.mxu0 0.0
    %1722 = vmatpush1.xpose.msra.mxu0 0.0
    %1723 = vmatprep.subr.mxu0 0.0
    %1724 = vmatpush1.xpose.msra.mxu0 0.0
    %1725 = vmatprep.subr.mxu0 0.0
    %1726 = vmatpush1.xpose.msra.mxu0 %v1693
    %1727 = vmatprep.subr.mxu0 0.0
    %1728 = vmatpush2.xpose.msra.mxu0 0.0
    %1729 = vmatprep.subr.mxu0 0.0
    %1730 = vmatpush2.xpose.msra.mxu0 0.0
    %1731 = vmatprep.subr.mxu0 0.0
    %1732 = vmatpush2.xpose.msra.mxu0 0.0
    %1733 = vmatprep.subr.mxu0 0.0
    %1734 = vmatpush2.xpose.msra.mxu0 0.0
    %1735 = vmatprep.subr.mxu0 0.0
    %1736 = vmatpush2.xpose.msra.mxu0 0.0
    %1737 = vmatprep.subr.mxu0 0.0
    %1738 = vmatpush2.xpose.msra.mxu0 0.0
    %1739 = vmatprep.subr.mxu0 0.0
    %1740 = vmatpush2.xpose.msra.mxu0 0.0
    %1741 = vmatprep.subr.mxu0 0.0
    %1742 = vmatpush2.xpose.msra.mxu0 0.0
    %1743 = vmatprep.subr.mxu0 0.0
    %1744 = vmatpush2.xpose.msra.mxu0 0.0
    %1745 = vmatprep.subr.mxu0 0.0
    %1746 = vmatpush2.xpose.msra.mxu0 0.0
    %1747 = vmatprep.subr.mxu0 0.0
    %1748 = vmatpush2.xpose.msra.mxu0 0.0
    %1749 = vmatprep.subr.mxu0 0.0
    %1750 = vmatpush2.xpose.msra.mxu0 0.0
    %1751 = vmatprep.subr.mxu0 0.0
    %1752 = vmatpush2.xpose.msra.mxu0 0.0
    %1753 = vmatprep.subr.mxu0 0.0
    %1754 = vmatpush2.xpose.msra.mxu0 0.0
    %1755 = vmatprep.subr.mxu0 0.0
    %1756 = vmatpush2.xpose.msra.mxu0 0.0
    %1757 = vmatprep.subr.mxu0 0.0
    %1758 = vmatpush2.xpose.msra.mxu0 0.0
    %1759 = vmatprep.mubr.f32.mxu0 0.0
    %1760 = vmatmul.mubr.f32.gmra.mxu0 %v1691
    %v1761 = vpop.f32.mrf.mxu0
    %v1762 = vadd.f32 0.0, %v1761
    %v1763 = vpop.f32.mrf.mxu0
    %1764 = vdwg.mxu0
    %1765 = vrot.lane.b32.xlu0 %v204, 120
    %v1766 = vpop.permute.xlu0 %1765
    %1767 = vrot.lane.b32.xlu0 %v178, 88
    %v1768 = vpop.permute.xlu0 %1767
    %v1769 = vsel %vm212, %v1766, 0
    %v1771 = vsel %vm212, %v1768, 0
    %1773 = vmatprep.subr.mxu0 0.0
    %1774 = vmatpush1.xpose.msra.mxu0 0.0
    %1775 = vmatprep.subr.mxu0 0.0
    %1776 = vmatpush1.xpose.msra.mxu0 0.0
    %1777 = vmatprep.subr.mxu0 0.0
    %1778 = vmatpush1.xpose.msra.mxu0 0.0
    %1779 = vmatprep.subr.mxu0 0.0
    %1780 = vmatpush1.xpose.msra.mxu0 0.0
    %1781 = vmatprep.subr.mxu0 0.0
    %1782 = vmatpush1.xpose.msra.mxu0 0.0
    %1783 = vmatprep.subr.mxu0 0.0
    %1784 = vmatpush1.xpose.msra.mxu0 0.0
    %1785 = vmatprep.subr.mxu0 0.0
    %1786 = vmatpush1.xpose.msra.mxu0 0.0
    %1787 = vmatprep.subr.mxu0 0.0
    %1788 = vmatpush1.xpose.msra.mxu0 0.0
    %1789 = vmatprep.subr.mxu0 0.0
    %1790 = vmatpush1.xpose.msra.mxu0 0.0
    %1791 = vmatprep.subr.mxu0 0.0
    %1792 = vmatpush1.xpose.msra.mxu0 0.0
    %1793 = vmatprep.subr.mxu0 0.0
    %1794 = vmatpush1.xpose.msra.mxu0 0.0
    %1795 = vmatprep.subr.mxu0 0.0
    %1796 = vmatpush1.xpose.msra.mxu0 0.0
    %1797 = vmatprep.subr.mxu0 0.0
    %1798 = vmatpush1.xpose.msra.mxu0 0.0
    %1799 = vmatprep.subr.mxu0 0.0
    %1800 = vmatpush1.xpose.msra.mxu0 0.0
    %1801 = vmatprep.subr.mxu0 0.0
    %1802 = vmatpush1.xpose.msra.mxu0 0.0
    %1803 = vmatprep.subr.mxu0 0.0
    %1804 = vmatpush1.xpose.msra.mxu0 %v1771
    %1805 = vmatprep.subr.mxu0 0.0
    %1806 = vmatpush2.xpose.msra.mxu0 0.0
    %1807 = vmatprep.subr.mxu0 0.0
    %1808 = vmatpush2.xpose.msra.mxu0 0.0
    %1809 = vmatprep.subr.mxu0 0.0
    %1810 = vmatpush2.xpose.msra.mxu0 0.0
    %1811 = vmatprep.subr.mxu0 0.0
    %1812 = vmatpush2.xpose.msra.mxu0 0.0
    %1813 = vmatprep.subr.mxu0 0.0
    %1814 = vmatpush2.xpose.msra.mxu0 0.0
    %1815 = vmatprep.subr.mxu0 0.0
    %1816 = vmatpush2.xpose.msra.mxu0 0.0
    %1817 = vmatprep.subr.mxu0 0.0
    %1818 = vmatpush2.xpose.msra.mxu0 0.0
    %1819 = vmatprep.subr.mxu0 0.0
    %1820 = vmatpush2.xpose.msra.mxu0 0.0
    %1821 = vmatprep.subr.mxu0 0.0
    %1822 = vmatpush2.xpose.msra.mxu0 0.0
    %1823 = vmatprep.subr.mxu0 0.0
    %1824 = vmatpush2.xpose.msra.mxu0 0.0
    %1825 = vmatprep.subr.mxu0 0.0
    %1826 = vmatpush2.xpose.msra.mxu0 0.0
    %1827 = vmatprep.subr.mxu0 0.0
    %1828 = vmatpush2.xpose.msra.mxu0 0.0
    %1829 = vmatprep.subr.mxu0 0.0
    %1830 = vmatpush2.xpose.msra.mxu0 0.0
    %1831 = vmatprep.subr.mxu0 0.0
    %1832 = vmatpush2.xpose.msra.mxu0 0.0
    %1833 = vmatprep.subr.mxu0 0.0
    %1834 = vmatpush2.xpose.msra.mxu0 0.0
    %1835 = vmatprep.subr.mxu0 0.0
    %1836 = vmatpush2.xpose.msra.mxu0 0.0
    %1837 = vmatprep.mubr.f32.mxu0 0.0
    %1838 = vmatmul.mubr.f32.gmra.mxu0 %v1769
    %v1839 = vpop.f32.mrf.mxu0
    %v1840 = vadd.f32 0.0, %v1839
    %v1841 = vpop.f32.mrf.mxu0
    %1842 = vdwg.mxu0
    %1843 = vrot.lane.b32.xlu0 %v205, 120
    %v1844 = vpop.permute.xlu0 %1843
    %1845 = vrot.lane.b32.xlu0 %v183, 88
    %v1846 = vpop.permute.xlu0 %1845
    %v1847 = vsel %vm212, %v1844, 0
    %v1849 = vsel %vm212, %v1846, 0
    %1851 = vmatprep.subr.mxu0 0.0
    %1852 = vmatpush1.xpose.msra.mxu0 0.0
    %1853 = vmatprep.subr.mxu0 0.0
    %1854 = vmatpush1.xpose.msra.mxu0 0.0
    %1855 = vmatprep.subr.mxu0 0.0
    %1856 = vmatpush1.xpose.msra.mxu0 0.0
    %1857 = vmatprep.subr.mxu0 0.0
    %1858 = vmatpush1.xpose.msra.mxu0 0.0
    %1859 = vmatprep.subr.mxu0 0.0
    %1860 = vmatpush1.xpose.msra.mxu0 0.0
    %1861 = vmatprep.subr.mxu0 0.0
    %1862 = vmatpush1.xpose.msra.mxu0 0.0
    %1863 = vmatprep.subr.mxu0 0.0
    %1864 = vmatpush1.xpose.msra.mxu0 0.0
    %1865 = vmatprep.subr.mxu0 0.0
    %1866 = vmatpush1.xpose.msra.mxu0 0.0
    %1867 = vmatprep.subr.mxu0 0.0
    %1868 = vmatpush1.xpose.msra.mxu0 0.0
    %1869 = vmatprep.subr.mxu0 0.0
    %1870 = vmatpush1.xpose.msra.mxu0 0.0
    %1871 = vmatprep.subr.mxu0 0.0
    %1872 = vmatpush1.xpose.msra.mxu0 0.0
    %1873 = vmatprep.subr.mxu0 0.0
    %1874 = vmatpush1.xpose.msra.mxu0 0.0
    %1875 = vmatprep.subr.mxu0 0.0
    %1876 = vmatpush1.xpose.msra.mxu0 0.0
    %1877 = vmatprep.subr.mxu0 0.0
    %1878 = vmatpush1.xpose.msra.mxu0 0.0
    %1879 = vmatprep.subr.mxu0 0.0
    %1880 = vmatpush1.xpose.msra.mxu0 0.0
    %1881 = vmatprep.subr.mxu0 0.0
    %1882 = vmatpush1.xpose.msra.mxu0 %v1849
    %1883 = vmatprep.subr.mxu0 0.0
    %1884 = vmatpush2.xpose.msra.mxu0 0.0
    %1885 = vmatprep.subr.mxu0 0.0
    %1886 = vmatpush2.xpose.msra.mxu0 0.0
    %1887 = vmatprep.subr.mxu0 0.0
    %1888 = vmatpush2.xpose.msra.mxu0 0.0
    %1889 = vmatprep.subr.mxu0 0.0
    %1890 = vmatpush2.xpose.msra.mxu0 0.0
    %1891 = vmatprep.subr.mxu0 0.0
    %1892 = vmatpush2.xpose.msra.mxu0 0.0
    %1893 = vmatprep.subr.mxu0 0.0
    %1894 = vmatpush2.xpose.msra.mxu0 0.0
    %1895 = vmatprep.subr.mxu0 0.0
    %1896 = vmatpush2.xpose.msra.mxu0 0.0
    %1897 = vmatprep.subr.mxu0 0.0
    %1898 = vmatpush2.xpose.msra.mxu0 0.0
    %1899 = vmatprep.subr.mxu0 0.0
    %1900 = vmatpush2.xpose.msra.mxu0 0.0
    %1901 = vmatprep.subr.mxu0 0.0
    %1902 = vmatpush2.xpose.msra.mxu0 0.0
    %1903 = vmatprep.subr.mxu0 0.0
    %1904 = vmatpush2.xpose.msra.mxu0 0.0
    %1905 = vmatprep.subr.mxu0 0.0
    %1906 = vmatpush2.xpose.msra.mxu0 0.0
    %1907 = vmatprep.subr.mxu0 0.0
    %1908 = vmatpush2.xpose.msra.mxu0 0.0
    %1909 = vmatprep.subr.mxu0 0.0
    %1910 = vmatpush2.xpose.msra.mxu0 0.0
    %1911 = vmatprep.subr.mxu0 0.0
    %1912 = vmatpush2.xpose.msra.mxu0 0.0
    %1913 = vmatprep.subr.mxu0 0.0
    %1914 = vmatpush2.xpose.msra.mxu0 0.0
    %1915 = vmatprep.mubr.f32.mxu0 0.0
    %1916 = vmatmul.mubr.f32.gmra.mxu0 %v1847
    %v1917 = vpop.f32.mrf.mxu0
    %v1918 = vadd.f32 0.0, %v1917
    %v1919 = vpop.f32.mrf.mxu0
    %1920 = vdwg.mxu0
    %1921 = vrot.lane.b32.xlu0 %v206, 120
    %v1922 = vpop.permute.xlu0 %1921
    %1923 = vrot.lane.b32.xlu0 %v188, 88
    %v1924 = vpop.permute.xlu0 %1923
    %v1925 = vsel %vm212, %v1922, 0
    %v1927 = vsel %vm212, %v1924, 0
    %1929 = vmatprep.subr.mxu0 0.0
    %1930 = vmatpush1.xpose.msra.mxu0 0.0
    %1931 = vmatprep.subr.mxu0 0.0
    %1932 = vmatpush1.xpose.msra.mxu0 0.0
    %1933 = vmatprep.subr.mxu0 0.0
    %1934 = vmatpush1.xpose.msra.mxu0 0.0
    %1935 = vmatprep.subr.mxu0 0.0
    %1936 = vmatpush1.xpose.msra.mxu0 0.0
    %1937 = vmatprep.subr.mxu0 0.0
    %1938 = vmatpush1.xpose.msra.mxu0 0.0
    %1939 = vmatprep.subr.mxu0 0.0
    %1940 = vmatpush1.xpose.msra.mxu0 0.0
    %1941 = vmatprep.subr.mxu0 0.0
    %1942 = vmatpush1.xpose.msra.mxu0 0.0
    %1943 = vmatprep.subr.mxu0 0.0
    %1944 = vmatpush1.xpose.msra.mxu0 0.0
    %1945 = vmatprep.subr.mxu0 0.0
    %1946 = vmatpush1.xpose.msra.mxu0 0.0
    %1947 = vmatprep.subr.mxu0 0.0
    %1948 = vmatpush1.xpose.msra.mxu0 0.0
    %1949 = vmatprep.subr.mxu0 0.0
    %1950 = vmatpush1.xpose.msra.mxu0 0.0
    %1951 = vmatprep.subr.mxu0 0.0
    %1952 = vmatpush1.xpose.msra.mxu0 0.0
    %1953 = vmatprep.subr.mxu0 0.0
    %1954 = vmatpush1.xpose.msra.mxu0 0.0
    %1955 = vmatprep.subr.mxu0 0.0
    %1956 = vmatpush1.xpose.msra.mxu0 0.0
    %1957 = vmatprep.subr.mxu0 0.0
    %1958 = vmatpush1.xpose.msra.mxu0 0.0
    %1959 = vmatprep.subr.mxu0 0.0
    %1960 = vmatpush1.xpose.msra.mxu0 %v1927
    %1961 = vmatprep.subr.mxu0 0.0
    %1962 = vmatpush2.xpose.msra.mxu0 0.0
    %1963 = vmatprep.subr.mxu0 0.0
    %1964 = vmatpush2.xpose.msra.mxu0 0.0
    %1965 = vmatprep.subr.mxu0 0.0
    %1966 = vmatpush2.xpose.msra.mxu0 0.0
    %1967 = vmatprep.subr.mxu0 0.0
    %1968 = vmatpush2.xpose.msra.mxu0 0.0
    %1969 = vmatprep.subr.mxu0 0.0
    %1970 = vmatpush2.xpose.msra.mxu0 0.0
    %1971 = vmatprep.subr.mxu0 0.0
    %1972 = vmatpush2.xpose.msra.mxu0 0.0
    %1973 = vmatprep.subr.mxu0 0.0
    %1974 = vmatpush2.xpose.msra.mxu0 0.0
    %1975 = vmatprep.subr.mxu0 0.0
    %1976 = vmatpush2.xpose.msra.mxu0 0.0
    %1977 = vmatprep.subr.mxu0 0.0
    %1978 = vmatpush2.xpose.msra.mxu0 0.0
    %1979 = vmatprep.subr.mxu0 0.0
    %1980 = vmatpush2.xpose.msra.mxu0 0.0
    %1981 = vmatprep.subr.mxu0 0.0
    %1982 = vmatpush2.xpose.msra.mxu0 0.0
    %1983 = vmatprep.subr.mxu0 0.0
    %1984 = vmatpush2.xpose.msra.mxu0 0.0
    %1985 = vmatprep.subr.mxu0 0.0
    %1986 = vmatpush2.xpose.msra.mxu0 0.0
    %1987 = vmatprep.subr.mxu0 0.0
    %1988 = vmatpush2.xpose.msra.mxu0 0.0
    %1989 = vmatprep.subr.mxu0 0.0
    %1990 = vmatpush2.xpose.msra.mxu0 0.0
    %1991 = vmatprep.subr.mxu0 0.0
    %1992 = vmatpush2.xpose.msra.mxu0 0.0
    %1993 = vmatprep.mubr.f32.mxu0 0.0
    %1994 = vmatmul.mubr.f32.gmra.mxu0 %v1925
    %v1995 = vpop.f32.mrf.mxu0
    %v1996 = vadd.f32 0.0, %v1995
    %v1997 = vpop.f32.mrf.mxu0
    %1998 = vdwg.mxu0
    %1999 = vrot.lane.b32.xlu0 %v207, 120
    %v2000 = vpop.permute.xlu0 %1999
    %2001 = vrot.lane.b32.xlu0 %v193, 88
    %v2002 = vpop.permute.xlu0 %2001
    %v2003 = vsel %vm212, %v2000, 0
    %v2005 = vsel %vm212, %v2002, 0
    %2007 = vmatprep.subr.mxu0 0.0
    %2008 = vmatpush1.xpose.msra.mxu0 0.0
    %2009 = vmatprep.subr.mxu0 0.0
    %2010 = vmatpush1.xpose.msra.mxu0 0.0
    %2011 = vmatprep.subr.mxu0 0.0
    %2012 = vmatpush1.xpose.msra.mxu0 0.0
    %2013 = vmatprep.subr.mxu0 0.0
    %2014 = vmatpush1.xpose.msra.mxu0 0.0
    %2015 = vmatprep.subr.mxu0 0.0
    %2016 = vmatpush1.xpose.msra.mxu0 0.0
    %2017 = vmatprep.subr.mxu0 0.0
    %2018 = vmatpush1.xpose.msra.mxu0 0.0
    %2019 = vmatprep.subr.mxu0 0.0
    %2020 = vmatpush1.xpose.msra.mxu0 0.0
    %2021 = vmatprep.subr.mxu0 0.0
    %2022 = vmatpush1.xpose.msra.mxu0 0.0
    %2023 = vmatprep.subr.mxu0 0.0
    %2024 = vmatpush1.xpose.msra.mxu0 0.0
    %2025 = vmatprep.subr.mxu0 0.0
    %2026 = vmatpush1.xpose.msra.mxu0 0.0
    %2027 = vmatprep.subr.mxu0 0.0
    %2028 = vmatpush1.xpose.msra.mxu0 0.0
    %2029 = vmatprep.subr.mxu0 0.0
    %2030 = vmatpush1.xpose.msra.mxu0 0.0
    %2031 = vmatprep.subr.mxu0 0.0
    %2032 = vmatpush1.xpose.msra.mxu0 0.0
    %2033 = vmatprep.subr.mxu0 0.0
    %2034 = vmatpush1.xpose.msra.mxu0 0.0
    %2035 = vmatprep.subr.mxu0 0.0
    %2036 = vmatpush1.xpose.msra.mxu0 0.0
    %2037 = vmatprep.subr.mxu0 0.0
    %2038 = vmatpush1.xpose.msra.mxu0 %v2005
    %2039 = vmatprep.subr.mxu0 0.0
    %2040 = vmatpush2.xpose.msra.mxu0 0.0
    %2041 = vmatprep.subr.mxu0 0.0
    %2042 = vmatpush2.xpose.msra.mxu0 0.0
    %2043 = vmatprep.subr.mxu0 0.0
    %2044 = vmatpush2.xpose.msra.mxu0 0.0
    %2045 = vmatprep.subr.mxu0 0.0
    %2046 = vmatpush2.xpose.msra.mxu0 0.0
    %2047 = vmatprep.subr.mxu0 0.0
    %2048 = vmatpush2.xpose.msra.mxu0 0.0
    %2049 = vmatprep.subr.mxu0 0.0
    %2050 = vmatpush2.xpose.msra.mxu0 0.0
    %2051 = vmatprep.subr.mxu0 0.0
    %2052 = vmatpush2.xpose.msra.mxu0 0.0
    %2053 = vmatprep.subr.mxu0 0.0
    %2054 = vmatpush2.xpose.msra.mxu0 0.0
    %2055 = vmatprep.subr.mxu0 0.0
    %2056 = vmatpush2.xpose.msra.mxu0 0.0
    %2057 = vmatprep.subr.mxu0 0.0
    %2058 = vmatpush2.xpose.msra.mxu0 0.0
    %2059 = vmatprep.subr.mxu0 0.0
    %2060 = vmatpush2.xpose.msra.mxu0 0.0
    %2061 = vmatprep.subr.mxu0 0.0
    %2062 = vmatpush2.xpose.msra.mxu0 0.0
    %2063 = vmatprep.subr.mxu0 0.0
    %2064 = vmatpush2.xpose.msra.mxu0 0.0
    %2065 = vmatprep.subr.mxu0 0.0
    %2066 = vmatpush2.xpose.msra.mxu0 0.0
    %2067 = vmatprep.subr.mxu0 0.0
    %2068 = vmatpush2.xpose.msra.mxu0 0.0
    %2069 = vmatprep.subr.mxu0 0.0
    %2070 = vmatpush2.xpose.msra.mxu0 0.0
    %2071 = vmatprep.mubr.f32.mxu0 0.0
    %2072 = vmatmul.mubr.f32.gmra.mxu0 %v2003
    %v2073 = vpop.f32.mrf.mxu0
    %v2074 = vadd.f32 0.0, %v2073
    %v2075 = vpop.f32.mrf.mxu0
    %2076 = vdwg.mxu0
    %2077 = vrot.lane.b32.xlu0 %v208, 120
    %v2078 = vpop.permute.xlu0 %2077
    %2079 = vrot.lane.b32.xlu0 %v198, 88
    %v2080 = vpop.permute.xlu0 %2079
    %v2081 = vsel %vm212, %v2078, 0
    %v2083 = vsel %vm212, %v2080, 0
    %2085 = vmatprep.subr.mxu0 0.0
    %2086 = vmatpush1.xpose.msra.mxu0 0.0
    %2087 = vmatprep.subr.mxu0 0.0
    %2088 = vmatpush1.xpose.msra.mxu0 0.0
    %2089 = vmatprep.subr.mxu0 0.0
    %2090 = vmatpush1.xpose.msra.mxu0 0.0
    %2091 = vmatprep.subr.mxu0 0.0
    %2092 = vmatpush1.xpose.msra.mxu0 0.0
    %2093 = vmatprep.subr.mxu0 0.0
    %2094 = vmatpush1.xpose.msra.mxu0 0.0
    %2095 = vmatprep.subr.mxu0 0.0
    %2096 = vmatpush1.xpose.msra.mxu0 0.0
    %2097 = vmatprep.subr.mxu0 0.0
    %2098 = vmatpush1.xpose.msra.mxu0 0.0
    %2099 = vmatprep.subr.mxu0 0.0
    %2100 = vmatpush1.xpose.msra.mxu0 0.0
    %2101 = vmatprep.subr.mxu0 0.0
    %2102 = vmatpush1.xpose.msra.mxu0 0.0
    %2103 = vmatprep.subr.mxu0 0.0
    %2104 = vmatpush1.xpose.msra.mxu0 0.0
    %2105 = vmatprep.subr.mxu0 0.0
    %2106 = vmatpush1.xpose.msra.mxu0 0.0
    %2107 = vmatprep.subr.mxu0 0.0
    %2108 = vmatpush1.xpose.msra.mxu0 0.0
    %2109 = vmatprep.subr.mxu0 0.0
    %2110 = vmatpush1.xpose.msra.mxu0 0.0
    %2111 = vmatprep.subr.mxu0 0.0
    %2112 = vmatpush1.xpose.msra.mxu0 0.0
    %2113 = vmatprep.subr.mxu0 0.0
    %2114 = vmatpush1.xpose.msra.mxu0 0.0
    %2115 = vmatprep.subr.mxu0 0.0
    %2116 = vmatpush1.xpose.msra.mxu0 %v2083
    %2117 = vmatprep.subr.mxu0 0.0
    %2118 = vmatpush2.xpose.msra.mxu0 0.0
    %2119 = vmatprep.subr.mxu0 0.0
    %2120 = vmatpush2.xpose.msra.mxu0 0.0
    %2121 = vmatprep.subr.mxu0 0.0
    %2122 = vmatpush2.xpose.msra.mxu0 0.0
    %2123 = vmatprep.subr.mxu0 0.0
    %2124 = vmatpush2.xpose.msra.mxu0 0.0
    %2125 = vmatprep.subr.mxu0 0.0
    %2126 = vmatpush2.xpose.msra.mxu0 0.0
    %2127 = vmatprep.subr.mxu0 0.0
    %2128 = vmatpush2.xpose.msra.mxu0 0.0
    %2129 = vmatprep.subr.mxu0 0.0
    %2130 = vmatpush2.xpose.msra.mxu0 0.0
    %2131 = vmatprep.subr.mxu0 0.0
    %2132 = vmatpush2.xpose.msra.mxu0 0.0
    %2133 = vmatprep.subr.mxu0 0.0
    %2134 = vmatpush2.xpose.msra.mxu0 0.0
    %2135 = vmatprep.subr.mxu0 0.0
    %2136 = vmatpush2.xpose.msra.mxu0 0.0
    %2137 = vmatprep.subr.mxu0 0.0
    %2138 = vmatpush2.xpose.msra.mxu0 0.0
    %2139 = vmatprep.subr.mxu0 0.0
    %2140 = vmatpush2.xpose.msra.mxu0 0.0
    %2141 = vmatprep.subr.mxu0 0.0
    %2142 = vmatpush2.xpose.msra.mxu0 0.0
    %2143 = vmatprep.subr.mxu0 0.0
    %2144 = vmatpush2.xpose.msra.mxu0 0.0
    %2145 = vmatprep.subr.mxu0 0.0
    %2146 = vmatpush2.xpose.msra.mxu0 0.0
    %2147 = vmatprep.subr.mxu0 0.0
    %2148 = vmatpush2.xpose.msra.mxu0 0.0
    %2149 = vmatprep.mubr.f32.mxu0 0.0
    %2150 = vmatmul.mubr.f32.gmra.mxu0 %v2081
    %v2151 = vpop.f32.mrf.mxu0
    %v2152 = vadd.f32 0.0, %v2151
    %v2153 = vpop.f32.mrf.mxu0
    %2154 = vdwg.mxu0
    %v2155 = vsel %vm212, %v1606, -inf
    %2156 = vmax.xlane.f32.xlu0 %v2155
    %v2157 = vpop.xlane.xlu0 %2156
    %v2158 = vsel %vm212, %v1684, -inf
    %2159 = vmax.xlane.f32.xlu0 %v2158
    %v2160 = vpop.xlane.xlu0 %2159
    %v2161 = vsel %vm212, %v1762, -inf
    %2162 = vmax.xlane.f32.xlu0 %v2161
    %v2163 = vpop.xlane.xlu0 %2162
    %v2164 = vsel %vm212, %v1840, -inf
    %2165 = vmax.xlane.f32.xlu0 %v2164
    %v2166 = vpop.xlane.xlu0 %2165
    %v2167 = vsel %vm212, %v1918, -inf
    %2168 = vmax.xlane.f32.xlu0 %v2167
    %v2169 = vpop.xlane.xlu0 %2168
    %v2170 = vsel %vm212, %v1996, -inf
    %2171 = vmax.xlane.f32.xlu0 %v2170
    %v2172 = vpop.xlane.xlu0 %2171
    %v2173 = vsel %vm212, %v2074, -inf
    %2174 = vmax.xlane.f32.xlu0 %v2173
    %v2175 = vpop.xlane.xlu0 %2174
    %v2176 = vsel %vm212, %v2152, -inf
    %2177 = vmax.xlane.f32.xlu0 %v2176
    %v2178 = vpop.xlane.xlu0 %2177
    %v2179 = vsub.f32 %v1606, %v2157
    %v2180 = vsub.f32 %v1684, %v2160
    %v2181 = vsub.f32 %v1762, %v2163
    %v2182 = vsub.f32 %v1840, %v2166
    %v2183 = vsub.f32 %v1918, %v2169
    %v2184 = vsub.f32 %v1996, %v2172
    %v2185 = vsub.f32 %v2074, %v2175
    %v2186 = vsub.f32 %v2152, %v2178
    %v2187 = vmul.f32 %v2179, 1.442695
    %v2188 = vpow.pop %v2187
    %v2189 = vmul.f32 %v2180, 1.442695
    %v2190 = vpow.pop %v2189
    %v2191 = vmul.f32 %v2181, 1.442695
    %v2192 = vpow.pop %v2191
    %v2193 = vmul.f32 %v2182, 1.442695
    %v2194 = vpow.pop %v2193
    %v2195 = vmul.f32 %v2183, 1.442695
    %v2196 = vpow.pop %v2195
    %v2197 = vmul.f32 %v2184, 1.442695
    %v2198 = vpow.pop %v2197
    %v2199 = vmul.f32 %v2185, 1.442695
    %v2200 = vpow.pop %v2199
    %v2201 = vmul.f32 %v2186, 1.442695
    %v2202 = vpow.pop %v2201
    %v2203 = vsel %vm212, %v2188, 0.0
    %2204 = vadd.xlane.f32.xlu0 %v2203
    %v2205 = vpop.xlane.xlu0 %2204
    %v2206 = vsel %vm212, %v2190, 0.0
    %2207 = vadd.xlane.f32.xlu0 %v2206
    %v2208 = vpop.xlane.xlu0 %2207
    %v2209 = vsel %vm212, %v2192, 0.0
    %2210 = vadd.xlane.f32.xlu0 %v2209
    %v2211 = vpop.xlane.xlu0 %2210
    %v2212 = vsel %vm212, %v2194, 0.0
    %2213 = vadd.xlane.f32.xlu0 %v2212
    %v2214 = vpop.xlane.xlu0 %2213
    %v2215 = vsel %vm212, %v2196, 0.0
    %2216 = vadd.xlane.f32.xlu0 %v2215
    %v2217 = vpop.xlane.xlu0 %2216
    %v2218 = vsel %vm212, %v2198, 0.0
    %2219 = vadd.xlane.f32.xlu0 %v2218
    %v2220 = vpop.xlane.xlu0 %2219
    %v2221 = vsel %vm212, %v2200, 0.0
    %2222 = vadd.xlane.f32.xlu0 %v2221
    %v2223 = vpop.xlane.xlu0 %2222
    %v2224 = vsel %vm212, %v2202, 0.0
    %2225 = vadd.xlane.f32.xlu0 %v2224
    %v2226 = vpop.xlane.xlu0 %2225
    %2227 = vrot.lane.b32.xlu0 %v163, 56
    %v2228 = vpop.permute.xlu0 %2227
    %v2231 = vsel %vm212, %v2188, 0
    %2233 = vmatprep.subr.mxu0 0.0
    %2234 = vmatpush1.msra.mxu0 0.0
    %2235 = vmatprep.subr.mxu0 0.0
    %2236 = vmatpush1.msra.mxu0 0.0
    %2237 = vmatprep.subr.mxu0 0.0
    %2238 = vmatpush1.msra.mxu0 0.0
    %2239 = vmatprep.subr.mxu0 0.0
    %2240 = vmatpush1.msra.mxu0 0.0
    %2241 = vmatprep.subr.mxu0 0.0
    %2242 = vmatpush1.msra.mxu0 0.0
    %2243 = vmatprep.subr.mxu0 0.0
    %2244 = vmatpush1.msra.mxu0 0.0
    %2245 = vmatprep.subr.mxu0 0.0
    %2246 = vmatpush1.msra.mxu0 0.0
    %2247 = vmatprep.subr.mxu0 0.0
    %2248 = vmatpush1.msra.mxu0 0.0
    %2249 = vmatprep.subr.mxu0 0.0
    %2250 = vmatpush1.msra.mxu0 0.0
    %2251 = vmatprep.subr.mxu0 0.0
    %2252 = vmatpush1.msra.mxu0 0.0
    %2253 = vmatprep.subr.mxu0 0.0
    %2254 = vmatpush1.msra.mxu0 0.0
    %2255 = vmatprep.subr.mxu0 0.0
    %2256 = vmatpush1.msra.mxu0 0.0
    %2257 = vmatprep.subr.mxu0 0.0
    %2258 = vmatpush1.msra.mxu0 0.0
    %2259 = vmatprep.subr.mxu0 0.0
    %2260 = vmatpush1.msra.mxu0 0.0
    %2261 = vmatprep.subr.mxu0 0.0
    %2262 = vmatpush1.msra.mxu0 0.0
    %2263 = vmatprep.subr.mxu0 0.0
    %2264 = vmatpush1.msra.mxu0 %v2228
    %2265 = vmatprep.subr.mxu0 0.0
    %2266 = vmatpush2.msra.mxu0 0.0
    %2267 = vmatprep.subr.mxu0 0.0
    %2268 = vmatpush2.msra.mxu0 0.0
    %2269 = vmatprep.subr.mxu0 0.0
    %2270 = vmatpush2.msra.mxu0 0.0
    %2271 = vmatprep.subr.mxu0 0.0
    %2272 = vmatpush2.msra.mxu0 0.0
    %2273 = vmatprep.subr.mxu0 0.0
    %2274 = vmatpush2.msra.mxu0 0.0
    %2275 = vmatprep.subr.mxu0 0.0
    %2276 = vmatpush2.msra.mxu0 0.0
    %2277 = vmatprep.subr.mxu0 0.0
    %2278 = vmatpush2.msra.mxu0 0.0
    %2279 = vmatprep.subr.mxu0 0.0
    %2280 = vmatpush2.msra.mxu0 0.0
    %2281 = vmatprep.subr.mxu0 0.0
    %2282 = vmatpush2.msra.mxu0 0.0
    %2283 = vmatprep.subr.mxu0 0.0
    %2284 = vmatpush2.msra.mxu0 0.0
    %2285 = vmatprep.subr.mxu0 0.0
    %2286 = vmatpush2.msra.mxu0 0.0
    %2287 = vmatprep.subr.mxu0 0.0
    %2288 = vmatpush2.msra.mxu0 0.0
    %2289 = vmatprep.subr.mxu0 0.0
    %2290 = vmatpush2.msra.mxu0 0.0
    %2291 = vmatprep.subr.mxu0 0.0
    %2292 = vmatpush2.msra.mxu0 0.0
    %2293 = vmatprep.subr.mxu0 0.0
    %2294 = vmatpush2.msra.mxu0 0.0
    %2295 = vmatprep.subr.mxu0 0.0
    %2296 = vmatpush2.msra.mxu0 0.0
    %2297 = vmatprep.mubr.f32.mxu0 0.0
    %2298 = vmatmul.mubr.f32.gmra.mxu0 %v2231
    %v2299 = vpop.f32.mrf.mxu0
    %v2300 = vadd.f32 0.0, %v2299
    %v2301 = vpop.f32.mrf.mxu0
    %2302 = vdwg.mxu0
    %2303 = vrot.lane.b32.xlu0 %v168, 56
    %v2304 = vpop.permute.xlu0 %2303
    %v2307 = vsel %vm212, %v2190, 0
    %2309 = vmatprep.subr.mxu0 0.0
    %2310 = vmatpush1.msra.mxu0 0.0
    %2311 = vmatprep.subr.mxu0 0.0
    %2312 = vmatpush1.msra.mxu0 0.0
    %2313 = vmatprep.subr.mxu0 0.0
    %2314 = vmatpush1.msra.mxu0 0.0
    %2315 = vmatprep.subr.mxu0 0.0
    %2316 = vmatpush1.msra.mxu0 0.0
    %2317 = vmatprep.subr.mxu0 0.0
    %2318 = vmatpush1.msra.mxu0 0.0
    %2319 = vmatprep.subr.mxu0 0.0
    %2320 = vmatpush1.msra.mxu0 0.0
    %2321 = vmatprep.subr.mxu0 0.0
    %2322 = vmatpush1.msra.mxu0 0.0
    %2323 = vmatprep.subr.mxu0 0.0
    %2324 = vmatpush1.msra.mxu0 0.0
    %2325 = vmatprep.subr.mxu0 0.0
    %2326 = vmatpush1.msra.mxu0 0.0
    %2327 = vmatprep.subr.mxu0 0.0
    %2328 = vmatpush1.msra.mxu0 0.0
    %2329 = vmatprep.subr.mxu0 0.0
    %2330 = vmatpush1.msra.mxu0 0.0
    %2331 = vmatprep.subr.mxu0 0.0
    %2332 = vmatpush1.msra.mxu0 0.0
    %2333 = vmatprep.subr.mxu0 0.0
    %2334 = vmatpush1.msra.mxu0 0.0
    %2335 = vmatprep.subr.mxu0 0.0
    %2336 = vmatpush1.msra.mxu0 0.0
    %2337 = vmatprep.subr.mxu0 0.0
    %2338 = vmatpush1.msra.mxu0 0.0
    %2339 = vmatprep.subr.mxu0 0.0
    %2340 = vmatpush1.msra.mxu0 %v2304
    %2341 = vmatprep.subr.mxu0 0.0
    %2342 = vmatpush2.msra.mxu0 0.0
    %2343 = vmatprep.subr.mxu0 0.0
    %2344 = vmatpush2.msra.mxu0 0.0
    %2345 = vmatprep.subr.mxu0 0.0
    %2346 = vmatpush2.msra.mxu0 0.0
    %2347 = vmatprep.subr.mxu0 0.0
    %2348 = vmatpush2.msra.mxu0 0.0
    %2349 = vmatprep.subr.mxu0 0.0
    %2350 = vmatpush2.msra.mxu0 0.0
    %2351 = vmatprep.subr.mxu0 0.0
    %2352 = vmatpush2.msra.mxu0 0.0
    %2353 = vmatprep.subr.mxu0 0.0
    %2354 = vmatpush2.msra.mxu0 0.0
    %2355 = vmatprep.subr.mxu0 0.0
    %2356 = vmatpush2.msra.mxu0 0.0
    %2357 = vmatprep.subr.mxu0 0.0
    %2358 = vmatpush2.msra.mxu0 0.0
    %2359 = vmatprep.subr.mxu0 0.0
    %2360 = vmatpush2.msra.mxu0 0.0
    %2361 = vmatprep.subr.mxu0 0.0
    %2362 = vmatpush2.msra.mxu0 0.0
    %2363 = vmatprep.subr.mxu0 0.0
    %2364 = vmatpush2.msra.mxu0 0.0
    %2365 = vmatprep.subr.mxu0 0.0
    %2366 = vmatpush2.msra.mxu0 0.0
    %2367 = vmatprep.subr.mxu0 0.0
    %2368 = vmatpush2.msra.mxu0 0.0
    %2369 = vmatprep.subr.mxu0 0.0
    %2370 = vmatpush2.msra.mxu0 0.0
    %2371 = vmatprep.subr.mxu0 0.0
    %2372 = vmatpush2.msra.mxu0 0.0
    %2373 = vmatprep.mubr.f32.mxu0 0.0
    %2374 = vmatmul.mubr.f32.gmra.mxu0 %v2307
    %v2375 = vpop.f32.mrf.mxu0
    %v2376 = vadd.f32 0.0, %v2375
    %v2377 = vpop.f32.mrf.mxu0
    %2378 = vdwg.mxu0
    %2379 = vrot.lane.b32.xlu0 %v173, 56
    %v2380 = vpop.permute.xlu0 %2379
    %v2383 = vsel %vm212, %v2192, 0
    %2385 = vmatprep.subr.mxu0 0.0
    %2386 = vmatpush1.msra.mxu0 0.0
    %2387 = vmatprep.subr.mxu0 0.0
    %2388 = vmatpush1.msra.mxu0 0.0
    %2389 = vmatprep.subr.mxu0 0.0
    %2390 = vmatpush1.msra.mxu0 0.0
    %2391 = vmatprep.subr.mxu0 0.0
    %2392 = vmatpush1.msra.mxu0 0.0
    %2393 = vmatprep.subr.mxu0 0.0
    %2394 = vmatpush1.msra.mxu0 0.0
    %2395 = vmatprep.subr.mxu0 0.0
    %2396 = vmatpush1.msra.mxu0 0.0
    %2397 = vmatprep.subr.mxu0 0.0
    %2398 = vmatpush1.msra.mxu0 0.0
    %2399 = vmatprep.subr.mxu0 0.0
    %2400 = vmatpush1.msra.mxu0 0.0
    %2401 = vmatprep.subr.mxu0 0.0
    %2402 = vmatpush1.msra.mxu0 0.0
    %2403 = vmatprep.subr.mxu0 0.0
    %2404 = vmatpush1.msra.mxu0 0.0
    %2405 = vmatprep.subr.mxu0 0.0
    %2406 = vmatpush1.msra.mxu0 0.0
    %2407 = vmatprep.subr.mxu0 0.0
    %2408 = vmatpush1.msra.mxu0 0.0
    %2409 = vmatprep.subr.mxu0 0.0
    %2410 = vmatpush1.msra.mxu0 0.0
    %2411 = vmatprep.subr.mxu0 0.0
    %2412 = vmatpush1.msra.mxu0 0.0
    %2413 = vmatprep.subr.mxu0 0.0
    %2414 = vmatpush1.msra.mxu0 0.0
    %2415 = vmatprep.subr.mxu0 0.0
    %2416 = vmatpush1.msra.mxu0 %v2380
    %2417 = vmatprep.subr.mxu0 0.0
    %2418 = vmatpush2.msra.mxu0 0.0
    %2419 = vmatprep.subr.mxu0 0.0
    %2420 = vmatpush2.msra.mxu0 0.0
    %2421 = vmatprep.subr.mxu0 0.0
    %2422 = vmatpush2.msra.mxu0 0.0
    %2423 = vmatprep.subr.mxu0 0.0
    %2424 = vmatpush2.msra.mxu0 0.0
    %2425 = vmatprep.subr.mxu0 0.0
    %2426 = vmatpush2.msra.mxu0 0.0
    %2427 = vmatprep.subr.mxu0 0.0
    %2428 = vmatpush2.msra.mxu0 0.0
    %2429 = vmatprep.subr.mxu0 0.0
    %2430 = vmatpush2.msra.mxu0 0.0
    %2431 = vmatprep.subr.mxu0 0.0
    %2432 = vmatpush2.msra.mxu0 0.0
    %2433 = vmatprep.subr.mxu0 0.0
    %2434 = vmatpush2.msra.mxu0 0.0
    %2435 = vmatprep.subr.mxu0 0.0
    %2436 = vmatpush2.msra.mxu0 0.0
    %2437 = vmatprep.subr.mxu0 0.0
    %2438 = vmatpush2.msra.mxu0 0.0
    %2439 = vmatprep.subr.mxu0 0.0
    %2440 = vmatpush2.msra.mxu0 0.0
    %2441 = vmatprep.subr.mxu0 0.0
    %2442 = vmatpush2.msra.mxu0 0.0
    %2443 = vmatprep.subr.mxu0 0.0
    %2444 = vmatpush2.msra.mxu0 0.0
    %2445 = vmatprep.subr.mxu0 0.0
    %2446 = vmatpush2.msra.mxu0 0.0
    %2447 = vmatprep.subr.mxu0 0.0
    %2448 = vmatpush2.msra.mxu0 0.0
    %2449 = vmatprep.mubr.f32.mxu0 0.0
    %2450 = vmatmul.mubr.f32.gmra.mxu0 %v2383
    %v2451 = vpop.f32.mrf.mxu0
    %v2452 = vadd.f32 0.0, %v2451
    %v2453 = vpop.f32.mrf.mxu0
    %2454 = vdwg.mxu0
    %2455 = vrot.lane.b32.xlu0 %v178, 56
    %v2456 = vpop.permute.xlu0 %2455
    %v2459 = vsel %vm212, %v2194, 0
    %2461 = vmatprep.subr.mxu0 0.0
    %2462 = vmatpush1.msra.mxu0 0.0
    %2463 = vmatprep.subr.mxu0 0.0
    %2464 = vmatpush1.msra.mxu0 0.0
    %2465 = vmatprep.subr.mxu0 0.0
    %2466 = vmatpush1.msra.mxu0 0.0
    %2467 = vmatprep.subr.mxu0 0.0
    %2468 = vmatpush1.msra.mxu0 0.0
    %2469 = vmatprep.subr.mxu0 0.0
    %2470 = vmatpush1.msra.mxu0 0.0
    %2471 = vmatprep.subr.mxu0 0.0
    %2472 = vmatpush1.msra.mxu0 0.0
    %2473 = vmatprep.subr.mxu0 0.0
    %2474 = vmatpush1.msra.mxu0 0.0
    %2475 = vmatprep.subr.mxu0 0.0
    %2476 = vmatpush1.msra.mxu0 0.0
    %2477 = vmatprep.subr.mxu0 0.0
    %2478 = vmatpush1.msra.mxu0 0.0
    %2479 = vmatprep.subr.mxu0 0.0
    %2480 = vmatpush1.msra.mxu0 0.0
    %2481 = vmatprep.subr.mxu0 0.0
    %2482 = vmatpush1.msra.mxu0 0.0
    %2483 = vmatprep.subr.mxu0 0.0
    %2484 = vmatpush1.msra.mxu0 0.0
    %2485 = vmatprep.subr.mxu0 0.0
    %2486 = vmatpush1.msra.mxu0 0.0
    %2487 = vmatprep.subr.mxu0 0.0
    %2488 = vmatpush1.msra.mxu0 0.0
    %2489 = vmatprep.subr.mxu0 0.0
    %2490 = vmatpush1.msra.mxu0 0.0
    %2491 = vmatprep.subr.mxu0 0.0
    %2492 = vmatpush1.msra.mxu0 %v2456
    %2493 = vmatprep.subr.mxu0 0.0
    %2494 = vmatpush2.msra.mxu0 0.0
    %2495 = vmatprep.subr.mxu0 0.0
    %2496 = vmatpush2.msra.mxu0 0.0
    %2497 = vmatprep.subr.mxu0 0.0
    %2498 = vmatpush2.msra.mxu0 0.0
    %2499 = vmatprep.subr.mxu0 0.0
    %2500 = vmatpush2.msra.mxu0 0.0
    %2501 = vmatprep.subr.mxu0 0.0
    %2502 = vmatpush2.msra.mxu0 0.0
    %2503 = vmatprep.subr.mxu0 0.0
    %2504 = vmatpush2.msra.mxu0 0.0
    %2505 = vmatprep.subr.mxu0 0.0
    %2506 = vmatpush2.msra.mxu0 0.0
    %2507 = vmatprep.subr.mxu0 0.0
    %2508 = vmatpush2.msra.mxu0 0.0
    %2509 = vmatprep.subr.mxu0 0.0
    %2510 = vmatpush2.msra.mxu0 0.0
    %2511 = vmatprep.subr.mxu0 0.0
    %2512 = vmatpush2.msra.mxu0 0.0
    %2513 = vmatprep.subr.mxu0 0.0
    %2514 = vmatpush2.msra.mxu0 0.0
    %2515 = vmatprep.subr.mxu0 0.0
    %2516 = vmatpush2.msra.mxu0 0.0
    %2517 = vmatprep.subr.mxu0 0.0
    %2518 = vmatpush2.msra.mxu0 0.0
    %2519 = vmatprep.subr.mxu0 0.0
    %2520 = vmatpush2.msra.mxu0 0.0
    %2521 = vmatprep.subr.mxu0 0.0
    %2522 = vmatpush2.msra.mxu0 0.0
    %2523 = vmatprep.subr.mxu0 0.0
    %2524 = vmatpush2.msra.mxu0 0.0
    %2525 = vmatprep.mubr.f32.mxu0 0.0
    %2526 = vmatmul.mubr.f32.gmra.mxu0 %v2459
    %v2527 = vpop.f32.mrf.mxu0
    %v2528 = vadd.f32 0.0, %v2527
    %v2529 = vpop.f32.mrf.mxu0
    %2530 = vdwg.mxu0
    %2531 = vrot.lane.b32.xlu0 %v183, 56
    %v2532 = vpop.permute.xlu0 %2531
    %v2535 = vsel %vm212, %v2196, 0
    %2537 = vmatprep.subr.mxu0 0.0
    %2538 = vmatpush1.msra.mxu0 0.0
    %2539 = vmatprep.subr.mxu0 0.0
    %2540 = vmatpush1.msra.mxu0 0.0
    %2541 = vmatprep.subr.mxu0 0.0
    %2542 = vmatpush1.msra.mxu0 0.0
    %2543 = vmatprep.subr.mxu0 0.0
    %2544 = vmatpush1.msra.mxu0 0.0
    %2545 = vmatprep.subr.mxu0 0.0
    %2546 = vmatpush1.msra.mxu0 0.0
    %2547 = vmatprep.subr.mxu0 0.0
    %2548 = vmatpush1.msra.mxu0 0.0
    %2549 = vmatprep.subr.mxu0 0.0
    %2550 = vmatpush1.msra.mxu0 0.0
    %2551 = vmatprep.subr.mxu0 0.0
    %2552 = vmatpush1.msra.mxu0 0.0
    %2553 = vmatprep.subr.mxu0 0.0
    %2554 = vmatpush1.msra.mxu0 0.0
    %2555 = vmatprep.subr.mxu0 0.0
    %2556 = vmatpush1.msra.mxu0 0.0
    %2557 = vmatprep.subr.mxu0 0.0
    %2558 = vmatpush1.msra.mxu0 0.0
    %2559 = vmatprep.subr.mxu0 0.0
    %2560 = vmatpush1.msra.mxu0 0.0
    %2561 = vmatprep.subr.mxu0 0.0
    %2562 = vmatpush1.msra.mxu0 0.0
    %2563 = vmatprep.subr.mxu0 0.0
    %2564 = vmatpush1.msra.mxu0 0.0
    %2565 = vmatprep.subr.mxu0 0.0
    %2566 = vmatpush1.msra.mxu0 0.0
    %2567 = vmatprep.subr.mxu0 0.0
    %2568 = vmatpush1.msra.mxu0 %v2532
    %2569 = vmatprep.subr.mxu0 0.0
    %2570 = vmatpush2.msra.mxu0 0.0
    %2571 = vmatprep.subr.mxu0 0.0
    %2572 = vmatpush2.msra.mxu0 0.0
    %2573 = vmatprep.subr.mxu0 0.0
    %2574 = vmatpush2.msra.mxu0 0.0
    %2575 = vmatprep.subr.mxu0 0.0
    %2576 = vmatpush2.msra.mxu0 0.0
    %2577 = vmatprep.subr.mxu0 0.0
    %2578 = vmatpush2.msra.mxu0 0.0
    %2579 = vmatprep.subr.mxu0 0.0
    %2580 = vmatpush2.msra.mxu0 0.0
    %2581 = vmatprep.subr.mxu0 0.0
    %2582 = vmatpush2.msra.mxu0 0.0
    %2583 = vmatprep.subr.mxu0 0.0
    %2584 = vmatpush2.msra.mxu0 0.0
    %2585 = vmatprep.subr.mxu0 0.0
    %2586 = vmatpush2.msra.mxu0 0.0
    %2587 = vmatprep.subr.mxu0 0.0
    %2588 = vmatpush2.msra.mxu0 0.0
    %2589 = vmatprep.subr.mxu0 0.0
    %2590 = vmatpush2.msra.mxu0 0.0
    %2591 = vmatprep.subr.mxu0 0.0
    %2592 = vmatpush2.msra.mxu0 0.0
    %2593 = vmatprep.subr.mxu0 0.0
    %2594 = vmatpush2.msra.mxu0 0.0
    %2595 = vmatprep.subr.mxu0 0.0
    %2596 = vmatpush2.msra.mxu0 0.0
    %2597 = vmatprep.subr.mxu0 0.0
    %2598 = vmatpush2.msra.mxu0 0.0
    %2599 = vmatprep.subr.mxu0 0.0
    %2600 = vmatpush2.msra.mxu0 0.0
    %2601 = vmatprep.mubr.f32.mxu0 0.0
    %2602 = vmatmul.mubr.f32.gmra.mxu0 %v2535
    %v2603 = vpop.f32.mrf.mxu0
    %v2604 = vadd.f32 0.0, %v2603
    %v2605 = vpop.f32.mrf.mxu0
    %2606 = vdwg.mxu0
    %2607 = vrot.lane.b32.xlu0 %v188, 56
    %v2608 = vpop.permute.xlu0 %2607
    %v2611 = vsel %vm212, %v2198, 0
    %2613 = vmatprep.subr.mxu0 0.0
    %2614 = vmatpush1.msra.mxu0 0.0
    %2615 = vmatprep.subr.mxu0 0.0
    %2616 = vmatpush1.msra.mxu0 0.0
    %2617 = vmatprep.subr.mxu0 0.0
    %2618 = vmatpush1.msra.mxu0 0.0
    %2619 = vmatprep.subr.mxu0 0.0
    %2620 = vmatpush1.msra.mxu0 0.0
    %2621 = vmatprep.subr.mxu0 0.0
    %2622 = vmatpush1.msra.mxu0 0.0
    %2623 = vmatprep.subr.mxu0 0.0
    %2624 = vmatpush1.msra.mxu0 0.0
    %2625 = vmatprep.subr.mxu0 0.0
    %2626 = vmatpush1.msra.mxu0 0.0
    %2627 = vmatprep.subr.mxu0 0.0
    %2628 = vmatpush1.msra.mxu0 0.0
    %2629 = vmatprep.subr.mxu0 0.0
    %2630 = vmatpush1.msra.mxu0 0.0
    %2631 = vmatprep.subr.mxu0 0.0
    %2632 = vmatpush1.msra.mxu0 0.0
    %2633 = vmatprep.subr.mxu0 0.0
    %2634 = vmatpush1.msra.mxu0 0.0
    %2635 = vmatprep.subr.mxu0 0.0
    %2636 = vmatpush1.msra.mxu0 0.0
    %2637 = vmatprep.subr.mxu0 0.0
    %2638 = vmatpush1.msra.mxu0 0.0
    %2639 = vmatprep.subr.mxu0 0.0
    %2640 = vmatpush1.msra.mxu0 0.0
    %2641 = vmatprep.subr.mxu0 0.0
    %2642 = vmatpush1.msra.mxu0 0.0
    %2643 = vmatprep.subr.mxu0 0.0
    %2644 = vmatpush1.msra.mxu0 %v2608
    %2645 = vmatprep.subr.mxu0 0.0
    %2646 = vmatpush2.msra.mxu0 0.0
    %2647 = vmatprep.subr.mxu0 0.0
    %2648 = vmatpush2.msra.mxu0 0.0
    %2649 = vmatprep.subr.mxu0 0.0
    %2650 = vmatpush2.msra.mxu0 0.0
    %2651 = vmatprep.subr.mxu0 0.0
    %2652 = vmatpush2.msra.mxu0 0.0
    %2653 = vmatprep.subr.mxu0 0.0
    %2654 = vmatpush2.msra.mxu0 0.0
    %2655 = vmatprep.subr.mxu0 0.0
    %2656 = vmatpush2.msra.mxu0 0.0
    %2657 = vmatprep.subr.mxu0 0.0
    %2658 = vmatpush2.msra.mxu0 0.0
    %2659 = vmatprep.subr.mxu0 0.0
    %2660 = vmatpush2.msra.mxu0 0.0
    %2661 = vmatprep.subr.mxu0 0.0
    %2662 = vmatpush2.msra.mxu0 0.0
    %2663 = vmatprep.subr.mxu0 0.0
    %2664 = vmatpush2.msra.mxu0 0.0
    %2665 = vmatprep.subr.mxu0 0.0
    %2666 = vmatpush2.msra.mxu0 0.0
    %2667 = vmatprep.subr.mxu0 0.0
    %2668 = vmatpush2.msra.mxu0 0.0
    %2669 = vmatprep.subr.mxu0 0.0
    %2670 = vmatpush2.msra.mxu0 0.0
    %2671 = vmatprep.subr.mxu0 0.0
    %2672 = vmatpush2.msra.mxu0 0.0
    %2673 = vmatprep.subr.mxu0 0.0
    %2674 = vmatpush2.msra.mxu0 0.0
    %2675 = vmatprep.subr.mxu0 0.0
    %2676 = vmatpush2.msra.mxu0 0.0
    %2677 = vmatprep.mubr.f32.mxu0 0.0
    %2678 = vmatmul.mubr.f32.gmra.mxu0 %v2611
    %v2679 = vpop.f32.mrf.mxu0
    %v2680 = vadd.f32 0.0, %v2679
    %v2681 = vpop.f32.mrf.mxu0
    %2682 = vdwg.mxu0
    %2683 = vrot.lane.b32.xlu0 %v193, 56
    %v2684 = vpop.permute.xlu0 %2683
    %v2687 = vsel %vm212, %v2200, 0
    %2689 = vmatprep.subr.mxu0 0.0
    %2690 = vmatpush1.msra.mxu0 0.0
    %2691 = vmatprep.subr.mxu0 0.0
    %2692 = vmatpush1.msra.mxu0 0.0
    %2693 = vmatprep.subr.mxu0 0.0
    %2694 = vmatpush1.msra.mxu0 0.0
    %2695 = vmatprep.subr.mxu0 0.0
    %2696 = vmatpush1.msra.mxu0 0.0
    %2697 = vmatprep.subr.mxu0 0.0
    %2698 = vmatpush1.msra.mxu0 0.0
    %2699 = vmatprep.subr.mxu0 0.0
    %2700 = vmatpush1.msra.mxu0 0.0
    %2701 = vmatprep.subr.mxu0 0.0
    %2702 = vmatpush1.msra.mxu0 0.0
    %2703 = vmatprep.subr.mxu0 0.0
    %2704 = vmatpush1.msra.mxu0 0.0
    %2705 = vmatprep.subr.mxu0 0.0
    %2706 = vmatpush1.msra.mxu0 0.0
    %2707 = vmatprep.subr.mxu0 0.0
    %2708 = vmatpush1.msra.mxu0 0.0
    %2709 = vmatprep.subr.mxu0 0.0
    %2710 = vmatpush1.msra.mxu0 0.0
    %2711 = vmatprep.subr.mxu0 0.0
    %2712 = vmatpush1.msra.mxu0 0.0
    %2713 = vmatprep.subr.mxu0 0.0
    %2714 = vmatpush1.msra.mxu0 0.0
    %2715 = vmatprep.subr.mxu0 0.0
    %2716 = vmatpush1.msra.mxu0 0.0
    %2717 = vmatprep.subr.mxu0 0.0
    %2718 = vmatpush1.msra.mxu0 0.0
    %2719 = vmatprep.subr.mxu0 0.0
    %2720 = vmatpush1.msra.mxu0 %v2684
    %2721 = vmatprep.subr.mxu0 0.0
    %2722 = vmatpush2.msra.mxu0 0.0
    %2723 = vmatprep.subr.mxu0 0.0
    %2724 = vmatpush2.msra.mxu0 0.0
    %2725 = vmatprep.subr.mxu0 0.0
    %2726 = vmatpush2.msra.mxu0 0.0
    %2727 = vmatprep.subr.mxu0 0.0
    %2728 = vmatpush2.msra.mxu0 0.0
    %2729 = vmatprep.subr.mxu0 0.0
    %2730 = vmatpush2.msra.mxu0 0.0
    %2731 = vmatprep.subr.mxu0 0.0
    %2732 = vmatpush2.msra.mxu0 0.0
    %2733 = vmatprep.subr.mxu0 0.0
    %2734 = vmatpush2.msra.mxu0 0.0
    %2735 = vmatprep.subr.mxu0 0.0
    %2736 = vmatpush2.msra.mxu0 0.0
    %2737 = vmatprep.subr.mxu0 0.0
    %2738 = vmatpush2.msra.mxu0 0.0
    %2739 = vmatprep.subr.mxu0 0.0
    %2740 = vmatpush2.msra.mxu0 0.0
    %2741 = vmatprep.subr.mxu0 0.0
    %2742 = vmatpush2.msra.mxu0 0.0
    %2743 = vmatprep.subr.mxu0 0.0
    %2744 = vmatpush2.msra.mxu0 0.0
    %2745 = vmatprep.subr.mxu0 0.0
    %2746 = vmatpush2.msra.mxu0 0.0
    %2747 = vmatprep.subr.mxu0 0.0
    %2748 = vmatpush2.msra.mxu0 0.0
    %2749 = vmatprep.subr.mxu0 0.0
    %2750 = vmatpush2.msra.mxu0 0.0
    %2751 = vmatprep.subr.mxu0 0.0
    %2752 = vmatpush2.msra.mxu0 0.0
    %2753 = vmatprep.mubr.f32.mxu0 0.0
    %2754 = vmatmul.mubr.f32.gmra.mxu0 %v2687
    %v2755 = vpop.f32.mrf.mxu0
    %v2756 = vadd.f32 0.0, %v2755
    %v2757 = vpop.f32.mrf.mxu0
    %2758 = vdwg.mxu0
    %2759 = vrot.lane.b32.xlu0 %v198, 56
    %v2760 = vpop.permute.xlu0 %2759
    %v2763 = vsel %vm212, %v2202, 0
    %2765 = vmatprep.subr.mxu0 0.0
    %2766 = vmatpush1.msra.mxu0 0.0
    %2767 = vmatprep.subr.mxu0 0.0
    %2768 = vmatpush1.msra.mxu0 0.0
    %2769 = vmatprep.subr.mxu0 0.0
    %2770 = vmatpush1.msra.mxu0 0.0
    %2771 = vmatprep.subr.mxu0 0.0
    %2772 = vmatpush1.msra.mxu0 0.0
    %2773 = vmatprep.subr.mxu0 0.0
    %2774 = vmatpush1.msra.mxu0 0.0
    %2775 = vmatprep.subr.mxu0 0.0
    %2776 = vmatpush1.msra.mxu0 0.0
    %2777 = vmatprep.subr.mxu0 0.0
    %2778 = vmatpush1.msra.mxu0 0.0
    %2779 = vmatprep.subr.mxu0 0.0
    %2780 = vmatpush1.msra.mxu0 0.0
    %2781 = vmatprep.subr.mxu0 0.0
    %2782 = vmatpush1.msra.mxu0 0.0
    %2783 = vmatprep.subr.mxu0 0.0
    %2784 = vmatpush1.msra.mxu0 0.0
    %2785 = vmatprep.subr.mxu0 0.0
    %2786 = vmatpush1.msra.mxu0 0.0
    %2787 = vmatprep.subr.mxu0 0.0
    %2788 = vmatpush1.msra.mxu0 0.0
    %2789 = vmatprep.subr.mxu0 0.0
    %2790 = vmatpush1.msra.mxu0 0.0
    %2791 = vmatprep.subr.mxu0 0.0
    %2792 = vmatpush1.msra.mxu0 0.0
    %2793 = vmatprep.subr.mxu0 0.0
    %2794 = vmatpush1.msra.mxu0 0.0
    %2795 = vmatprep.subr.mxu0 0.0
    %2796 = vmatpush1.msra.mxu0 %v2760
    %2797 = vmatprep.subr.mxu0 0.0
    %2798 = vmatpush2.msra.mxu0 0.0
    %2799 = vmatprep.subr.mxu0 0.0
    %2800 = vmatpush2.msra.mxu0 0.0
    %2801 = vmatprep.subr.mxu0 0.0
    %2802 = vmatpush2.msra.mxu0 0.0
    %2803 = vmatprep.subr.mxu0 0.0
    %2804 = vmatpush2.msra.mxu0 0.0
    %2805 = vmatprep.subr.mxu0 0.0
    %2806 = vmatpush2.msra.mxu0 0.0
    %2807 = vmatprep.subr.mxu0 0.0
    %2808 = vmatpush2.msra.mxu0 0.0
    %2809 = vmatprep.subr.mxu0 0.0
    %2810 = vmatpush2.msra.mxu0 0.0
    %2811 = vmatprep.subr.mxu0 0.0
    %2812 = vmatpush2.msra.mxu0 0.0
    %2813 = vmatprep.subr.mxu0 0.0
    %2814 = vmatpush2.msra.mxu0 0.0
    %2815 = vmatprep.subr.mxu0 0.0
    %2816 = vmatpush2.msra.mxu0 0.0
    %2817 = vmatprep.subr.mxu0 0.0
    %2818 = vmatpush2.msra.mxu0 0.0
    %2819 = vmatprep.subr.mxu0 0.0
    %2820 = vmatpush2.msra.mxu0 0.0
    %2821 = vmatprep.subr.mxu0 0.0
    %2822 = vmatpush2.msra.mxu0 0.0
    %2823 = vmatprep.subr.mxu0 0.0
    %2824 = vmatpush2.msra.mxu0 0.0
    %2825 = vmatprep.subr.mxu0 0.0
    %2826 = vmatpush2.msra.mxu0 0.0
    %2827 = vmatprep.subr.mxu0 0.0
    %2828 = vmatpush2.msra.mxu0 0.0
    %2829 = vmatprep.mubr.f32.mxu0 0.0
    %2830 = vmatmul.mubr.f32.gmra.mxu0 %v2763
    %v2831 = vpop.f32.mrf.mxu0
    %v2832 = vadd.f32 0.0, %v2831
    %v2833 = vpop.f32.mrf.mxu0
    %2834 = vdwg.mxu0
    %v2835 = vrcp.pop %v2205
    %v2836 = vmul.f32 %v2300, %v2835
    %v2837 = vrcp.pop %v2208
    %v2838 = vmul.f32 %v2376, %v2837
    %v2839 = vrcp.pop %v2211
    %v2840 = vmul.f32 %v2452, %v2839
    %v2841 = vrcp.pop %v2214
    %v2842 = vmul.f32 %v2528, %v2841
    %v2843 = vrcp.pop %v2217
    %v2844 = vmul.f32 %v2604, %v2843
    %v2845 = vrcp.pop %v2220
    %v2846 = vmul.f32 %v2680, %v2845
    %v2847 = vrcp.pop %v2223
    %v2848 = vmul.f32 %v2756, %v2847
    %v2849 = vrcp.pop %v2226
    %v2850 = vmul.f32 %v2832, %v2849
    %v2851 = vld [vmem:[#allocation7 + $0x8] sm:$0xff]
    %v2853 = vsel %vm212, %v2836, 0
    %v2856 = vsel %vm212, %v2838, 0
    %v2859 = vsel %vm212, %v2840, 0
    %v2862 = vsel %vm212, %v2842, 0
    %v2865 = vsel %vm212, %v2844, 0
    %v2868 = vsel %vm212, %v2846, 0
    %v2871 = vsel %vm212, %v2848, 0
    %v2874 = vsel %vm212, %v2850, 0
    %2876 = vmatprep.subr.mxu0 0.0
    %2877 = vmatpush1.msra.mxu0 0.0
    %2878 = vmatprep.subr.mxu0 0.0
    %2879 = vmatpush1.msra.mxu0 0.0
    %2880 = vmatprep.subr.mxu0 0.0
    %2881 = vmatpush1.msra.mxu0 0.0
    %2882 = vmatprep.subr.mxu0 0.0
    %2883 = vmatpush1.msra.mxu0 0.0
    %2884 = vmatprep.subr.mxu0 0.0
    %2885 = vmatpush1.msra.mxu0 0.0
    %2886 = vmatprep.subr.mxu0 0.0
    %2887 = vmatpush1.msra.mxu0 0.0
    %2888 = vmatprep.subr.mxu0 0.0
    %2889 = vmatpush1.msra.mxu0 0.0
    %2890 = vmatprep.subr.mxu0 0.0
    %2891 = vmatpush1.msra.mxu0 0.0
    %2892 = vmatprep.subr.mxu0 0.0
    %2893 = vmatpush1.msra.mxu0 0.0
    %2894 = vmatprep.subr.mxu0 0.0
    %2895 = vmatpush1.msra.mxu0 0.0
    %2896 = vmatprep.subr.mxu0 0.0
    %2897 = vmatpush1.msra.mxu0 0.0
    %2898 = vmatprep.subr.mxu0 0.0
    %2899 = vmatpush1.msra.mxu0 0.0
    %2900 = vmatprep.subr.mxu0 0.0
    %2901 = vmatpush1.msra.mxu0 0.0
    %2902 = vmatprep.subr.mxu0 0.0
    %2903 = vmatpush1.msra.mxu0 0.0
    %2904 = vmatprep.subr.mxu0 0.0
    %2905 = vmatpush1.msra.mxu0 0.0
    %2906 = vmatprep.subr.mxu0 0.0
    %2907 = vmatpush1.msra.mxu0 %v2851
    %2908 = vmatprep.subr.mxu0 0.0
    %2909 = vmatpush2.msra.mxu0 0.0
    %2910 = vmatprep.subr.mxu0 0.0
    %2911 = vmatpush2.msra.mxu0 0.0
    %2912 = vmatprep.subr.mxu0 0.0
    %2913 = vmatpush2.msra.mxu0 0.0
    %2914 = vmatprep.subr.mxu0 0.0
    %2915 = vmatpush2.msra.mxu0 0.0
    %2916 = vmatprep.subr.mxu0 0.0
    %2917 = vmatpush2.msra.mxu0 0.0
    %2918 = vmatprep.subr.mxu0 0.0
    %2919 = vmatpush2.msra.mxu0 0.0
    %2920 = vmatprep.subr.mxu0 0.0
    %2921 = vmatpush2.msra.mxu0 0.0
    %2922 = vmatprep.subr.mxu0 0.0
    %2923 = vmatpush2.msra.mxu0 0.0
    %2924 = vmatprep.subr.mxu0 0.0
    %2925 = vmatpush2.msra.mxu0 0.0
    %2926 = vmatprep.subr.mxu0 0.0
    %2927 = vmatpush2.msra.mxu0 0.0
    %2928 = vmatprep.subr.mxu0 0.0
    %2929 = vmatpush2.msra.mxu0 0.0
    %2930 = vmatprep.subr.mxu0 0.0
    %2931 = vmatpush2.msra.mxu0 0.0
    %2932 = vmatprep.subr.mxu0 0.0
    %2933 = vmatpush2.msra.mxu0 0.0
    %2934 = vmatprep.subr.mxu0 0.0
    %2935 = vmatpush2.msra.mxu0 0.0
    %2936 = vmatprep.subr.mxu0 0.0
    %2937 = vmatpush2.msra.mxu0 0.0
    %2938 = vmatprep.subr.mxu0 0.0
    %2939 = vmatpush2.msra.mxu0 0.0
    %2940 = vmatprep.mubr.f32.mxu0 0.0
    %2941 = vmatmul.mubr.f32.gmra.mxu0 %v2853
    %v2942 = vpop.f32.mrf.mxu0
    %v2943 = vadd.f32 0.0, %v2942
    %v2944 = vpop.f32.mrf.mxu0
    %2945 = vmatprep.mubr.f32.mxu0 0.0
    %2946 = vmatmul.mubr.f32.gmra.mxu0 %v2856
    %v2947 = vpop.f32.mrf.mxu0
    %v2948 = vadd.f32 0.0, %v2947
    %v2949 = vpop.f32.mrf.mxu0
    %2950 = vmatprep.mubr.f32.mxu0 0.0
    %2951 = vmatmul.mubr.f32.gmra.mxu0 %v2859
    %v2952 = vpop.f32.mrf.mxu0
    %v2953 = vadd.f32 0.0, %v2952
    %v2954 = vpop.f32.mrf.mxu0
    %2955 = vmatprep.mubr.f32.mxu0 0.0
    %2956 = vmatmul.mubr.f32.gmra.mxu0 %v2862
    %v2957 = vpop.f32.mrf.mxu0
    %v2958 = vadd.f32 0.0, %v2957
    %v2959 = vpop.f32.mrf.mxu0
    %2960 = vmatprep.mubr.f32.mxu0 0.0
    %2961 = vmatmul.mubr.f32.gmra.mxu0 %v2865
    %v2962 = vpop.f32.mrf.mxu0
    %v2963 = vadd.f32 0.0, %v2962
    %v2964 = vpop.f32.mrf.mxu0
    %2965 = vmatprep.mubr.f32.mxu0 0.0
    %2966 = vmatmul.mubr.f32.gmra.mxu0 %v2868
    %v2967 = vpop.f32.mrf.mxu0
    %v2968 = vadd.f32 0.0, %v2967
    %v2969 = vpop.f32.mrf.mxu0
    %2970 = vmatprep.mubr.f32.mxu0 0.0
    %2971 = vmatmul.mubr.f32.gmra.mxu0 %v2871
    %v2972 = vpop.f32.mrf.mxu0
    %v2973 = vadd.f32 0.0, %v2972
    %v2974 = vpop.f32.mrf.mxu0
    %2975 = vmatprep.mubr.f32.mxu0 0.0
    %2976 = vmatmul.mubr.f32.gmra.mxu0 %v2874
    %v2977 = vpop.f32.mrf.mxu0
    %v2978 = vadd.f32 0.0, %v2977
    %v2979 = vpop.f32.mrf.mxu0
    %2980 = vdwg.mxu0
    %v2982 = vsel %vm212, %v1515, 0
    %v2985 = vsel %vm212, %v1517, 0
    %v2988 = vsel %vm212, %v1519, 0
    %v2991 = vsel %vm212, %v1521, 0
    %v2994 = vsel %vm212, %v1523, 0
    %v2997 = vsel %vm212, %v1525, 0
    %v3000 = vsel %vm212, %v1527, 0
    %v3003 = vsel %vm212, %v1529, 0
    %3005 = vmatprep.subr.mxu0 0.0
    %3006 = vmatpush1.msra.mxu0 0.0
    %3007 = vmatprep.subr.mxu0 0.0
    %3008 = vmatpush1.msra.mxu0 0.0
    %3009 = vmatprep.subr.mxu0 0.0
    %3010 = vmatpush1.msra.mxu0 0.0
    %3011 = vmatprep.subr.mxu0 0.0
    %3012 = vmatpush1.msra.mxu0 0.0
    %3013 = vmatprep.subr.mxu0 0.0
    %3014 = vmatpush1.msra.mxu0 0.0
    %3015 = vmatprep.subr.mxu0 0.0
    %3016 = vmatpush1.msra.mxu0 0.0
    %3017 = vmatprep.subr.mxu0 0.0
    %3018 = vmatpush1.msra.mxu0 0.0
    %3019 = vmatprep.subr.mxu0 0.0
    %3020 = vmatpush1.msra.mxu0 0.0
    %3021 = vmatprep.subr.mxu0 0.0
    %3022 = vmatpush1.msra.mxu0 0.0
    %3023 = vmatprep.subr.mxu0 0.0
    %3024 = vmatpush1.msra.mxu0 0.0
    %3025 = vmatprep.subr.mxu0 0.0
    %3026 = vmatpush1.msra.mxu0 0.0
    %3027 = vmatprep.subr.mxu0 0.0
    %3028 = vmatpush1.msra.mxu0 0.0
    %3029 = vmatprep.subr.mxu0 0.0
    %3030 = vmatpush1.msra.mxu0 0.0
    %3031 = vmatprep.subr.mxu0 0.0
    %3032 = vmatpush1.msra.mxu0 0.0
    %3033 = vmatprep.subr.mxu0 0.0
    %3034 = vmatpush1.msra.mxu0 0.0
    %3035 = vmatprep.subr.mxu0 0.0
    %3036 = vmatpush1.msra.mxu0 %v1530
    %3037 = vmatprep.subr.mxu0 0.0
    %3038 = vmatpush2.msra.mxu0 0.0
    %3039 = vmatprep.subr.mxu0 0.0
    %3040 = vmatpush2.msra.mxu0 0.0
    %3041 = vmatprep.subr.mxu0 0.0
    %3042 = vmatpush2.msra.mxu0 0.0
    %3043 = vmatprep.subr.mxu0 0.0
    %3044 = vmatpush2.msra.mxu0 0.0
    %3045 = vmatprep.subr.mxu0 0.0
    %3046 = vmatpush2.msra.mxu0 0.0
    %3047 = vmatprep.subr.mxu0 0.0
    %3048 = vmatpush2.msra.mxu0 0.0
    %3049 = vmatprep.subr.mxu0 0.0
    %3050 = vmatpush2.msra.mxu0 0.0
    %3051 = vmatprep.subr.mxu0 0.0
    %3052 = vmatpush2.msra.mxu0 0.0
    %3053 = vmatprep.subr.mxu0 0.0
    %3054 = vmatpush2.msra.mxu0 0.0
    %3055 = vmatprep.subr.mxu0 0.0
    %3056 = vmatpush2.msra.mxu0 0.0
    %3057 = vmatprep.subr.mxu0 0.0
    %3058 = vmatpush2.msra.mxu0 0.0
    %3059 = vmatprep.subr.mxu0 0.0
    %3060 = vmatpush2.msra.mxu0 0.0
    %3061 = vmatprep.subr.mxu0 0.0
    %3062 = vmatpush2.msra.mxu0 0.0
    %3063 = vmatprep.subr.mxu0 0.0
    %3064 = vmatpush2.msra.mxu0 0.0
    %3065 = vmatprep.subr.mxu0 0.0
    %3066 = vmatpush2.msra.mxu0 0.0
    %3067 = vmatprep.subr.mxu0 0.0
    %3068 = vmatpush2.msra.mxu0 0.0
    %3069 = vmatprep.mubr.f32.mxu0 0.0
    %3070 = vmatmul.mubr.f32.gmra.mxu0 %v2982
    %v3071 = vpop.f32.mrf.mxu0
    %v3072 = vadd.f32 %v2943, %v3071
    %v3073 = vpop.f32.mrf.mxu0
    %3074 = vmatprep.mubr.f32.mxu0 0.0
    %3075 = vmatmul.mubr.f32.gmra.mxu0 %v2985
    %v3076 = vpop.f32.mrf.mxu0
    %v3077 = vadd.f32 %v2948, %v3076
    %v3078 = vpop.f32.mrf.mxu0
    %3079 = vmatprep.mubr.f32.mxu0 0.0
    %3080 = vmatmul.mubr.f32.gmra.mxu0 %v2988
    %v3081 = vpop.f32.mrf.mxu0
    %v3082 = vadd.f32 %v2953, %v3081
    %v3083 = vpop.f32.mrf.mxu0
    %3084 = vmatprep.mubr.f32.mxu0 0.0
    %3085 = vmatmul.mubr.f32.gmra.mxu0 %v2991
    %v3086 = vpop.f32.mrf.mxu0
    %v3087 = vadd.f32 %v2958, %v3086
    %v3088 = vpop.f32.mrf.mxu0
    %3089 = vmatprep.mubr.f32.mxu0 0.0
    %3090 = vmatmul.mubr.f32.gmra.mxu0 %v2994
    %v3091 = vpop.f32.mrf.mxu0
    %v3092 = vadd.f32 %v2963, %v3091
    %v3093 = vpop.f32.mrf.mxu0
    %3094 = vmatprep.mubr.f32.mxu0 0.0
    %3095 = vmatmul.mubr.f32.gmra.mxu0 %v2997
    %v3096 = vpop.f32.mrf.mxu0
    %v3097 = vadd.f32 %v2968, %v3096
    %v3098 = vpop.f32.mrf.mxu0
    %3099 = vmatprep.mubr.f32.mxu0 0.0
    %3100 = vmatmul.mubr.f32.gmra.mxu0 %v3000
    %v3101 = vpop.f32.mrf.mxu0
    %v3102 = vadd.f32 %v2973, %v3101
    %v3103 = vpop.f32.mrf.mxu0
    %3104 = vmatprep.mubr.f32.mxu0 0.0
    %3105 = vmatmul.mubr.f32.gmra.mxu0 %v3003
    %v3106 = vpop.f32.mrf.mxu0
    %v3107 = vadd.f32 %v2978, %v3106
    %v3108 = vpop.f32.mrf.mxu0
    %3109 = vdwg.mxu0
    %3110 = vrot.lane.b32.xlu0 %v201, 112
    %v3111 = vpop.permute.xlu0 %3110
    %3112 = vrot.lane.b32.xlu0 %v163, 80
    %v3113 = vpop.permute.xlu0 %3112
    %v3114 = vsel %vm212, %v3111, 0
    %v3116 = vsel %vm212, %v3113, 0
    %3118 = vmatprep.subr.mxu0 0.0
    %3119 = vmatpush1.xpose.msra.mxu0 0.0
    %3120 = vmatprep.subr.mxu0 0.0
    %3121 = vmatpush1.xpose.msra.mxu0 0.0
    %3122 = vmatprep.subr.mxu0 0.0
    %3123 = vmatpush1.xpose.msra.mxu0 0.0
    %3124 = vmatprep.subr.mxu0 0.0
    %3125 = vmatpush1.xpose.msra.mxu0 0.0
    %3126 = vmatprep.subr.mxu0 0.0
    %3127 = vmatpush1.xpose.msra.mxu0 0.0
    %3128 = vmatprep.subr.mxu0 0.0
    %3129 = vmatpush1.xpose.msra.mxu0 0.0
    %3130 = vmatprep.subr.mxu0 0.0
    %3131 = vmatpush1.xpose.msra.mxu0 0.0
    %3132 = vmatprep.subr.mxu0 0.0
    %3133 = vmatpush1.xpose.msra.mxu0 0.0
    %3134 = vmatprep.subr.mxu0 0.0
    %3135 = vmatpush1.xpose.msra.mxu0 0.0
    %3136 = vmatprep.subr.mxu0 0.0
    %3137 = vmatpush1.xpose.msra.mxu0 0.0
    %3138 = vmatprep.subr.mxu0 0.0
    %3139 = vmatpush1.xpose.msra.mxu0 0.0
    %3140 = vmatprep.subr.mxu0 0.0
    %3141 = vmatpush1.xpose.msra.mxu0 0.0
    %3142 = vmatprep.subr.mxu0 0.0
    %3143 = vmatpush1.xpose.msra.mxu0 0.0
    %3144 = vmatprep.subr.mxu0 0.0
    %3145 = vmatpush1.xpose.msra.mxu0 0.0
    %3146 = vmatprep.subr.mxu0 0.0
    %3147 = vmatpush1.xpose.msra.mxu0 0.0
    %3148 = vmatprep.subr.mxu0 0.0
    %3149 = vmatpush1.xpose.msra.mxu0 %v3116
    %3150 = vmatprep.subr.mxu0 0.0
    %3151 = vmatpush2.xpose.msra.mxu0 0.0
    %3152 = vmatprep.subr.mxu0 0.0
    %3153 = vmatpush2.xpose.msra.mxu0 0.0
    %3154 = vmatprep.subr.mxu0 0.0
    %3155 = vmatpush2.xpose.msra.mxu0 0.0
    %3156 = vmatprep.subr.mxu0 0.0
    %3157 = vmatpush2.xpose.msra.mxu0 0.0
    %3158 = vmatprep.subr.mxu0 0.0
    %3159 = vmatpush2.xpose.msra.mxu0 0.0
    %3160 = vmatprep.subr.mxu0 0.0
    %3161 = vmatpush2.xpose.msra.mxu0 0.0
    %3162 = vmatprep.subr.mxu0 0.0
    %3163 = vmatpush2.xpose.msra.mxu0 0.0
    %3164 = vmatprep.subr.mxu0 0.0
    %3165 = vmatpush2.xpose.msra.mxu0 0.0
    %3166 = vmatprep.subr.mxu0 0.0
    %3167 = vmatpush2.xpose.msra.mxu0 0.0
    %3168 = vmatprep.subr.mxu0 0.0
    %3169 = vmatpush2.xpose.msra.mxu0 0.0
    %3170 = vmatprep.subr.mxu0 0.0
    %3171 = vmatpush2.xpose.msra.mxu0 0.0
    %3172 = vmatprep.subr.mxu0 0.0
    %3173 = vmatpush2.xpose.msra.mxu0 0.0
    %3174 = vmatprep.subr.mxu0 0.0
    %3175 = vmatpush2.xpose.msra.mxu0 0.0
    %3176 = vmatprep.subr.mxu0 0.0
    %3177 = vmatpush2.xpose.msra.mxu0 0.0
    %3178 = vmatprep.subr.mxu0 0.0
    %3179 = vmatpush2.xpose.msra.mxu0 0.0
    %3180 = vmatprep.subr.mxu0 0.0
    %3181 = vmatpush2.xpose.msra.mxu0 0.0
    %3182 = vmatprep.mubr.f32.mxu0 0.0
    %3183 = vmatmul.mubr.f32.gmra.mxu0 %v3114
    %v3184 = vpop.f32.mrf.mxu0
    %v3185 = vadd.f32 0.0, %v3184
    %v3186 = vpop.f32.mrf.mxu0
    %3187 = vdwg.mxu0
    %3188 = vrot.lane.b32.xlu0 %v202, 112
    %v3189 = vpop.permute.xlu0 %3188
    %3190 = vrot.lane.b32.xlu0 %v168, 80
    %v3191 = vpop.permute.xlu0 %3190
    %v3192 = vsel %vm212, %v3189, 0
    %v3194 = vsel %vm212, %v3191, 0
    %3196 = vmatprep.subr.mxu0 0.0
    %3197 = vmatpush1.xpose.msra.mxu0 0.0
    %3198 = vmatprep.subr.mxu0 0.0
    %3199 = vmatpush1.xpose.msra.mxu0 0.0
    %3200 = vmatprep.subr.mxu0 0.0
    %3201 = vmatpush1.xpose.msra.mxu0 0.0
    %3202 = vmatprep.subr.mxu0 0.0
    %3203 = vmatpush1.xpose.msra.mxu0 0.0
    %3204 = vmatprep.subr.mxu0 0.0
    %3205 = vmatpush1.xpose.msra.mxu0 0.0
    %3206 = vmatprep.subr.mxu0 0.0
    %3207 = vmatpush1.xpose.msra.mxu0 0.0
    %3208 = vmatprep.subr.mxu0 0.0
    %3209 = vmatpush1.xpose.msra.mxu0 0.0
    %3210 = vmatprep.subr.mxu0 0.0
    %3211 = vmatpush1.xpose.msra.mxu0 0.0
    %3212 = vmatprep.subr.mxu0 0.0
    %3213 = vmatpush1.xpose.msra.mxu0 0.0
    %3214 = vmatprep.subr.mxu0 0.0
    %3215 = vmatpush1.xpose.msra.mxu0 0.0
    %3216 = vmatprep.subr.mxu0 0.0
    %3217 = vmatpush1.xpose.msra.mxu0 0.0
    %3218 = vmatprep.subr.mxu0 0.0
    %3219 = vmatpush1.xpose.msra.mxu0 0.0
    %3220 = vmatprep.subr.mxu0 0.0
    %3221 = vmatpush1.xpose.msra.mxu0 0.0
    %3222 = vmatprep.subr.mxu0 0.0
    %3223 = vmatpush1.xpose.msra.mxu0 0.0
    %3224 = vmatprep.subr.mxu0 0.0
    %3225 = vmatpush1.xpose.msra.mxu0 0.0
    %3226 = vmatprep.subr.mxu0 0.0
    %3227 = vmatpush1.xpose.msra.mxu0 %v3194
    %3228 = vmatprep.subr.mxu0 0.0
    %3229 = vmatpush2.xpose.msra.mxu0 0.0
    %3230 = vmatprep.subr.mxu0 0.0
    %3231 = vmatpush2.xpose.msra.mxu0 0.0
    %3232 = vmatprep.subr.mxu0 0.0
    %3233 = vmatpush2.xpose.msra.mxu0 0.0
    %3234 = vmatprep.subr.mxu0 0.0
    %3235 = vmatpush2.xpose.msra.mxu0 0.0
    %3236 = vmatprep.subr.mxu0 0.0
    %3237 = vmatpush2.xpose.msra.mxu0 0.0
    %3238 = vmatprep.subr.mxu0 0.0
    %3239 = vmatpush2.xpose.msra.mxu0 0.0
    %3240 = vmatprep.subr.mxu0 0.0
    %3241 = vmatpush2.xpose.msra.mxu0 0.0
    %3242 = vmatprep.subr.mxu0 0.0
    %3243 = vmatpush2.xpose.msra.mxu0 0.0
    %3244 = vmatprep.subr.mxu0 0.0
    %3245 = vmatpush2.xpose.msra.mxu0 0.0
    %3246 = vmatprep.subr.mxu0 0.0
    %3247 = vmatpush2.xpose.msra.mxu0 0.0
    %3248 = vmatprep.subr.mxu0 0.0
    %3249 = vmatpush2.xpose.msra.mxu0 0.0
    %3250 = vmatprep.subr.mxu0 0.0
    %3251 = vmatpush2.xpose.msra.mxu0 0.0
    %3252 = vmatprep.subr.mxu0 0.0
    %3253 = vmatpush2.xpose.msra.mxu0 0.0
    %3254 = vmatprep.subr.mxu0 0.0
    %3255 = vmatpush2.xpose.msra.mxu0 0.0
    %3256 = vmatprep.subr.mxu0 0.0
    %3257 = vmatpush2.xpose.msra.mxu0 0.0
    %3258 = vmatprep.subr.mxu0 0.0
    %3259 = vmatpush2.xpose.msra.mxu0 0.0
    %3260 = vmatprep.mubr.f32.mxu0 0.0
    %3261 = vmatmul.mubr.f32.gmra.mxu0 %v3192
    %v3262 = vpop.f32.mrf.mxu0
    %v3263 = vadd.f32 0.0, %v3262
    %v3264 = vpop.f32.mrf.mxu0
    %3265 = vdwg.mxu0
    %3266 = vrot.lane.b32.xlu0 %v203, 112
    %v3267 = vpop.permute.xlu0 %3266
    %3268 = vrot.lane.b32.xlu0 %v173, 80
    %v3269 = vpop.permute.xlu0 %3268
    %v3270 = vsel %vm212, %v3267, 0
    %v3272 = vsel %vm212, %v3269, 0
    %3274 = vmatprep.subr.mxu0 0.0
    %3275 = vmatpush1.xpose.msra.mxu0 0.0
    %3276 = vmatprep.subr.mxu0 0.0
    %3277 = vmatpush1.xpose.msra.mxu0 0.0
    %3278 = vmatprep.subr.mxu0 0.0
    %3279 = vmatpush1.xpose.msra.mxu0 0.0
    %3280 = vmatprep.subr.mxu0 0.0
    %3281 = vmatpush1.xpose.msra.mxu0 0.0
    %3282 = vmatprep.subr.mxu0 0.0
    %3283 = vmatpush1.xpose.msra.mxu0 0.0
    %3284 = vmatprep.subr.mxu0 0.0
    %3285 = vmatpush1.xpose.msra.mxu0 0.0
    %3286 = vmatprep.subr.mxu0 0.0
    %3287 = vmatpush1.xpose.msra.mxu0 0.0
    %3288 = vmatprep.subr.mxu0 0.0
    %3289 = vmatpush1.xpose.msra.mxu0 0.0
    %3290 = vmatprep.subr.mxu0 0.0
    %3291 = vmatpush1.xpose.msra.mxu0 0.0
    %3292 = vmatprep.subr.mxu0 0.0
    %3293 = vmatpush1.xpose.msra.mxu0 0.0
    %3294 = vmatprep.subr.mxu0 0.0
    %3295 = vmatpush1.xpose.msra.mxu0 0.0
    %3296 = vmatprep.subr.mxu0 0.0
    %3297 = vmatpush1.xpose.msra.mxu0 0.0
    %3298 = vmatprep.subr.mxu0 0.0
    %3299 = vmatpush1.xpose.msra.mxu0 0.0
    %3300 = vmatprep.subr.mxu0 0.0
    %3301 = vmatpush1.xpose.msra.mxu0 0.0
    %3302 = vmatprep.subr.mxu0 0.0
    %3303 = vmatpush1.xpose.msra.mxu0 0.0
    %3304 = vmatprep.subr.mxu0 0.0
    %3305 = vmatpush1.xpose.msra.mxu0 %v3272
    %3306 = vmatprep.subr.mxu0 0.0
    %3307 = vmatpush2.xpose.msra.mxu0 0.0
    %3308 = vmatprep.subr.mxu0 0.0
    %3309 = vmatpush2.xpose.msra.mxu0 0.0
    %3310 = vmatprep.subr.mxu0 0.0
    %3311 = vmatpush2.xpose.msra.mxu0 0.0
    %3312 = vmatprep.subr.mxu0 0.0
    %3313 = vmatpush2.xpose.msra.mxu0 0.0
    %3314 = vmatprep.subr.mxu0 0.0
    %3315 = vmatpush2.xpose.msra.mxu0 0.0
    %3316 = vmatprep.subr.mxu0 0.0
    %3317 = vmatpush2.xpose.msra.mxu0 0.0
    %3318 = vmatprep.subr.mxu0 0.0
    %3319 = vmatpush2.xpose.msra.mxu0 0.0
    %3320 = vmatprep.subr.mxu0 0.0
    %3321 = vmatpush2.xpose.msra.mxu0 0.0
    %3322 = vmatprep.subr.mxu0 0.0
    %3323 = vmatpush2.xpose.msra.mxu0 0.0
    %3324 = vmatprep.subr.mxu0 0.0
    %3325 = vmatpush2.xpose.msra.mxu0 0.0
    %3326 = vmatprep.subr.mxu0 0.0
    %3327 = vmatpush2.xpose.msra.mxu0 0.0
    %3328 = vmatprep.subr.mxu0 0.0
    %3329 = vmatpush2.xpose.msra.mxu0 0.0
    %3330 = vmatprep.subr.mxu0 0.0
    %3331 = vmatpush2.xpose.msra.mxu0 0.0
    %3332 = vmatprep.subr.mxu0 0.0
    %3333 = vmatpush2.xpose.msra.mxu0 0.0
    %3334 = vmatprep.subr.mxu0 0.0
    %3335 = vmatpush2.xpose.msra.mxu0 0.0
    %3336 = vmatprep.subr.mxu0 0.0
    %3337 = vmatpush2.xpose.msra.mxu0 0.0
    %3338 = vmatprep.mubr.f32.mxu0 0.0
    %3339 = vmatmul.mubr.f32.gmra.mxu0 %v3270
    %v3340 = vpop.f32.mrf.mxu0
    %v3341 = vadd.f32 0.0, %v3340
    %v3342 = vpop.f32.mrf.mxu0
    %3343 = vdwg.mxu0
    %3344 = vrot.lane.b32.xlu0 %v204, 112
    %v3345 = vpop.permute.xlu0 %3344
    %3346 = vrot.lane.b32.xlu0 %v178, 80
    %v3347 = vpop.permute.xlu0 %3346
    %v3348 = vsel %vm212, %v3345, 0
    %v3350 = vsel %vm212, %v3347, 0
    %3352 = vmatprep.subr.mxu0 0.0
    %3353 = vmatpush1.xpose.msra.mxu0 0.0
    %3354 = vmatprep.subr.mxu0 0.0
    %3355 = vmatpush1.xpose.msra.mxu0 0.0
    %3356 = vmatprep.subr.mxu0 0.0
    %3357 = vmatpush1.xpose.msra.mxu0 0.0
    %3358 = vmatprep.subr.mxu0 0.0
    %3359 = vmatpush1.xpose.msra.mxu0 0.0
    %3360 = vmatprep.subr.mxu0 0.0
    %3361 = vmatpush1.xpose.msra.mxu0 0.0
    %3362 = vmatprep.subr.mxu0 0.0
    %3363 = vmatpush1.xpose.msra.mxu0 0.0
    %3364 = vmatprep.subr.mxu0 0.0
    %3365 = vmatpush1.xpose.msra.mxu0 0.0
    %3366 = vmatprep.subr.mxu0 0.0
    %3367 = vmatpush1.xpose.msra.mxu0 0.0
    %3368 = vmatprep.subr.mxu0 0.0
    %3369 = vmatpush1.xpose.msra.mxu0 0.0
    %3370 = vmatprep.subr.mxu0 0.0
    %3371 = vmatpush1.xpose.msra.mxu0 0.0
    %3372 = vmatprep.subr.mxu0 0.0
    %3373 = vmatpush1.xpose.msra.mxu0 0.0
    %3374 = vmatprep.subr.mxu0 0.0
    %3375 = vmatpush1.xpose.msra.mxu0 0.0
    %3376 = vmatprep.subr.mxu0 0.0
    %3377 = vmatpush1.xpose.msra.mxu0 0.0
    %3378 = vmatprep.subr.mxu0 0.0
    %3379 = vmatpush1.xpose.msra.mxu0 0.0
    %3380 = vmatprep.subr.mxu0 0.0
    %3381 = vmatpush1.xpose.msra.mxu0 0.0
    %3382 = vmatprep.subr.mxu0 0.0
    %3383 = vmatpush1.xpose.msra.mxu0 %v3350
    %3384 = vmatprep.subr.mxu0 0.0
    %3385 = vmatpush2.xpose.msra.mxu0 0.0
    %3386 = vmatprep.subr.mxu0 0.0
    %3387 = vmatpush2.xpose.msra.mxu0 0.0
    %3388 = vmatprep.subr.mxu0 0.0
    %3389 = vmatpush2.xpose.msra.mxu0 0.0
    %3390 = vmatprep.subr.mxu0 0.0
    %3391 = vmatpush2.xpose.msra.mxu0 0.0
    %3392 = vmatprep.subr.mxu0 0.0
    %3393 = vmatpush2.xpose.msra.mxu0 0.0
    %3394 = vmatprep.subr.mxu0 0.0
    %3395 = vmatpush2.xpose.msra.mxu0 0.0
    %3396 = vmatprep.subr.mxu0 0.0
    %3397 = vmatpush2.xpose.msra.mxu0 0.0
    %3398 = vmatprep.subr.mxu0 0.0
    %3399 = vmatpush2.xpose.msra.mxu0 0.0
    %3400 = vmatprep.subr.mxu0 0.0
    %3401 = vmatpush2.xpose.msra.mxu0 0.0
    %3402 = vmatprep.subr.mxu0 0.0
    %3403 = vmatpush2.xpose.msra.mxu0 0.0
    %3404 = vmatprep.subr.mxu0 0.0
    %3405 = vmatpush2.xpose.msra.mxu0 0.0
    %3406 = vmatprep.subr.mxu0 0.0
    %3407 = vmatpush2.xpose.msra.mxu0 0.0
    %3408 = vmatprep.subr.mxu0 0.0
    %3409 = vmatpush2.xpose.msra.mxu0 0.0
    %3410 = vmatprep.subr.mxu0 0.0
    %3411 = vmatpush2.xpose.msra.mxu0 0.0
    %3412 = vmatprep.subr.mxu0 0.0
    %3413 = vmatpush2.xpose.msra.mxu0 0.0
    %3414 = vmatprep.subr.mxu0 0.0
    %3415 = vmatpush2.xpose.msra.mxu0 0.0
    %3416 = vmatprep.mubr.f32.mxu0 0.0
    %3417 = vmatmul.mubr.f32.gmra.mxu0 %v3348
    %v3418 = vpop.f32.mrf.mxu0
    %v3419 = vadd.f32 0.0, %v3418
    %v3420 = vpop.f32.mrf.mxu0
    %3421 = vdwg.mxu0
    %3422 = vrot.lane.b32.xlu0 %v205, 112
    %v3423 = vpop.permute.xlu0 %3422
    %3424 = vrot.lane.b32.xlu0 %v183, 80
    %v3425 = vpop.permute.xlu0 %3424
    %v3426 = vsel %vm212, %v3423, 0
    %v3428 = vsel %vm212, %v3425, 0
    %3430 = vmatprep.subr.mxu0 0.0
    %3431 = vmatpush1.xpose.msra.mxu0 0.0
    %3432 = vmatprep.subr.mxu0 0.0
    %3433 = vmatpush1.xpose.msra.mxu0 0.0
    %3434 = vmatprep.subr.mxu0 0.0
    %3435 = vmatpush1.xpose.msra.mxu0 0.0
    %3436 = vmatprep.subr.mxu0 0.0
    %3437 = vmatpush1.xpose.msra.mxu0 0.0
    %3438 = vmatprep.subr.mxu0 0.0
    %3439 = vmatpush1.xpose.msra.mxu0 0.0
    %3440 = vmatprep.subr.mxu0 0.0
    %3441 = vmatpush1.xpose.msra.mxu0 0.0
    %3442 = vmatprep.subr.mxu0 0.0
    %3443 = vmatpush1.xpose.msra.mxu0 0.0
    %3444 = vmatprep.subr.mxu0 0.0
    %3445 = vmatpush1.xpose.msra.mxu0 0.0
    %3446 = vmatprep.subr.mxu0 0.0
    %3447 = vmatpush1.xpose.msra.mxu0 0.0
    %3448 = vmatprep.subr.mxu0 0.0
    %3449 = vmatpush1.xpose.msra.mxu0 0.0
    %3450 = vmatprep.subr.mxu0 0.0
    %3451 = vmatpush1.xpose.msra.mxu0 0.0
    %3452 = vmatprep.subr.mxu0 0.0
    %3453 = vmatpush1.xpose.msra.mxu0 0.0
    %3454 = vmatprep.subr.mxu0 0.0
    %3455 = vmatpush1.xpose.msra.mxu0 0.0
    %3456 = vmatprep.subr.mxu0 0.0
    %3457 = vmatpush1.xpose.msra.mxu0 0.0
    %3458 = vmatprep.subr.mxu0 0.0
    %3459 = vmatpush1.xpose.msra.mxu0 0.0
    %3460 = vmatprep.subr.mxu0 0.0
    %3461 = vmatpush1.xpose.msra.mxu0 %v3428
    %3462 = vmatprep.subr.mxu0 0.0
    %3463 = vmatpush2.xpose.msra.mxu0 0.0
    %3464 = vmatprep.subr.mxu0 0.0
    %3465 = vmatpush2.xpose.msra.mxu0 0.0
    %3466 = vmatprep.subr.mxu0 0.0
    %3467 = vmatpush2.xpose.msra.mxu0 0.0
    %3468 = vmatprep.subr.mxu0 0.0
    %3469 = vmatpush2.xpose.msra.mxu0 0.0
    %3470 = vmatprep.subr.mxu0 0.0
    %3471 = vmatpush2.xpose.msra.mxu0 0.0
    %3472 = vmatprep.subr.mxu0 0.0
    %3473 = vmatpush2.xpose.msra.mxu0 0.0
    %3474 = vmatprep.subr.mxu0 0.0
    %3475 = vmatpush2.xpose.msra.mxu0 0.0
    %3476 = vmatprep.subr.mxu0 0.0
    %3477 = vmatpush2.xpose.msra.mxu0 0.0
    %3478 = vmatprep.subr.mxu0 0.0
    %3479 = vmatpush2.xpose.msra.mxu0 0.0
    %3480 = vmatprep.subr.mxu0 0.0
    %3481 = vmatpush2.xpose.msra.mxu0 0.0
    %3482 = vmatprep.subr.mxu0 0.0
    %3483 = vmatpush2.xpose.msra.mxu0 0.0
    %3484 = vmatprep.subr.mxu0 0.0
    %3485 = vmatpush2.xpose.msra.mxu0 0.0
    %3486 = vmatprep.subr.mxu0 0.0
    %3487 = vmatpush2.xpose.msra.mxu0 0.0
    %3488 = vmatprep.subr.mxu0 0.0
    %3489 = vmatpush2.xpose.msra.mxu0 0.0
    %3490 = vmatprep.subr.mxu0 0.0
    %3491 = vmatpush2.xpose.msra.mxu0 0.0
    %3492 = vmatprep.subr.mxu0 0.0
    %3493 = vmatpush2.xpose.msra.mxu0 0.0
    %3494 = vmatprep.mubr.f32.mxu0 0.0
    %3495 = vmatmul.mubr.f32.gmra.mxu0 %v3426
    %v3496 = vpop.f32.mrf.mxu0
    %v3497 = vadd.f32 0.0, %v3496
    %v3498 = vpop.f32.mrf.mxu0
    %3499 = vdwg.mxu0
    %3500 = vrot.lane.b32.xlu0 %v206, 112
    %v3501 = vpop.permute.xlu0 %3500
    %3502 = vrot.lane.b32.xlu0 %v188, 80
    %v3503 = vpop.permute.xlu0 %3502
    %v3504 = vsel %vm212, %v3501, 0
    %v3506 = vsel %vm212, %v3503, 0
    %3508 = vmatprep.subr.mxu0 0.0
    %3509 = vmatpush1.xpose.msra.mxu0 0.0
    %3510 = vmatprep.subr.mxu0 0.0
    %3511 = vmatpush1.xpose.msra.mxu0 0.0
    %3512 = vmatprep.subr.mxu0 0.0
    %3513 = vmatpush1.xpose.msra.mxu0 0.0
    %3514 = vmatprep.subr.mxu0 0.0
    %3515 = vmatpush1.xpose.msra.mxu0 0.0
    %3516 = vmatprep.subr.mxu0 0.0
    %3517 = vmatpush1.xpose.msra.mxu0 0.0
    %3518 = vmatprep.subr.mxu0 0.0
    %3519 = vmatpush1.xpose.msra.mxu0 0.0
    %3520 = vmatprep.subr.mxu0 0.0
    %3521 = vmatpush1.xpose.msra.mxu0 0.0
    %3522 = vmatprep.subr.mxu0 0.0
    %3523 = vmatpush1.xpose.msra.mxu0 0.0
    %3524 = vmatprep.subr.mxu0 0.0
    %3525 = vmatpush1.xpose.msra.mxu0 0.0
    %3526 = vmatprep.subr.mxu0 0.0
    %3527 = vmatpush1.xpose.msra.mxu0 0.0
    %3528 = vmatprep.subr.mxu0 0.0
    %3529 = vmatpush1.xpose.msra.mxu0 0.0
    %3530 = vmatprep.subr.mxu0 0.0
    %3531 = vmatpush1.xpose.msra.mxu0 0.0
    %3532 = vmatprep.subr.mxu0 0.0
    %3533 = vmatpush1.xpose.msra.mxu0 0.0
    %3534 = vmatprep.subr.mxu0 0.0
    %3535 = vmatpush1.xpose.msra.mxu0 0.0
    %3536 = vmatprep.subr.mxu0 0.0
    %3537 = vmatpush1.xpose.msra.mxu0 0.0
    %3538 = vmatprep.subr.mxu0 0.0
    %3539 = vmatpush1.xpose.msra.mxu0 %v3506
    %3540 = vmatprep.subr.mxu0 0.0
    %3541 = vmatpush2.xpose.msra.mxu0 0.0
    %3542 = vmatprep.subr.mxu0 0.0
    %3543 = vmatpush2.xpose.msra.mxu0 0.0
    %3544 = vmatprep.subr.mxu0 0.0
    %3545 = vmatpush2.xpose.msra.mxu0 0.0
    %3546 = vmatprep.subr.mxu0 0.0
    %3547 = vmatpush2.xpose.msra.mxu0 0.0
    %3548 = vmatprep.subr.mxu0 0.0
    %3549 = vmatpush2.xpose.msra.mxu0 0.0
    %3550 = vmatprep.subr.mxu0 0.0
    %3551 = vmatpush2.xpose.msra.mxu0 0.0
    %3552 = vmatprep.subr.mxu0 0.0
    %3553 = vmatpush2.xpose.msra.mxu0 0.0
    %3554 = vmatprep.subr.mxu0 0.0
    %3555 = vmatpush2.xpose.msra.mxu0 0.0
    %3556 = vmatprep.subr.mxu0 0.0
    %3557 = vmatpush2.xpose.msra.mxu0 0.0
    %3558 = vmatprep.subr.mxu0 0.0
    %3559 = vmatpush2.xpose.msra.mxu0 0.0
    %3560 = vmatprep.subr.mxu0 0.0
    %3561 = vmatpush2.xpose.msra.mxu0 0.0
    %3562 = vmatprep.subr.mxu0 0.0
    %3563 = vmatpush2.xpose.msra.mxu0 0.0
    %3564 = vmatprep.subr.mxu0 0.0
    %3565 = vmatpush2.xpose.msra.mxu0 0.0
    %3566 = vmatprep.subr.mxu0 0.0
    %3567 = vmatpush2.xpose.msra.mxu0 0.0
    %3568 = vmatprep.subr.mxu0 0.0
    %3569 = vmatpush2.xpose.msra.mxu0 0.0
    %3570 = vmatprep.subr.mxu0 0.0
    %3571 = vmatpush2.xpose.msra.mxu0 0.0
    %3572 = vmatprep.mubr.f32.mxu0 0.0
    %3573 = vmatmul.mubr.f32.gmra.mxu0 %v3504
    %v3574 = vpop.f32.mrf.mxu0
    %v3575 = vadd.f32 0.0, %v3574
    %v3576 = vpop.f32.mrf.mxu0
    %3577 = vdwg.mxu0
    %3578 = vrot.lane.b32.xlu0 %v207, 112
    %v3579 = vpop.permute.xlu0 %3578
    %3580 = vrot.lane.b32.xlu0 %v193, 80
    %v3581 = vpop.permute.xlu0 %3580
    %v3582 = vsel %vm212, %v3579, 0
    %v3584 = vsel %vm212, %v3581, 0
    %3586 = vmatprep.subr.mxu0 0.0
    %3587 = vmatpush1.xpose.msra.mxu0 0.0
    %3588 = vmatprep.subr.mxu0 0.0
    %3589 = vmatpush1.xpose.msra.mxu0 0.0
    %3590 = vmatprep.subr.mxu0 0.0
    %3591 = vmatpush1.xpose.msra.mxu0 0.0
    %3592 = vmatprep.subr.mxu0 0.0
    %3593 = vmatpush1.xpose.msra.mxu0 0.0
    %3594 = vmatprep.subr.mxu0 0.0
    %3595 = vmatpush1.xpose.msra.mxu0 0.0
    %3596 = vmatprep.subr.mxu0 0.0
    %3597 = vmatpush1.xpose.msra.mxu0 0.0
    %3598 = vmatprep.subr.mxu0 0.0
    %3599 = vmatpush1.xpose.msra.mxu0 0.0
    %3600 = vmatprep.subr.mxu0 0.0
    %3601 = vmatpush1.xpose.msra.mxu0 0.0
    %3602 = vmatprep.subr.mxu0 0.0
    %3603 = vmatpush1.xpose.msra.mxu0 0.0
    %3604 = vmatprep.subr.mxu0 0.0
    %3605 = vmatpush1.xpose.msra.mxu0 0.0
    %3606 = vmatprep.subr.mxu0 0.0
    %3607 = vmatpush1.xpose.msra.mxu0 0.0
    %3608 = vmatprep.subr.mxu0 0.0
    %3609 = vmatpush1.xpose.msra.mxu0 0.0
    %3610 = vmatprep.subr.mxu0 0.0
    %3611 = vmatpush1.xpose.msra.mxu0 0.0
    %3612 = vmatprep.subr.mxu0 0.0
    %3613 = vmatpush1.xpose.msra.mxu0 0.0
    %3614 = vmatprep.subr.mxu0 0.0
    %3615 = vmatpush1.xpose.msra.mxu0 0.0
    %3616 = vmatprep.subr.mxu0 0.0
    %3617 = vmatpush1.xpose.msra.mxu0 %v3584
    %3618 = vmatprep.subr.mxu0 0.0
    %3619 = vmatpush2.xpose.msra.mxu0 0.0
    %3620 = vmatprep.subr.mxu0 0.0
    %3621 = vmatpush2.xpose.msra.mxu0 0.0
    %3622 = vmatprep.subr.mxu0 0.0
    %3623 = vmatpush2.xpose.msra.mxu0 0.0
    %3624 = vmatprep.subr.mxu0 0.0
    %3625 = vmatpush2.xpose.msra.mxu0 0.0
    %3626 = vmatprep.subr.mxu0 0.0
    %3627 = vmatpush2.xpose.msra.mxu0 0.0
    %3628 = vmatprep.subr.mxu0 0.0
    %3629 = vmatpush2.xpose.msra.mxu0 0.0
    %3630 = vmatprep.subr.mxu0 0.0
    %3631 = vmatpush2.xpose.msra.mxu0 0.0
    %3632 = vmatprep.subr.mxu0 0.0
    %3633 = vmatpush2.xpose.msra.mxu0 0.0
    %3634 = vmatprep.subr.mxu0 0.0
    %3635 = vmatpush2.xpose.msra.mxu0 0.0
    %3636 = vmatprep.subr.mxu0 0.0
    %3637 = vmatpush2.xpose.msra.mxu0 0.0
    %3638 = vmatprep.subr.mxu0 0.0
    %3639 = vmatpush2.xpose.msra.mxu0 0.0
    %3640 = vmatprep.subr.mxu0 0.0
    %3641 = vmatpush2.xpose.msra.mxu0 0.0
    %3642 = vmatprep.subr.mxu0 0.0
    %3643 = vmatpush2.xpose.msra.mxu0 0.0
    %3644 = vmatprep.subr.mxu0 0.0
    %3645 = vmatpush2.xpose.msra.mxu0 0.0
    %3646 = vmatprep.subr.mxu0 0.0
    %3647 = vmatpush2.xpose.msra.mxu0 0.0
    %3648 = vmatprep.subr.mxu0 0.0
    %3649 = vmatpush2.xpose.msra.mxu0 0.0
    %3650 = vmatprep.mubr.f32.mxu0 0.0
    %3651 = vmatmul.mubr.f32.gmra.mxu0 %v3582
    %v3652 = vpop.f32.mrf.mxu0
    %v3653 = vadd.f32 0.0, %v3652
    %v3654 = vpop.f32.mrf.mxu0
    %3655 = vdwg.mxu0
    %3656 = vrot.lane.b32.xlu0 %v208, 112
    %v3657 = vpop.permute.xlu0 %3656
    %3658 = vrot.lane.b32.xlu0 %v198, 80
    %v3659 = vpop.permute.xlu0 %3658
    %v3660 = vsel %vm212, %v3657, 0
    %v3662 = vsel %vm212, %v3659, 0
    %3664 = vmatprep.subr.mxu0 0.0
    %3665 = vmatpush1.xpose.msra.mxu0 0.0
    %3666 = vmatprep.subr.mxu0 0.0
    %3667 = vmatpush1.xpose.msra.mxu0 0.0
    %3668 = vmatprep.subr.mxu0 0.0
    %3669 = vmatpush1.xpose.msra.mxu0 0.0
    %3670 = vmatprep.subr.mxu0 0.0
    %3671 = vmatpush1.xpose.msra.mxu0 0.0
    %3672 = vmatprep.subr.mxu0 0.0
    %3673 = vmatpush1.xpose.msra.mxu0 0.0
    %3674 = vmatprep.subr.mxu0 0.0
    %3675 = vmatpush1.xpose.msra.mxu0 0.0
    %3676 = vmatprep.subr.mxu0 0.0
    %3677 = vmatpush1.xpose.msra.mxu0 0.0
    %3678 = vmatprep.subr.mxu0 0.0
    %3679 = vmatpush1.xpose.msra.mxu0 0.0
    %3680 = vmatprep.subr.mxu0 0.0
    %3681 = vmatpush1.xpose.msra.mxu0 0.0
    %3682 = vmatprep.subr.mxu0 0.0
    %3683 = vmatpush1.xpose.msra.mxu0 0.0
    %3684 = vmatprep.subr.mxu0 0.0
    %3685 = vmatpush1.xpose.msra.mxu0 0.0
    %3686 = vmatprep.subr.mxu0 0.0
    %3687 = vmatpush1.xpose.msra.mxu0 0.0
    %3688 = vmatprep.subr.mxu0 0.0
    %3689 = vmatpush1.xpose.msra.mxu0 0.0
    %3690 = vmatprep.subr.mxu0 0.0
    %3691 = vmatpush1.xpose.msra.mxu0 0.0
    %3692 = vmatprep.subr.mxu0 0.0
    %3693 = vmatpush1.xpose.msra.mxu0 0.0
    %3694 = vmatprep.subr.mxu0 0.0
    %3695 = vmatpush1.xpose.msra.mxu0 %v3662
    %3696 = vmatprep.subr.mxu0 0.0
    %3697 = vmatpush2.xpose.msra.mxu0 0.0
    %3698 = vmatprep.subr.mxu0 0.0
    %3699 = vmatpush2.xpose.msra.mxu0 0.0
    %3700 = vmatprep.subr.mxu0 0.0
    %3701 = vmatpush2.xpose.msra.mxu0 0.0
    %3702 = vmatprep.subr.mxu0 0.0
    %3703 = vmatpush2.xpose.msra.mxu0 0.0
    %3704 = vmatprep.subr.mxu0 0.0
    %3705 = vmatpush2.xpose.msra.mxu0 0.0
    %3706 = vmatprep.subr.mxu0 0.0
    %3707 = vmatpush2.xpose.msra.mxu0 0.0
    %3708 = vmatprep.subr.mxu0 0.0
    %3709 = vmatpush2.xpose.msra.mxu0 0.0
    %3710 = vmatprep.subr.mxu0 0.0
    %3711 = vmatpush2.xpose.msra.mxu0 0.0
    %3712 = vmatprep.subr.mxu0 0.0
    %3713 = vmatpush2.xpose.msra.mxu0 0.0
    %3714 = vmatprep.subr.mxu0 0.0
    %3715 = vmatpush2.xpose.msra.mxu0 0.0
    %3716 = vmatprep.subr.mxu0 0.0
    %3717 = vmatpush2.xpose.msra.mxu0 0.0
    %3718 = vmatprep.subr.mxu0 0.0
    %3719 = vmatpush2.xpose.msra.mxu0 0.0
    %3720 = vmatprep.subr.mxu0 0.0
    %3721 = vmatpush2.xpose.msra.mxu0 0.0
    %3722 = vmatprep.subr.mxu0 0.0
    %3723 = vmatpush2.xpose.msra.mxu0 0.0
    %3724 = vmatprep.subr.mxu0 0.0
    %3725 = vmatpush2.xpose.msra.mxu0 0.0
    %3726 = vmatprep.subr.mxu0 0.0
    %3727 = vmatpush2.xpose.msra.mxu0 0.0
    %3728 = vmatprep.mubr.f32.mxu0 0.0
    %3729 = vmatmul.mubr.f32.gmra.mxu0 %v3660
    %v3730 = vpop.f32.mrf.mxu0
    %v3731 = vadd.f32 0.0, %v3730
    %v3732 = vpop.f32.mrf.mxu0
    %3733 = vdwg.mxu0
    %v3734 = vsel %vm212, %v3185, -inf
    %3735 = vmax.xlane.f32.xlu0 %v3734
    %v3736 = vpop.xlane.xlu0 %3735
    %v3737 = vsel %vm212, %v3263, -inf
    %3738 = vmax.xlane.f32.xlu0 %v3737
    %v3739 = vpop.xlane.xlu0 %3738
    %v3740 = vsel %vm212, %v3341, -inf
    %3741 = vmax.xlane.f32.xlu0 %v3740
    %v3742 = vpop.xlane.xlu0 %3741
    %v3743 = vsel %vm212, %v3419, -inf
    %3744 = vmax.xlane.f32.xlu0 %v3743
    %v3745 = vpop.xlane.xlu0 %3744
    %v3746 = vsel %vm212, %v3497, -inf
    %3747 = vmax.xlane.f32.xlu0 %v3746
    %v3748 = vpop.xlane.xlu0 %3747
    %v3749 = vsel %vm212, %v3575, -inf
    %3750 = vmax.xlane.f32.xlu0 %v3749
    %v3751 = vpop.xlane.xlu0 %3750
    %v3752 = vsel %vm212, %v3653, -inf
    %3753 = vmax.xlane.f32.xlu0 %v3752
    %v3754 = vpop.xlane.xlu0 %3753
    %v3755 = vsel %vm212, %v3731, -inf
    %3756 = vmax.xlane.f32.xlu0 %v3755
    %v3757 = vpop.xlane.xlu0 %3756
    %v3758 = vsub.f32 %v3185, %v3736
    %v3759 = vsub.f32 %v3263, %v3739
    %v3760 = vsub.f32 %v3341, %v3742
    %v3761 = vsub.f32 %v3419, %v3745
    %v3762 = vsub.f32 %v3497, %v3748
    %v3763 = vsub.f32 %v3575, %v3751
    %v3764 = vsub.f32 %v3653, %v3754
    %v3765 = vsub.f32 %v3731, %v3757
    %v3766 = vmul.f32 %v3758, 1.442695
    %v3767 = vpow.pop %v3766
    %v3768 = vmul.f32 %v3759, 1.442695
    %v3769 = vpow.pop %v3768
    %v3770 = vmul.f32 %v3760, 1.442695
    %v3771 = vpow.pop %v3770
    %v3772 = vmul.f32 %v3761, 1.442695
    %v3773 = vpow.pop %v3772
    %v3774 = vmul.f32 %v3762, 1.442695
    %v3775 = vpow.pop %v3774
    %v3776 = vmul.f32 %v3763, 1.442695
    %v3777 = vpow.pop %v3776
    %v3778 = vmul.f32 %v3764, 1.442695
    %v3779 = vpow.pop %v3778
    %v3780 = vmul.f32 %v3765, 1.442695
    %v3781 = vpow.pop %v3780
    %v3782 = vsel %vm212, %v3767, 0.0
    %3783 = vadd.xlane.f32.xlu0 %v3782
    %v3784 = vpop.xlane.xlu0 %3783
    %v3785 = vsel %vm212, %v3769, 0.0
    %3786 = vadd.xlane.f32.xlu0 %v3785
    %v3787 = vpop.xlane.xlu0 %3786
    %v3788 = vsel %vm212, %v3771, 0.0
    %3789 = vadd.xlane.f32.xlu0 %v3788
    %v3790 = vpop.xlane.xlu0 %3789
    %v3791 = vsel %vm212, %v3773, 0.0
    %3792 = vadd.xlane.f32.xlu0 %v3791
    %v3793 = vpop.xlane.xlu0 %3792
    %v3794 = vsel %vm212, %v3775, 0.0
    %3795 = vadd.xlane.f32.xlu0 %v3794
    %v3796 = vpop.xlane.xlu0 %3795
    %v3797 = vsel %vm212, %v3777, 0.0
    %3798 = vadd.xlane.f32.xlu0 %v3797
    %v3799 = vpop.xlane.xlu0 %3798
    %v3800 = vsel %vm212, %v3779, 0.0
    %3801 = vadd.xlane.f32.xlu0 %v3800
    %v3802 = vpop.xlane.xlu0 %3801
    %v3803 = vsel %vm212, %v3781, 0.0
    %3804 = vadd.xlane.f32.xlu0 %v3803
    %v3805 = vpop.xlane.xlu0 %3804
    %3806 = vrot.lane.b32.xlu0 %v163, 48
    %v3807 = vpop.permute.xlu0 %3806
    %v3810 = vsel %vm212, %v3767, 0
    %3812 = vmatprep.subr.mxu0 0.0
    %3813 = vmatpush1.msra.mxu0 0.0
    %3814 = vmatprep.subr.mxu0 0.0
    %3815 = vmatpush1.msra.mxu0 0.0
    %3816 = vmatprep.subr.mxu0 0.0
    %3817 = vmatpush1.msra.mxu0 0.0
    %3818 = vmatprep.subr.mxu0 0.0
    %3819 = vmatpush1.msra.mxu0 0.0
    %3820 = vmatprep.subr.mxu0 0.0
    %3821 = vmatpush1.msra.mxu0 0.0
    %3822 = vmatprep.subr.mxu0 0.0
    %3823 = vmatpush1.msra.mxu0 0.0
    %3824 = vmatprep.subr.mxu0 0.0
    %3825 = vmatpush1.msra.mxu0 0.0
    %3826 = vmatprep.subr.mxu0 0.0
    %3827 = vmatpush1.msra.mxu0 0.0
    %3828 = vmatprep.subr.mxu0 0.0
    %3829 = vmatpush1.msra.mxu0 0.0
    %3830 = vmatprep.subr.mxu0 0.0
    %3831 = vmatpush1.msra.mxu0 0.0
    %3832 = vmatprep.subr.mxu0 0.0
    %3833 = vmatpush1.msra.mxu0 0.0
    %3834 = vmatprep.subr.mxu0 0.0
    %3835 = vmatpush1.msra.mxu0 0.0
    %3836 = vmatprep.subr.mxu0 0.0
    %3837 = vmatpush1.msra.mxu0 0.0
    %3838 = vmatprep.subr.mxu0 0.0
    %3839 = vmatpush1.msra.mxu0 0.0
    %3840 = vmatprep.subr.mxu0 0.0
    %3841 = vmatpush1.msra.mxu0 0.0
    %3842 = vmatprep.subr.mxu0 0.0
    %3843 = vmatpush1.msra.mxu0 %v3807
    %3844 = vmatprep.subr.mxu0 0.0
    %3845 = vmatpush2.msra.mxu0 0.0
    %3846 = vmatprep.subr.mxu0 0.0
    %3847 = vmatpush2.msra.mxu0 0.0
    %3848 = vmatprep.subr.mxu0 0.0
    %3849 = vmatpush2.msra.mxu0 0.0
    %3850 = vmatprep.subr.mxu0 0.0
    %3851 = vmatpush2.msra.mxu0 0.0
    %3852 = vmatprep.subr.mxu0 0.0
    %3853 = vmatpush2.msra.mxu0 0.0
    %3854 = vmatprep.subr.mxu0 0.0
    %3855 = vmatpush2.msra.mxu0 0.0
    %3856 = vmatprep.subr.mxu0 0.0
    %3857 = vmatpush2.msra.mxu0 0.0
    %3858 = vmatprep.subr.mxu0 0.0
    %3859 = vmatpush2.msra.mxu0 0.0
    %3860 = vmatprep.subr.mxu0 0.0
    %3861 = vmatpush2.msra.mxu0 0.0
    %3862 = vmatprep.subr.mxu0 0.0
    %3863 = vmatpush2.msra.mxu0 0.0
    %3864 = vmatprep.subr.mxu0 0.0
    %3865 = vmatpush2.msra.mxu0 0.0
    %3866 = vmatprep.subr.mxu0 0.0
    %3867 = vmatpush2.msra.mxu0 0.0
    %3868 = vmatprep.subr.mxu0 0.0
    %3869 = vmatpush2.msra.mxu0 0.0
    %3870 = vmatprep.subr.mxu0 0.0
    %3871 = vmatpush2.msra.mxu0 0.0
    %3872 = vmatprep.subr.mxu0 0.0
    %3873 = vmatpush2.msra.mxu0 0.0
    %3874 = vmatprep.subr.mxu0 0.0
    %3875 = vmatpush2.msra.mxu0 0.0
    %3876 = vmatprep.mubr.f32.mxu0 0.0
    %3877 = vmatmul.mubr.f32.gmra.mxu0 %v3810
    %v3878 = vpop.f32.mrf.mxu0
    %v3879 = vadd.f32 0.0, %v3878
    %v3880 = vpop.f32.mrf.mxu0
    %3881 = vdwg.mxu0
    %3882 = vrot.lane.b32.xlu0 %v168, 48
    %v3883 = vpop.permute.xlu0 %3882
    %v3886 = vsel %vm212, %v3769, 0
    %3888 = vmatprep.subr.mxu0 0.0
    %3889 = vmatpush1.msra.mxu0 0.0
    %3890 = vmatprep.subr.mxu0 0.0
    %3891 = vmatpush1.msra.mxu0 0.0
    %3892 = vmatprep.subr.mxu0 0.0
    %3893 = vmatpush1.msra.mxu0 0.0
    %3894 = vmatprep.subr.mxu0 0.0
    %3895 = vmatpush1.msra.mxu0 0.0
    %3896 = vmatprep.subr.mxu0 0.0
    %3897 = vmatpush1.msra.mxu0 0.0
    %3898 = vmatprep.subr.mxu0 0.0
    %3899 = vmatpush1.msra.mxu0 0.0
    %3900 = vmatprep.subr.mxu0 0.0
    %3901 = vmatpush1.msra.mxu0 0.0
    %3902 = vmatprep.subr.mxu0 0.0
    %3903 = vmatpush1.msra.mxu0 0.0
    %3904 = vmatprep.subr.mxu0 0.0
    %3905 = vmatpush1.msra.mxu0 0.0
    %3906 = vmatprep.subr.mxu0 0.0
    %3907 = vmatpush1.msra.mxu0 0.0
    %3908 = vmatprep.subr.mxu0 0.0
    %3909 = vmatpush1.msra.mxu0 0.0
    %3910 = vmatprep.subr.mxu0 0.0
    %3911 = vmatpush1.msra.mxu0 0.0
    %3912 = vmatprep.subr.mxu0 0.0
    %3913 = vmatpush1.msra.mxu0 0.0
    %3914 = vmatprep.subr.mxu0 0.0
    %3915 = vmatpush1.msra.mxu0 0.0
    %3916 = vmatprep.subr.mxu0 0.0
    %3917 = vmatpush1.msra.mxu0 0.0
    %3918 = vmatprep.subr.mxu0 0.0
    %3919 = vmatpush1.msra.mxu0 %v3883
    %3920 = vmatprep.subr.mxu0 0.0
    %3921 = vmatpush2.msra.mxu0 0.0
    %3922 = vmatprep.subr.mxu0 0.0
    %3923 = vmatpush2.msra.mxu0 0.0
    %3924 = vmatprep.subr.mxu0 0.0
    %3925 = vmatpush2.msra.mxu0 0.0
    %3926 = vmatprep.subr.mxu0 0.0
    %3927 = vmatpush2.msra.mxu0 0.0
    %3928 = vmatprep.subr.mxu0 0.0
    %3929 = vmatpush2.msra.mxu0 0.0
    %3930 = vmatprep.subr.mxu0 0.0
    %3931 = vmatpush2.msra.mxu0 0.0
    %3932 = vmatprep.subr.mxu0 0.0
    %3933 = vmatpush2.msra.mxu0 0.0
    %3934 = vmatprep.subr.mxu0 0.0
    %3935 = vmatpush2.msra.mxu0 0.0
    %3936 = vmatprep.subr.mxu0 0.0
    %3937 = vmatpush2.msra.mxu0 0.0
    %3938 = vmatprep.subr.mxu0 0.0
    %3939 = vmatpush2.msra.mxu0 0.0
    %3940 = vmatprep.subr.mxu0 0.0
    %3941 = vmatpush2.msra.mxu0 0.0
    %3942 = vmatprep.subr.mxu0 0.0
    %3943 = vmatpush2.msra.mxu0 0.0
    %3944 = vmatprep.subr.mxu0 0.0
    %3945 = vmatpush2.msra.mxu0 0.0
    %3946 = vmatprep.subr.mxu0 0.0
    %3947 = vmatpush2.msra.mxu0 0.0
    %3948 = vmatprep.subr.mxu0 0.0
    %3949 = vmatpush2.msra.mxu0 0.0
    %3950 = vmatprep.subr.mxu0 0.0
    %3951 = vmatpush2.msra.mxu0 0.0
    %3952 = vmatprep.mubr.f32.mxu0 0.0
    %3953 = vmatmul.mubr.f32.gmra.mxu0 %v3886
    %v3954 = vpop.f32.mrf.mxu0
    %v3955 = vadd.f32 0.0, %v3954
    %v3956 = vpop.f32.mrf.mxu0
    %3957 = vdwg.mxu0
    %3958 = vrot.lane.b32.xlu0 %v173, 48
    %v3959 = vpop.permute.xlu0 %3958
    %v3962 = vsel %vm212, %v3771, 0
    %3964 = vmatprep.subr.mxu0 0.0
    %3965 = vmatpush1.msra.mxu0 0.0
    %3966 = vmatprep.subr.mxu0 0.0
    %3967 = vmatpush1.msra.mxu0 0.0
    %3968 = vmatprep.subr.mxu0 0.0
    %3969 = vmatpush1.msra.mxu0 0.0
    %3970 = vmatprep.subr.mxu0 0.0
    %3971 = vmatpush1.msra.mxu0 0.0
    %3972 = vmatprep.subr.mxu0 0.0
    %3973 = vmatpush1.msra.mxu0 0.0
    %3974 = vmatprep.subr.mxu0 0.0
    %3975 = vmatpush1.msra.mxu0 0.0
    %3976 = vmatprep.subr.mxu0 0.0
    %3977 = vmatpush1.msra.mxu0 0.0
    %3978 = vmatprep.subr.mxu0 0.0
    %3979 = vmatpush1.msra.mxu0 0.0
    %3980 = vmatprep.subr.mxu0 0.0
    %3981 = vmatpush1.msra.mxu0 0.0
    %3982 = vmatprep.subr.mxu0 0.0
    %3983 = vmatpush1.msra.mxu0 0.0
    %3984 = vmatprep.subr.mxu0 0.0
    %3985 = vmatpush1.msra.mxu0 0.0
    %3986 = vmatprep.subr.mxu0 0.0
    %3987 = vmatpush1.msra.mxu0 0.0
    %3988 = vmatprep.subr.mxu0 0.0
    %3989 = vmatpush1.msra.mxu0 0.0
    %3990 = vmatprep.subr.mxu0 0.0
    %3991 = vmatpush1.msra.mxu0 0.0
    %3992 = vmatprep.subr.mxu0 0.0
    %3993 = vmatpush1.msra.mxu0 0.0
    %3994 = vmatprep.subr.mxu0 0.0
    %3995 = vmatpush1.msra.mxu0 %v3959
    %3996 = vmatprep.subr.mxu0 0.0
    %3997 = vmatpush2.msra.mxu0 0.0
    %3998 = vmatprep.subr.mxu0 0.0
    %3999 = vmatpush2.msra.mxu0 0.0
    %4000 = vmatprep.subr.mxu0 0.0
    %4001 = vmatpush2.msra.mxu0 0.0
    %4002 = vmatprep.subr.mxu0 0.0
    %4003 = vmatpush2.msra.mxu0 0.0
    %4004 = vmatprep.subr.mxu0 0.0
    %4005 = vmatpush2.msra.mxu0 0.0
    %4006 = vmatprep.subr.mxu0 0.0
    %4007 = vmatpush2.msra.mxu0 0.0
    %4008 = vmatprep.subr.mxu0 0.0
    %4009 = vmatpush2.msra.mxu0 0.0
    %4010 = vmatprep.subr.mxu0 0.0
    %4011 = vmatpush2.msra.mxu0 0.0
    %4012 = vmatprep.subr.mxu0 0.0
    %4013 = vmatpush2.msra.mxu0 0.0
    %4014 = vmatprep.subr.mxu0 0.0
    %4015 = vmatpush2.msra.mxu0 0.0
    %4016 = vmatprep.subr.mxu0 0.0
    %4017 = vmatpush2.msra.mxu0 0.0
    %4018 = vmatprep.subr.mxu0 0.0
    %4019 = vmatpush2.msra.mxu0 0.0
    %4020 = vmatprep.subr.mxu0 0.0
    %4021 = vmatpush2.msra.mxu0 0.0
    %4022 = vmatprep.subr.mxu0 0.0
    %4023 = vmatpush2.msra.mxu0 0.0
    %4024 = vmatprep.subr.mxu0 0.0
    %4025 = vmatpush2.msra.mxu0 0.0
    %4026 = vmatprep.subr.mxu0 0.0
    %4027 = vmatpush2.msra.mxu0 0.0
    %4028 = vmatprep.mubr.f32.mxu0 0.0
    %4029 = vmatmul.mubr.f32.gmra.mxu0 %v3962
    %v4030 = vpop.f32.mrf.mxu0
    %v4031 = vadd.f32 0.0, %v4030
    %v4032 = vpop.f32.mrf.mxu0
    %4033 = vdwg.mxu0
    %4034 = vrot.lane.b32.xlu0 %v178, 48
    %v4035 = vpop.permute.xlu0 %4034
    %v4038 = vsel %vm212, %v3773, 0
    %4040 = vmatprep.subr.mxu0 0.0
    %4041 = vmatpush1.msra.mxu0 0.0
    %4042 = vmatprep.subr.mxu0 0.0
    %4043 = vmatpush1.msra.mxu0 0.0
    %4044 = vmatprep.subr.mxu0 0.0
    %4045 = vmatpush1.msra.mxu0 0.0
    %4046 = vmatprep.subr.mxu0 0.0
    %4047 = vmatpush1.msra.mxu0 0.0
    %4048 = vmatprep.subr.mxu0 0.0
    %4049 = vmatpush1.msra.mxu0 0.0
    %4050 = vmatprep.subr.mxu0 0.0
    %4051 = vmatpush1.msra.mxu0 0.0
    %4052 = vmatprep.subr.mxu0 0.0
    %4053 = vmatpush1.msra.mxu0 0.0
    %4054 = vmatprep.subr.mxu0 0.0
    %4055 = vmatpush1.msra.mxu0 0.0
    %4056 = vmatprep.subr.mxu0 0.0
    %4057 = vmatpush1.msra.mxu0 0.0
    %4058 = vmatprep.subr.mxu0 0.0
    %4059 = vmatpush1.msra.mxu0 0.0
    %4060 = vmatprep.subr.mxu0 0.0
    %4061 = vmatpush1.msra.mxu0 0.0
    %4062 = vmatprep.subr.mxu0 0.0
    %4063 = vmatpush1.msra.mxu0 0.0
    %4064 = vmatprep.subr.mxu0 0.0
    %4065 = vmatpush1.msra.mxu0 0.0
    %4066 = vmatprep.subr.mxu0 0.0
    %4067 = vmatpush1.msra.mxu0 0.0
    %4068 = vmatprep.subr.mxu0 0.0
    %4069 = vmatpush1.msra.mxu0 0.0
    %4070 = vmatprep.subr.mxu0 0.0
    %4071 = vmatpush1.msra.mxu0 %v4035
    %4072 = vmatprep.subr.mxu0 0.0
    %4073 = vmatpush2.msra.mxu0 0.0
    %4074 = vmatprep.subr.mxu0 0.0
    %4075 = vmatpush2.msra.mxu0 0.0
    %4076 = vmatprep.subr.mxu0 0.0
    %4077 = vmatpush2.msra.mxu0 0.0
    %4078 = vmatprep.subr.mxu0 0.0
    %4079 = vmatpush2.msra.mxu0 0.0
    %4080 = vmatprep.subr.mxu0 0.0
    %4081 = vmatpush2.msra.mxu0 0.0
    %4082 = vmatprep.subr.mxu0 0.0
    %4083 = vmatpush2.msra.mxu0 0.0
    %4084 = vmatprep.subr.mxu0 0.0
    %4085 = vmatpush2.msra.mxu0 0.0
    %4086 = vmatprep.subr.mxu0 0.0
    %4087 = vmatpush2.msra.mxu0 0.0
    %4088 = vmatprep.subr.mxu0 0.0
    %4089 = vmatpush2.msra.mxu0 0.0
    %4090 = vmatprep.subr.mxu0 0.0
    %4091 = vmatpush2.msra.mxu0 0.0
    %4092 = vmatprep.subr.mxu0 0.0
    %4093 = vmatpush2.msra.mxu0 0.0
    %4094 = vmatprep.subr.mxu0 0.0
    %4095 = vmatpush2.msra.mxu0 0.0
    %4096 = vmatprep.subr.mxu0 0.0
    %4097 = vmatpush2.msra.mxu0 0.0
    %4098 = vmatprep.subr.mxu0 0.0
    %4099 = vmatpush2.msra.mxu0 0.0
    %4100 = vmatprep.subr.mxu0 0.0
    %4101 = vmatpush2.msra.mxu0 0.0
    %4102 = vmatprep.subr.mxu0 0.0
    %4103 = vmatpush2.msra.mxu0 0.0
    %4104 = vmatprep.mubr.f32.mxu0 0.0
    %4105 = vmatmul.mubr.f32.gmra.mxu0 %v4038
    %v4106 = vpop.f32.mrf.mxu0
    %v4107 = vadd.f32 0.0, %v4106
    %v4108 = vpop.f32.mrf.mxu0
    %4109 = vdwg.mxu0
    %4110 = vrot.lane.b32.xlu0 %v183, 48
    %v4111 = vpop.permute.xlu0 %4110
    %v4114 = vsel %vm212, %v3775, 0
    %4116 = vmatprep.subr.mxu0 0.0
    %4117 = vmatpush1.msra.mxu0 0.0
    %4118 = vmatprep.subr.mxu0 0.0
    %4119 = vmatpush1.msra.mxu0 0.0
    %4120 = vmatprep.subr.mxu0 0.0
    %4121 = vmatpush1.msra.mxu0 0.0
    %4122 = vmatprep.subr.mxu0 0.0
    %4123 = vmatpush1.msra.mxu0 0.0
    %4124 = vmatprep.subr.mxu0 0.0
    %4125 = vmatpush1.msra.mxu0 0.0
    %4126 = vmatprep.subr.mxu0 0.0
    %4127 = vmatpush1.msra.mxu0 0.0
    %4128 = vmatprep.subr.mxu0 0.0
    %4129 = vmatpush1.msra.mxu0 0.0
    %4130 = vmatprep.subr.mxu0 0.0
    %4131 = vmatpush1.msra.mxu0 0.0
    %4132 = vmatprep.subr.mxu0 0.0
    %4133 = vmatpush1.msra.mxu0 0.0
    %4134 = vmatprep.subr.mxu0 0.0
    %4135 = vmatpush1.msra.mxu0 0.0
    %4136 = vmatprep.subr.mxu0 0.0
    %4137 = vmatpush1.msra.mxu0 0.0
    %4138 = vmatprep.subr.mxu0 0.0
    %4139 = vmatpush1.msra.mxu0 0.0
    %4140 = vmatprep.subr.mxu0 0.0
    %4141 = vmatpush1.msra.mxu0 0.0
    %4142 = vmatprep.subr.mxu0 0.0
    %4143 = vmatpush1.msra.mxu0 0.0
    %4144 = vmatprep.subr.mxu0 0.0
    %4145 = vmatpush1.msra.mxu0 0.0
    %4146 = vmatprep.subr.mxu0 0.0
    %4147 = vmatpush1.msra.mxu0 %v4111
    %4148 = vmatprep.subr.mxu0 0.0
    %4149 = vmatpush2.msra.mxu0 0.0
    %4150 = vmatprep.subr.mxu0 0.0
    %4151 = vmatpush2.msra.mxu0 0.0
    %4152 = vmatprep.subr.mxu0 0.0
    %4153 = vmatpush2.msra.mxu0 0.0
    %4154 = vmatprep.subr.mxu0 0.0
    %4155 = vmatpush2.msra.mxu0 0.0
    %4156 = vmatprep.subr.mxu0 0.0
    %4157 = vmatpush2.msra.mxu0 0.0
    %4158 = vmatprep.subr.mxu0 0.0
    %4159 = vmatpush2.msra.mxu0 0.0
    %4160 = vmatprep.subr.mxu0 0.0
    %4161 = vmatpush2.msra.mxu0 0.0
    %4162 = vmatprep.subr.mxu0 0.0
    %4163 = vmatpush2.msra.mxu0 0.0
    %4164 = vmatprep.subr.mxu0 0.0
    %4165 = vmatpush2.msra.mxu0 0.0
    %4166 = vmatprep.subr.mxu0 0.0
    %4167 = vmatpush2.msra.mxu0 0.0
    %4168 = vmatprep.subr.mxu0 0.0
    %4169 = vmatpush2.msra.mxu0 0.0
    %4170 = vmatprep.subr.mxu0 0.0
    %4171 = vmatpush2.msra.mxu0 0.0
    %4172 = vmatprep.subr.mxu0 0.0
    %4173 = vmatpush2.msra.mxu0 0.0
    %4174 = vmatprep.subr.mxu0 0.0
    %4175 = vmatpush2.msra.mxu0 0.0
    %4176 = vmatprep.subr.mxu0 0.0
    %4177 = vmatpush2.msra.mxu0 0.0
    %4178 = vmatprep.subr.mxu0 0.0
    %4179 = vmatpush2.msra.mxu0 0.0
    %4180 = vmatprep.mubr.f32.mxu0 0.0
    %4181 = vmatmul.mubr.f32.gmra.mxu0 %v4114
    %v4182 = vpop.f32.mrf.mxu0
    %v4183 = vadd.f32 0.0, %v4182
    %v4184 = vpop.f32.mrf.mxu0
    %4185 = vdwg.mxu0
    %4186 = vrot.lane.b32.xlu0 %v188, 48
    %v4187 = vpop.permute.xlu0 %4186
    %v4190 = vsel %vm212, %v3777, 0
    %4192 = vmatprep.subr.mxu0 0.0
    %4193 = vmatpush1.msra.mxu0 0.0
    %4194 = vmatprep.subr.mxu0 0.0
    %4195 = vmatpush1.msra.mxu0 0.0
    %4196 = vmatprep.subr.mxu0 0.0
    %4197 = vmatpush1.msra.mxu0 0.0
    %4198 = vmatprep.subr.mxu0 0.0
    %4199 = vmatpush1.msra.mxu0 0.0
    %4200 = vmatprep.subr.mxu0 0.0
    %4201 = vmatpush1.msra.mxu0 0.0
    %4202 = vmatprep.subr.mxu0 0.0
    %4203 = vmatpush1.msra.mxu0 0.0
    %4204 = vmatprep.subr.mxu0 0.0
    %4205 = vmatpush1.msra.mxu0 0.0
    %4206 = vmatprep.subr.mxu0 0.0
    %4207 = vmatpush1.msra.mxu0 0.0
    %4208 = vmatprep.subr.mxu0 0.0
    %4209 = vmatpush1.msra.mxu0 0.0
    %4210 = vmatprep.subr.mxu0 0.0
    %4211 = vmatpush1.msra.mxu0 0.0
    %4212 = vmatprep.subr.mxu0 0.0
    %4213 = vmatpush1.msra.mxu0 0.0
    %4214 = vmatprep.subr.mxu0 0.0
    %4215 = vmatpush1.msra.mxu0 0.0
    %4216 = vmatprep.subr.mxu0 0.0
    %4217 = vmatpush1.msra.mxu0 0.0
    %4218 = vmatprep.subr.mxu0 0.0
    %4219 = vmatpush1.msra.mxu0 0.0
    %4220 = vmatprep.subr.mxu0 0.0
    %4221 = vmatpush1.msra.mxu0 0.0
    %4222 = vmatprep.subr.mxu0 0.0
    %4223 = vmatpush1.msra.mxu0 %v4187
    %4224 = vmatprep.subr.mxu0 0.0
    %4225 = vmatpush2.msra.mxu0 0.0
    %4226 = vmatprep.subr.mxu0 0.0
    %4227 = vmatpush2.msra.mxu0 0.0
    %4228 = vmatprep.subr.mxu0 0.0
    %4229 = vmatpush2.msra.mxu0 0.0
    %4230 = vmatprep.subr.mxu0 0.0
    %4231 = vmatpush2.msra.mxu0 0.0
    %4232 = vmatprep.subr.mxu0 0.0
    %4233 = vmatpush2.msra.mxu0 0.0
    %4234 = vmatprep.subr.mxu0 0.0
    %4235 = vmatpush2.msra.mxu0 0.0
    %4236 = vmatprep.subr.mxu0 0.0
    %4237 = vmatpush2.msra.mxu0 0.0
    %4238 = vmatprep.subr.mxu0 0.0
    %4239 = vmatpush2.msra.mxu0 0.0
    %4240 = vmatprep.subr.mxu0 0.0
    %4241 = vmatpush2.msra.mxu0 0.0
    %4242 = vmatprep.subr.mxu0 0.0
    %4243 = vmatpush2.msra.mxu0 0.0
    %4244 = vmatprep.subr.mxu0 0.0
    %4245 = vmatpush2.msra.mxu0 0.0
    %4246 = vmatprep.subr.mxu0 0.0
    %4247 = vmatpush2.msra.mxu0 0.0
    %4248 = vmatprep.subr.mxu0 0.0
    %4249 = vmatpush2.msra.mxu0 0.0
    %4250 = vmatprep.subr.mxu0 0.0
    %4251 = vmatpush2.msra.mxu0 0.0
    %4252 = vmatprep.subr.mxu0 0.0
    %4253 = vmatpush2.msra.mxu0 0.0
    %4254 = vmatprep.subr.mxu0 0.0
    %4255 = vmatpush2.msra.mxu0 0.0
    %4256 = vmatprep.mubr.f32.mxu0 0.0
    %4257 = vmatmul.mubr.f32.gmra.mxu0 %v4190
    %v4258 = vpop.f32.mrf.mxu0
    %v4259 = vadd.f32 0.0, %v4258
    %v4260 = vpop.f32.mrf.mxu0
    %4261 = vdwg.mxu0
    %4262 = vrot.lane.b32.xlu0 %v193, 48
    %v4263 = vpop.permute.xlu0 %4262
    %v4266 = vsel %vm212, %v3779, 0
    %4268 = vmatprep.subr.mxu0 0.0
    %4269 = vmatpush1.msra.mxu0 0.0
    %4270 = vmatprep.subr.mxu0 0.0
    %4271 = vmatpush1.msra.mxu0 0.0
    %4272 = vmatprep.subr.mxu0 0.0
    %4273 = vmatpush1.msra.mxu0 0.0
    %4274 = vmatprep.subr.mxu0 0.0
    %4275 = vmatpush1.msra.mxu0 0.0
    %4276 = vmatprep.subr.mxu0 0.0
    %4277 = vmatpush1.msra.mxu0 0.0
    %4278 = vmatprep.subr.mxu0 0.0
    %4279 = vmatpush1.msra.mxu0 0.0
    %4280 = vmatprep.subr.mxu0 0.0
    %4281 = vmatpush1.msra.mxu0 0.0
    %4282 = vmatprep.subr.mxu0 0.0
    %4283 = vmatpush1.msra.mxu0 0.0
    %4284 = vmatprep.subr.mxu0 0.0
    %4285 = vmatpush1.msra.mxu0 0.0
    %4286 = vmatprep.subr.mxu0 0.0
    %4287 = vmatpush1.msra.mxu0 0.0
    %4288 = vmatprep.subr.mxu0 0.0
    %4289 = vmatpush1.msra.mxu0 0.0
    %4290 = vmatprep.subr.mxu0 0.0
    %4291 = vmatpush1.msra.mxu0 0.0
    %4292 = vmatprep.subr.mxu0 0.0
    %4293 = vmatpush1.msra.mxu0 0.0
    %4294 = vmatprep.subr.mxu0 0.0
    %4295 = vmatpush1.msra.mxu0 0.0
    %4296 = vmatprep.subr.mxu0 0.0
    %4297 = vmatpush1.msra.mxu0 0.0
    %4298 = vmatprep.subr.mxu0 0.0
    %4299 = vmatpush1.msra.mxu0 %v4263
    %4300 = vmatprep.subr.mxu0 0.0
    %4301 = vmatpush2.msra.mxu0 0.0
    %4302 = vmatprep.subr.mxu0 0.0
    %4303 = vmatpush2.msra.mxu0 0.0
    %4304 = vmatprep.subr.mxu0 0.0
    %4305 = vmatpush2.msra.mxu0 0.0
    %4306 = vmatprep.subr.mxu0 0.0
    %4307 = vmatpush2.msra.mxu0 0.0
    %4308 = vmatprep.subr.mxu0 0.0
    %4309 = vmatpush2.msra.mxu0 0.0
    %4310 = vmatprep.subr.mxu0 0.0
    %4311 = vmatpush2.msra.mxu0 0.0
    %4312 = vmatprep.subr.mxu0 0.0
    %4313 = vmatpush2.msra.mxu0 0.0
    %4314 = vmatprep.subr.mxu0 0.0
    %4315 = vmatpush2.msra.mxu0 0.0
    %4316 = vmatprep.subr.mxu0 0.0
    %4317 = vmatpush2.msra.mxu0 0.0
    %4318 = vmatprep.subr.mxu0 0.0
    %4319 = vmatpush2.msra.mxu0 0.0
    %4320 = vmatprep.subr.mxu0 0.0
    %4321 = vmatpush2.msra.mxu0 0.0
    %4322 = vmatprep.subr.mxu0 0.0
    %4323 = vmatpush2.msra.mxu0 0.0
    %4324 = vmatprep.subr.mxu0 0.0
    %4325 = vmatpush2.msra.mxu0 0.0
    %4326 = vmatprep.subr.mxu0 0.0
    %4327 = vmatpush2.msra.mxu0 0.0
    %4328 = vmatprep.subr.mxu0 0.0
    %4329 = vmatpush2.msra.mxu0 0.0
    %4330 = vmatprep.subr.mxu0 0.0
    %4331 = vmatpush2.msra.mxu0 0.0
    %4332 = vmatprep.mubr.f32.mxu0 0.0
    %4333 = vmatmul.mubr.f32.gmra.mxu0 %v4266
    %v4334 = vpop.f32.mrf.mxu0
    %v4335 = vadd.f32 0.0, %v4334
    %v4336 = vpop.f32.mrf.mxu0
    %4337 = vdwg.mxu0
    %4338 = vrot.lane.b32.xlu0 %v198, 48
    %v4339 = vpop.permute.xlu0 %4338
    %v4342 = vsel %vm212, %v3781, 0
    %4344 = vmatprep.subr.mxu0 0.0
    %4345 = vmatpush1.msra.mxu0 0.0
    %4346 = vmatprep.subr.mxu0 0.0
    %4347 = vmatpush1.msra.mxu0 0.0
    %4348 = vmatprep.subr.mxu0 0.0
    %4349 = vmatpush1.msra.mxu0 0.0
    %4350 = vmatprep.subr.mxu0 0.0
    %4351 = vmatpush1.msra.mxu0 0.0
    %4352 = vmatprep.subr.mxu0 0.0
    %4353 = vmatpush1.msra.mxu0 0.0
    %4354 = vmatprep.subr.mxu0 0.0
    %4355 = vmatpush1.msra.mxu0 0.0
    %4356 = vmatprep.subr.mxu0 0.0
    %4357 = vmatpush1.msra.mxu0 0.0
    %4358 = vmatprep.subr.mxu0 0.0
    %4359 = vmatpush1.msra.mxu0 0.0
    %4360 = vmatprep.subr.mxu0 0.0
    %4361 = vmatpush1.msra.mxu0 0.0
    %4362 = vmatprep.subr.mxu0 0.0
    %4363 = vmatpush1.msra.mxu0 0.0
    %4364 = vmatprep.subr.mxu0 0.0
    %4365 = vmatpush1.msra.mxu0 0.0
    %4366 = vmatprep.subr.mxu0 0.0
    %4367 = vmatpush1.msra.mxu0 0.0
    %4368 = vmatprep.subr.mxu0 0.0
    %4369 = vmatpush1.msra.mxu0 0.0
    %4370 = vmatprep.subr.mxu0 0.0
    %4371 = vmatpush1.msra.mxu0 0.0
    %4372 = vmatprep.subr.mxu0 0.0
    %4373 = vmatpush1.msra.mxu0 0.0
    %4374 = vmatprep.subr.mxu0 0.0
    %4375 = vmatpush1.msra.mxu0 %v4339
    %4376 = vmatprep.subr.mxu0 0.0
    %4377 = vmatpush2.msra.mxu0 0.0
    %4378 = vmatprep.subr.mxu0 0.0
    %4379 = vmatpush2.msra.mxu0 0.0
    %4380 = vmatprep.subr.mxu0 0.0
    %4381 = vmatpush2.msra.mxu0 0.0
    %4382 = vmatprep.subr.mxu0 0.0
    %4383 = vmatpush2.msra.mxu0 0.0
    %4384 = vmatprep.subr.mxu0 0.0
    %4385 = vmatpush2.msra.mxu0 0.0
    %4386 = vmatprep.subr.mxu0 0.0
    %4387 = vmatpush2.msra.mxu0 0.0
    %4388 = vmatprep.subr.mxu0 0.0
    %4389 = vmatpush2.msra.mxu0 0.0
    %4390 = vmatprep.subr.mxu0 0.0
    %4391 = vmatpush2.msra.mxu0 0.0
    %4392 = vmatprep.subr.mxu0 0.0
    %4393 = vmatpush2.msra.mxu0 0.0
    %4394 = vmatprep.subr.mxu0 0.0
    %4395 = vmatpush2.msra.mxu0 0.0
    %4396 = vmatprep.subr.mxu0 0.0
    %4397 = vmatpush2.msra.mxu0 0.0
    %4398 = vmatprep.subr.mxu0 0.0
    %4399 = vmatpush2.msra.mxu0 0.0
    %4400 = vmatprep.subr.mxu0 0.0
    %4401 = vmatpush2.msra.mxu0 0.0
    %4402 = vmatprep.subr.mxu0 0.0
    %4403 = vmatpush2.msra.mxu0 0.0
    %4404 = vmatprep.subr.mxu0 0.0
    %4405 = vmatpush2.msra.mxu0 0.0
    %4406 = vmatprep.subr.mxu0 0.0
    %4407 = vmatpush2.msra.mxu0 0.0
    %4408 = vmatprep.mubr.f32.mxu0 0.0
    %4409 = vmatmul.mubr.f32.gmra.mxu0 %v4342
    %v4410 = vpop.f32.mrf.mxu0
    %v4411 = vadd.f32 0.0, %v4410
    %v4412 = vpop.f32.mrf.mxu0
    %4413 = vdwg.mxu0
    %v4414 = vrcp.pop %v3784
    %v4415 = vmul.f32 %v3879, %v4414
    %v4416 = vrcp.pop %v3787
    %v4417 = vmul.f32 %v3955, %v4416
    %v4418 = vrcp.pop %v3790
    %v4419 = vmul.f32 %v4031, %v4418
    %v4420 = vrcp.pop %v3793
    %v4421 = vmul.f32 %v4107, %v4420
    %v4422 = vrcp.pop %v3796
    %v4423 = vmul.f32 %v4183, %v4422
    %v4424 = vrcp.pop %v3799
    %v4425 = vmul.f32 %v4259, %v4424
    %v4426 = vrcp.pop %v3802
    %v4427 = vmul.f32 %v4335, %v4426
    %v4428 = vrcp.pop %v3805
    %v4429 = vmul.f32 %v4411, %v4428
    %v4430 = vld [vmem:[#allocation7 + $0x10] sm:$0xff]
    %v4432 = vsel %vm212, %v4415, 0
    %v4435 = vsel %vm212, %v4417, 0
    %v4438 = vsel %vm212, %v4419, 0
    %v4441 = vsel %vm212, %v4421, 0
    %v4444 = vsel %vm212, %v4423, 0
    %v4447 = vsel %vm212, %v4425, 0
    %v4450 = vsel %vm212, %v4427, 0
    %v4453 = vsel %vm212, %v4429, 0
    %4455 = vmatprep.subr.mxu0 0.0
    %4456 = vmatpush1.msra.mxu0 0.0
    %4457 = vmatprep.subr.mxu0 0.0
    %4458 = vmatpush1.msra.mxu0 0.0
    %4459 = vmatprep.subr.mxu0 0.0
    %4460 = vmatpush1.msra.mxu0 0.0
    %4461 = vmatprep.subr.mxu0 0.0
    %4462 = vmatpush1.msra.mxu0 0.0
    %4463 = vmatprep.subr.mxu0 0.0
    %4464 = vmatpush1.msra.mxu0 0.0
    %4465 = vmatprep.subr.mxu0 0.0
    %4466 = vmatpush1.msra.mxu0 0.0
    %4467 = vmatprep.subr.mxu0 0.0
    %4468 = vmatpush1.msra.mxu0 0.0
    %4469 = vmatprep.subr.mxu0 0.0
    %4470 = vmatpush1.msra.mxu0 0.0
    %4471 = vmatprep.subr.mxu0 0.0
    %4472 = vmatpush1.msra.mxu0 0.0
    %4473 = vmatprep.subr.mxu0 0.0
    %4474 = vmatpush1.msra.mxu0 0.0
    %4475 = vmatprep.subr.mxu0 0.0
    %4476 = vmatpush1.msra.mxu0 0.0
    %4477 = vmatprep.subr.mxu0 0.0
    %4478 = vmatpush1.msra.mxu0 0.0
    %4479 = vmatprep.subr.mxu0 0.0
    %4480 = vmatpush1.msra.mxu0 0.0
    %4481 = vmatprep.subr.mxu0 0.0
    %4482 = vmatpush1.msra.mxu0 0.0
    %4483 = vmatprep.subr.mxu0 0.0
    %4484 = vmatpush1.msra.mxu0 0.0
    %4485 = vmatprep.subr.mxu0 0.0
    %4486 = vmatpush1.msra.mxu0 %v4430
    %4487 = vmatprep.subr.mxu0 0.0
    %4488 = vmatpush2.msra.mxu0 0.0
    %4489 = vmatprep.subr.mxu0 0.0
    %4490 = vmatpush2.msra.mxu0 0.0
    %4491 = vmatprep.subr.mxu0 0.0
    %4492 = vmatpush2.msra.mxu0 0.0
    %4493 = vmatprep.subr.mxu0 0.0
    %4494 = vmatpush2.msra.mxu0 0.0
    %4495 = vmatprep.subr.mxu0 0.0
    %4496 = vmatpush2.msra.mxu0 0.0
    %4497 = vmatprep.subr.mxu0 0.0
    %4498 = vmatpush2.msra.mxu0 0.0
    %4499 = vmatprep.subr.mxu0 0.0
    %4500 = vmatpush2.msra.mxu0 0.0
    %4501 = vmatprep.subr.mxu0 0.0
    %4502 = vmatpush2.msra.mxu0 0.0
    %4503 = vmatprep.subr.mxu0 0.0
    %4504 = vmatpush2.msra.mxu0 0.0
    %4505 = vmatprep.subr.mxu0 0.0
    %4506 = vmatpush2.msra.mxu0 0.0
    %4507 = vmatprep.subr.mxu0 0.0
    %4508 = vmatpush2.msra.mxu0 0.0
    %4509 = vmatprep.subr.mxu0 0.0
    %4510 = vmatpush2.msra.mxu0 0.0
    %4511 = vmatprep.subr.mxu0 0.0
    %4512 = vmatpush2.msra.mxu0 0.0
    %4513 = vmatprep.subr.mxu0 0.0
    %4514 = vmatpush2.msra.mxu0 0.0
    %4515 = vmatprep.subr.mxu0 0.0
    %4516 = vmatpush2.msra.mxu0 0.0
    %4517 = vmatprep.subr.mxu0 0.0
    %4518 = vmatpush2.msra.mxu0 0.0
    %4519 = vmatprep.mubr.f32.mxu0 0.0
    %4520 = vmatmul.mubr.f32.gmra.mxu0 %v4432
    %v4521 = vpop.f32.mrf.mxu0
    %v4522 = vadd.f32 0.0, %v4521
    %v4523 = vpop.f32.mrf.mxu0
    %4524 = vmatprep.mubr.f32.mxu0 0.0
    %4525 = vmatmul.mubr.f32.gmra.mxu0 %v4435
    %v4526 = vpop.f32.mrf.mxu0
    %v4527 = vadd.f32 0.0, %v4526
    %v4528 = vpop.f32.mrf.mxu0
    %4529 = vmatprep.mubr.f32.mxu0 0.0
    %4530 = vmatmul.mubr.f32.gmra.mxu0 %v4438
    %v4531 = vpop.f32.mrf.mxu0
    %v4532 = vadd.f32 0.0, %v4531
    %v4533 = vpop.f32.mrf.mxu0
    %4534 = vmatprep.mubr.f32.mxu0 0.0
    %4535 = vmatmul.mubr.f32.gmra.mxu0 %v4441
    %v4536 = vpop.f32.mrf.mxu0
    %v4537 = vadd.f32 0.0, %v4536
    %v4538 = vpop.f32.mrf.mxu0
    %4539 = vmatprep.mubr.f32.mxu0 0.0
    %4540 = vmatmul.mubr.f32.gmra.mxu0 %v4444
    %v4541 = vpop.f32.mrf.mxu0
    %v4542 = vadd.f32 0.0, %v4541
    %v4543 = vpop.f32.mrf.mxu0
    %4544 = vmatprep.mubr.f32.mxu0 0.0
    %4545 = vmatmul.mubr.f32.gmra.mxu0 %v4447
    %v4546 = vpop.f32.mrf.mxu0
    %v4547 = vadd.f32 0.0, %v4546
    %v4548 = vpop.f32.mrf.mxu0
    %4549 = vmatprep.mubr.f32.mxu0 0.0
    %4550 = vmatmul.mubr.f32.gmra.mxu0 %v4450
    %v4551 = vpop.f32.mrf.mxu0
    %v4552 = vadd.f32 0.0, %v4551
    %v4553 = vpop.f32.mrf.mxu0
    %4554 = vmatprep.mubr.f32.mxu0 0.0
    %4555 = vmatmul.mubr.f32.gmra.mxu0 %v4453
    %v4556 = vpop.f32.mrf.mxu0
    %v4557 = vadd.f32 0.0, %v4556
    %v4558 = vpop.f32.mrf.mxu0
    %4559 = vdwg.mxu0
    %v4560 = vadd.f32 %v3072, %v4522
    %v4561 = vadd.f32 %v3077, %v4527
    %v4562 = vadd.f32 %v3082, %v4532
    %v4563 = vadd.f32 %v3087, %v4537
    %v4564 = vadd.f32 %v3092, %v4542
    %v4565 = vadd.f32 %v3097, %v4547
    %v4566 = vadd.f32 %v3102, %v4552
    %v4567 = vadd.f32 %v3107, %v4557
    %4568 = vrot.lane.b32.xlu0 %v201, 104
    %v4569 = vpop.permute.xlu0 %4568
    %4570 = vrot.lane.b32.xlu0 %v163, 72
    %v4571 = vpop.permute.xlu0 %4570
    %v4572 = vsel %vm212, %v4569, 0
    %v4574 = vsel %vm212, %v4571, 0
    %4576 = vmatprep.subr.mxu0 0.0
    %4577 = vmatpush1.xpose.msra.mxu0 0.0
    %4578 = vmatprep.subr.mxu0 0.0
    %4579 = vmatpush1.xpose.msra.mxu0 0.0
    %4580 = vmatprep.subr.mxu0 0.0
    %4581 = vmatpush1.xpose.msra.mxu0 0.0
    %4582 = vmatprep.subr.mxu0 0.0
    %4583 = vmatpush1.xpose.msra.mxu0 0.0
    %4584 = vmatprep.subr.mxu0 0.0
    %4585 = vmatpush1.xpose.msra.mxu0 0.0
    %4586 = vmatprep.subr.mxu0 0.0
    %4587 = vmatpush1.xpose.msra.mxu0 0.0
    %4588 = vmatprep.subr.mxu0 0.0
    %4589 = vmatpush1.xpose.msra.mxu0 0.0
    %4590 = vmatprep.subr.mxu0 0.0
    %4591 = vmatpush1.xpose.msra.mxu0 0.0
    %4592 = vmatprep.subr.mxu0 0.0
    %4593 = vmatpush1.xpose.msra.mxu0 0.0
    %4594 = vmatprep.subr.mxu0 0.0
    %4595 = vmatpush1.xpose.msra.mxu0 0.0
    %4596 = vmatprep.subr.mxu0 0.0
    %4597 = vmatpush1.xpose.msra.mxu0 0.0
    %4598 = vmatprep.subr.mxu0 0.0
    %4599 = vmatpush1.xpose.msra.mxu0 0.0
    %4600 = vmatprep.subr.mxu0 0.0
    %4601 = vmatpush1.xpose.msra.mxu0 0.0
    %4602 = vmatprep.subr.mxu0 0.0
    %4603 = vmatpush1.xpose.msra.mxu0 0.0
    %4604 = vmatprep.subr.mxu0 0.0
    %4605 = vmatpush1.xpose.msra.mxu0 0.0
    %4606 = vmatprep.subr.mxu0 0.0
    %4607 = vmatpush1.xpose.msra.mxu0 %v4574
    %4608 = vmatprep.subr.mxu0 0.0
    %4609 = vmatpush2.xpose.msra.mxu0 0.0
    %4610 = vmatprep.subr.mxu0 0.0
    %4611 = vmatpush2.xpose.msra.mxu0 0.0
    %4612 = vmatprep.subr.mxu0 0.0
    %4613 = vmatpush2.xpose.msra.mxu0 0.0
    %4614 = vmatprep.subr.mxu0 0.0
    %4615 = vmatpush2.xpose.msra.mxu0 0.0
    %4616 = vmatprep.subr.mxu0 0.0
    %4617 = vmatpush2.xpose.msra.mxu0 0.0
    %4618 = vmatprep.subr.mxu0 0.0
    %4619 = vmatpush2.xpose.msra.mxu0 0.0
    %4620 = vmatprep.subr.mxu0 0.0
    %4621 = vmatpush2.xpose.msra.mxu0 0.0
    %4622 = vmatprep.subr.mxu0 0.0
    %4623 = vmatpush2.xpose.msra.mxu0 0.0
    %4624 = vmatprep.subr.mxu0 0.0
    %4625 = vmatpush2.xpose.msra.mxu0 0.0
    %4626 = vmatprep.subr.mxu0 0.0
    %4627 = vmatpush2.xpose.msra.mxu0 0.0
    %4628 = vmatprep.subr.mxu0 0.0
    %4629 = vmatpush2.xpose.msra.mxu0 0.0
    %4630 = vmatprep.subr.mxu0 0.0
    %4631 = vmatpush2.xpose.msra.mxu0 0.0
    %4632 = vmatprep.subr.mxu0 0.0
    %4633 = vmatpush2.xpose.msra.mxu0 0.0
    %4634 = vmatprep.subr.mxu0 0.0
    %4635 = vmatpush2.xpose.msra.mxu0 0.0
    %4636 = vmatprep.subr.mxu0 0.0
    %4637 = vmatpush2.xpose.msra.mxu0 0.0
    %4638 = vmatprep.subr.mxu0 0.0
    %4639 = vmatpush2.xpose.msra.mxu0 0.0
    %4640 = vmatprep.mubr.f32.mxu0 0.0
    %4641 = vmatmul.mubr.f32.gmra.mxu0 %v4572
    %v4642 = vpop.f32.mrf.mxu0
    %v4643 = vadd.f32 0.0, %v4642
    %v4644 = vpop.f32.mrf.mxu0
    %4645 = vdwg.mxu0
    %4646 = vrot.lane.b32.xlu0 %v202, 104
    %v4647 = vpop.permute.xlu0 %4646
    %4648 = vrot.lane.b32.xlu0 %v168, 72
    %v4649 = vpop.permute.xlu0 %4648
    %v4650 = vsel %vm212, %v4647, 0
    %v4652 = vsel %vm212, %v4649, 0
    %4654 = vmatprep.subr.mxu0 0.0
    %4655 = vmatpush1.xpose.msra.mxu0 0.0
    %4656 = vmatprep.subr.mxu0 0.0
    %4657 = vmatpush1.xpose.msra.mxu0 0.0
    %4658 = vmatprep.subr.mxu0 0.0
    %4659 = vmatpush1.xpose.msra.mxu0 0.0
    %4660 = vmatprep.subr.mxu0 0.0
    %4661 = vmatpush1.xpose.msra.mxu0 0.0
    %4662 = vmatprep.subr.mxu0 0.0
    %4663 = vmatpush1.xpose.msra.mxu0 0.0
    %4664 = vmatprep.subr.mxu0 0.0
    %4665 = vmatpush1.xpose.msra.mxu0 0.0
    %4666 = vmatprep.subr.mxu0 0.0
    %4667 = vmatpush1.xpose.msra.mxu0 0.0
    %4668 = vmatprep.subr.mxu0 0.0
    %4669 = vmatpush1.xpose.msra.mxu0 0.0
    %4670 = vmatprep.subr.mxu0 0.0
    %4671 = vmatpush1.xpose.msra.mxu0 0.0
    %4672 = vmatprep.subr.mxu0 0.0
    %4673 = vmatpush1.xpose.msra.mxu0 0.0
    %4674 = vmatprep.subr.mxu0 0.0
    %4675 = vmatpush1.xpose.msra.mxu0 0.0
    %4676 = vmatprep.subr.mxu0 0.0
    %4677 = vmatpush1.xpose.msra.mxu0 0.0
    %4678 = vmatprep.subr.mxu0 0.0
    %4679 = vmatpush1.xpose.msra.mxu0 0.0
    %4680 = vmatprep.subr.mxu0 0.0
    %4681 = vmatpush1.xpose.msra.mxu0 0.0
    %4682 = vmatprep.subr.mxu0 0.0
    %4683 = vmatpush1.xpose.msra.mxu0 0.0
    %4684 = vmatprep.subr.mxu0 0.0
    %4685 = vmatpush1.xpose.msra.mxu0 %v4652
    %4686 = vmatprep.subr.mxu0 0.0
    %4687 = vmatpush2.xpose.msra.mxu0 0.0
    %4688 = vmatprep.subr.mxu0 0.0
    %4689 = vmatpush2.xpose.msra.mxu0 0.0
    %4690 = vmatprep.subr.mxu0 0.0
    %4691 = vmatpush2.xpose.msra.mxu0 0.0
    %4692 = vmatprep.subr.mxu0 0.0
    %4693 = vmatpush2.xpose.msra.mxu0 0.0
    %4694 = vmatprep.subr.mxu0 0.0
    %4695 = vmatpush2.xpose.msra.mxu0 0.0
    %4696 = vmatprep.subr.mxu0 0.0
    %4697 = vmatpush2.xpose.msra.mxu0 0.0
    %4698 = vmatprep.subr.mxu0 0.0
    %4699 = vmatpush2.xpose.msra.mxu0 0.0
    %4700 = vmatprep.subr.mxu0 0.0
    %4701 = vmatpush2.xpose.msra.mxu0 0.0
    %4702 = vmatprep.subr.mxu0 0.0
    %4703 = vmatpush2.xpose.msra.mxu0 0.0
    %4704 = vmatprep.subr.mxu0 0.0
    %4705 = vmatpush2.xpose.msra.mxu0 0.0
    %4706 = vmatprep.subr.mxu0 0.0
    %4707 = vmatpush2.xpose.msra.mxu0 0.0
    %4708 = vmatprep.subr.mxu0 0.0
    %4709 = vmatpush2.xpose.msra.mxu0 0.0
    %4710 = vmatprep.subr.mxu0 0.0
    %4711 = vmatpush2.xpose.msra.mxu0 0.0
    %4712 = vmatprep.subr.mxu0 0.0
    %4713 = vmatpush2.xpose.msra.mxu0 0.0
    %4714 = vmatprep.subr.mxu0 0.0
    %4715 = vmatpush2.xpose.msra.mxu0 0.0
    %4716 = vmatprep.subr.mxu0 0.0
    %4717 = vmatpush2.xpose.msra.mxu0 0.0
    %4718 = vmatprep.mubr.f32.mxu0 0.0
    %4719 = vmatmul.mubr.f32.gmra.mxu0 %v4650
    %v4720 = vpop.f32.mrf.mxu0
    %v4721 = vadd.f32 0.0, %v4720
    %v4722 = vpop.f32.mrf.mxu0
    %4723 = vdwg.mxu0
    %4724 = vrot.lane.b32.xlu0 %v203, 104
    %v4725 = vpop.permute.xlu0 %4724
    %4726 = vrot.lane.b32.xlu0 %v173, 72
    %v4727 = vpop.permute.xlu0 %4726
    %v4728 = vsel %vm212, %v4725, 0
    %v4730 = vsel %vm212, %v4727, 0
    %4732 = vmatprep.subr.mxu0 0.0
    %4733 = vmatpush1.xpose.msra.mxu0 0.0
    %4734 = vmatprep.subr.mxu0 0.0
    %4735 = vmatpush1.xpose.msra.mxu0 0.0
    %4736 = vmatprep.subr.mxu0 0.0
    %4737 = vmatpush1.xpose.msra.mxu0 0.0
    %4738 = vmatprep.subr.mxu0 0.0
    %4739 = vmatpush1.xpose.msra.mxu0 0.0
    %4740 = vmatprep.subr.mxu0 0.0
    %4741 = vmatpush1.xpose.msra.mxu0 0.0
    %4742 = vmatprep.subr.mxu0 0.0
    %4743 = vmatpush1.xpose.msra.mxu0 0.0
    %4744 = vmatprep.subr.mxu0 0.0
    %4745 = vmatpush1.xpose.msra.mxu0 0.0
    %4746 = vmatprep.subr.mxu0 0.0
    %4747 = vmatpush1.xpose.msra.mxu0 0.0
    %4748 = vmatprep.subr.mxu0 0.0
    %4749 = vmatpush1.xpose.msra.mxu0 0.0
    %4750 = vmatprep.subr.mxu0 0.0
    %4751 = vmatpush1.xpose.msra.mxu0 0.0
    %4752 = vmatprep.subr.mxu0 0.0
    %4753 = vmatpush1.xpose.msra.mxu0 0.0
    %4754 = vmatprep.subr.mxu0 0.0
    %4755 = vmatpush1.xpose.msra.mxu0 0.0
    %4756 = vmatprep.subr.mxu0 0.0
    %4757 = vmatpush1.xpose.msra.mxu0 0.0
    %4758 = vmatprep.subr.mxu0 0.0
    %4759 = vmatpush1.xpose.msra.mxu0 0.0
    %4760 = vmatprep.subr.mxu0 0.0
    %4761 = vmatpush1.xpose.msra.mxu0 0.0
    %4762 = vmatprep.subr.mxu0 0.0
    %4763 = vmatpush1.xpose.msra.mxu0 %v4730
    %4764 = vmatprep.subr.mxu0 0.0
    %4765 = vmatpush2.xpose.msra.mxu0 0.0
    %4766 = vmatprep.subr.mxu0 0.0
    %4767 = vmatpush2.xpose.msra.mxu0 0.0
    %4768 = vmatprep.subr.mxu0 0.0
    %4769 = vmatpush2.xpose.msra.mxu0 0.0
    %4770 = vmatprep.subr.mxu0 0.0
    %4771 = vmatpush2.xpose.msra.mxu0 0.0
    %4772 = vmatprep.subr.mxu0 0.0
    %4773 = vmatpush2.xpose.msra.mxu0 0.0
    %4774 = vmatprep.subr.mxu0 0.0
    %4775 = vmatpush2.xpose.msra.mxu0 0.0
    %4776 = vmatprep.subr.mxu0 0.0
    %4777 = vmatpush2.xpose.msra.mxu0 0.0
    %4778 = vmatprep.subr.mxu0 0.0
    %4779 = vmatpush2.xpose.msra.mxu0 0.0
    %4780 = vmatprep.subr.mxu0 0.0
    %4781 = vmatpush2.xpose.msra.mxu0 0.0
    %4782 = vmatprep.subr.mxu0 0.0
    %4783 = vmatpush2.xpose.msra.mxu0 0.0
    %4784 = vmatprep.subr.mxu0 0.0
    %4785 = vmatpush2.xpose.msra.mxu0 0.0
    %4786 = vmatprep.subr.mxu0 0.0
    %4787 = vmatpush2.xpose.msra.mxu0 0.0
    %4788 = vmatprep.subr.mxu0 0.0
    %4789 = vmatpush2.xpose.msra.mxu0 0.0
    %4790 = vmatprep.subr.mxu0 0.0
    %4791 = vmatpush2.xpose.msra.mxu0 0.0
    %4792 = vmatprep.subr.mxu0 0.0
    %4793 = vmatpush2.xpose.msra.mxu0 0.0
    %4794 = vmatprep.subr.mxu0 0.0
    %4795 = vmatpush2.xpose.msra.mxu0 0.0
    %4796 = vmatprep.mubr.f32.mxu0 0.0
    %4797 = vmatmul.mubr.f32.gmra.mxu0 %v4728
    %v4798 = vpop.f32.mrf.mxu0
    %v4799 = vadd.f32 0.0, %v4798
    %v4800 = vpop.f32.mrf.mxu0
    %4801 = vdwg.mxu0
    %4802 = vrot.lane.b32.xlu0 %v204, 104
    %v4803 = vpop.permute.xlu0 %4802
    %4804 = vrot.lane.b32.xlu0 %v178, 72
    %v4805 = vpop.permute.xlu0 %4804
    %v4806 = vsel %vm212, %v4803, 0
    %v4808 = vsel %vm212, %v4805, 0
    %4810 = vmatprep.subr.mxu0 0.0
    %4811 = vmatpush1.xpose.msra.mxu0 0.0
    %4812 = vmatprep.subr.mxu0 0.0
    %4813 = vmatpush1.xpose.msra.mxu0 0.0
    %4814 = vmatprep.subr.mxu0 0.0
    %4815 = vmatpush1.xpose.msra.mxu0 0.0
    %4816 = vmatprep.subr.mxu0 0.0
    %4817 = vmatpush1.xpose.msra.mxu0 0.0
    %4818 = vmatprep.subr.mxu0 0.0
    %4819 = vmatpush1.xpose.msra.mxu0 0.0
    %4820 = vmatprep.subr.mxu0 0.0
    %4821 = vmatpush1.xpose.msra.mxu0 0.0
    %4822 = vmatprep.subr.mxu0 0.0
    %4823 = vmatpush1.xpose.msra.mxu0 0.0
    %4824 = vmatprep.subr.mxu0 0.0
    %4825 = vmatpush1.xpose.msra.mxu0 0.0
    %4826 = vmatprep.subr.mxu0 0.0
    %4827 = vmatpush1.xpose.msra.mxu0 0.0
    %4828 = vmatprep.subr.mxu0 0.0
    %4829 = vmatpush1.xpose.msra.mxu0 0.0
    %4830 = vmatprep.subr.mxu0 0.0
    %4831 = vmatpush1.xpose.msra.mxu0 0.0
    %4832 = vmatprep.subr.mxu0 0.0
    %4833 = vmatpush1.xpose.msra.mxu0 0.0
    %4834 = vmatprep.subr.mxu0 0.0
    %4835 = vmatpush1.xpose.msra.mxu0 0.0
    %4836 = vmatprep.subr.mxu0 0.0
    %4837 = vmatpush1.xpose.msra.mxu0 0.0
    %4838 = vmatprep.subr.mxu0 0.0
    %4839 = vmatpush1.xpose.msra.mxu0 0.0
    %4840 = vmatprep.subr.mxu0 0.0
    %4841 = vmatpush1.xpose.msra.mxu0 %v4808
    %4842 = vmatprep.subr.mxu0 0.0
    %4843 = vmatpush2.xpose.msra.mxu0 0.0
    %4844 = vmatprep.subr.mxu0 0.0
    %4845 = vmatpush2.xpose.msra.mxu0 0.0
    %4846 = vmatprep.subr.mxu0 0.0
    %4847 = vmatpush2.xpose.msra.mxu0 0.0
    %4848 = vmatprep.subr.mxu0 0.0
    %4849 = vmatpush2.xpose.msra.mxu0 0.0
    %4850 = vmatprep.subr.mxu0 0.0
    %4851 = vmatpush2.xpose.msra.mxu0 0.0
    %4852 = vmatprep.subr.mxu0 0.0
    %4853 = vmatpush2.xpose.msra.mxu0 0.0
    %4854 = vmatprep.subr.mxu0 0.0
    %4855 = vmatpush2.xpose.msra.mxu0 0.0
    %4856 = vmatprep.subr.mxu0 0.0
    %4857 = vmatpush2.xpose.msra.mxu0 0.0
    %4858 = vmatprep.subr.mxu0 0.0
    %4859 = vmatpush2.xpose.msra.mxu0 0.0
    %4860 = vmatprep.subr.mxu0 0.0
    %4861 = vmatpush2.xpose.msra.mxu0 0.0
    %4862 = vmatprep.subr.mxu0 0.0
    %4863 = vmatpush2.xpose.msra.mxu0 0.0
    %4864 = vmatprep.subr.mxu0 0.0
    %4865 = vmatpush2.xpose.msra.mxu0 0.0
    %4866 = vmatprep.subr.mxu0 0.0
    %4867 = vmatpush2.xpose.msra.mxu0 0.0
    %4868 = vmatprep.subr.mxu0 0.0
    %4869 = vmatpush2.xpose.msra.mxu0 0.0
    %4870 = vmatprep.subr.mxu0 0.0
    %4871 = vmatpush2.xpose.msra.mxu0 0.0
    %4872 = vmatprep.subr.mxu0 0.0
    %4873 = vmatpush2.xpose.msra.mxu0 0.0
    %4874 = vmatprep.mubr.f32.mxu0 0.0
    %4875 = vmatmul.mubr.f32.gmra.mxu0 %v4806
    %v4876 = vpop.f32.mrf.mxu0
    %v4877 = vadd.f32 0.0, %v4876
    %v4878 = vpop.f32.mrf.mxu0
    %4879 = vdwg.mxu0
    %4880 = vrot.lane.b32.xlu0 %v205, 104
    %v4881 = vpop.permute.xlu0 %4880
    %4882 = vrot.lane.b32.xlu0 %v183, 72
    %v4883 = vpop.permute.xlu0 %4882
    %v4884 = vsel %vm212, %v4881, 0
    %v4886 = vsel %vm212, %v4883, 0
    %4888 = vmatprep.subr.mxu0 0.0
    %4889 = vmatpush1.xpose.msra.mxu0 0.0
    %4890 = vmatprep.subr.mxu0 0.0
    %4891 = vmatpush1.xpose.msra.mxu0 0.0
    %4892 = vmatprep.subr.mxu0 0.0
    %4893 = vmatpush1.xpose.msra.mxu0 0.0
    %4894 = vmatprep.subr.mxu0 0.0
    %4895 = vmatpush1.xpose.msra.mxu0 0.0
    %4896 = vmatprep.subr.mxu0 0.0
    %4897 = vmatpush1.xpose.msra.mxu0 0.0
    %4898 = vmatprep.subr.mxu0 0.0
    %4899 = vmatpush1.xpose.msra.mxu0 0.0
    %4900 = vmatprep.subr.mxu0 0.0
    %4901 = vmatpush1.xpose.msra.mxu0 0.0
    %4902 = vmatprep.subr.mxu0 0.0
    %4903 = vmatpush1.xpose.msra.mxu0 0.0
    %4904 = vmatprep.subr.mxu0 0.0
    %4905 = vmatpush1.xpose.msra.mxu0 0.0
    %4906 = vmatprep.subr.mxu0 0.0
    %4907 = vmatpush1.xpose.msra.mxu0 0.0
    %4908 = vmatprep.subr.mxu0 0.0
    %4909 = vmatpush1.xpose.msra.mxu0 0.0
    %4910 = vmatprep.subr.mxu0 0.0
    %4911 = vmatpush1.xpose.msra.mxu0 0.0
    %4912 = vmatprep.subr.mxu0 0.0
    %4913 = vmatpush1.xpose.msra.mxu0 0.0
    %4914 = vmatprep.subr.mxu0 0.0
    %4915 = vmatpush1.xpose.msra.mxu0 0.0
    %4916 = vmatprep.subr.mxu0 0.0
    %4917 = vmatpush1.xpose.msra.mxu0 0.0
    %4918 = vmatprep.subr.mxu0 0.0
    %4919 = vmatpush1.xpose.msra.mxu0 %v4886
    %4920 = vmatprep.subr.mxu0 0.0
    %4921 = vmatpush2.xpose.msra.mxu0 0.0
    %4922 = vmatprep.subr.mxu0 0.0
    %4923 = vmatpush2.xpose.msra.mxu0 0.0
    %4924 = vmatprep.subr.mxu0 0.0
    %4925 = vmatpush2.xpose.msra.mxu0 0.0
    %4926 = vmatprep.subr.mxu0 0.0
    %4927 = vmatpush2.xpose.msra.mxu0 0.0
    %4928 = vmatprep.subr.mxu0 0.0
    %4929 = vmatpush2.xpose.msra.mxu0 0.0
    %4930 = vmatprep.subr.mxu0 0.0
    %4931 = vmatpush2.xpose.msra.mxu0 0.0
    %4932 = vmatprep.subr.mxu0 0.0
    %4933 = vmatpush2.xpose.msra.mxu0 0.0
    %4934 = vmatprep.subr.mxu0 0.0
    %4935 = vmatpush2.xpose.msra.mxu0 0.0
    %4936 = vmatprep.subr.mxu0 0.0
    %4937 = vmatpush2.xpose.msra.mxu0 0.0
    %4938 = vmatprep.subr.mxu0 0.0
    %4939 = vmatpush2.xpose.msra.mxu0 0.0
    %4940 = vmatprep.subr.mxu0 0.0
    %4941 = vmatpush2.xpose.msra.mxu0 0.0
    %4942 = vmatprep.subr.mxu0 0.0
    %4943 = vmatpush2.xpose.msra.mxu0 0.0
    %4944 = vmatprep.subr.mxu0 0.0
    %4945 = vmatpush2.xpose.msra.mxu0 0.0
    %4946 = vmatprep.subr.mxu0 0.0
    %4947 = vmatpush2.xpose.msra.mxu0 0.0
    %4948 = vmatprep.subr.mxu0 0.0
    %4949 = vmatpush2.xpose.msra.mxu0 0.0
    %4950 = vmatprep.subr.mxu0 0.0
    %4951 = vmatpush2.xpose.msra.mxu0 0.0
    %4952 = vmatprep.mubr.f32.mxu0 0.0
    %4953 = vmatmul.mubr.f32.gmra.mxu0 %v4884
    %v4954 = vpop.f32.mrf.mxu0
    %v4955 = vadd.f32 0.0, %v4954
    %v4956 = vpop.f32.mrf.mxu0
    %4957 = vdwg.mxu0
    %4958 = vrot.lane.b32.xlu0 %v206, 104
    %v4959 = vpop.permute.xlu0 %4958
    %4960 = vrot.lane.b32.xlu0 %v188, 72
    %v4961 = vpop.permute.xlu0 %4960
    %v4962 = vsel %vm212, %v4959, 0
    %v4964 = vsel %vm212, %v4961, 0
    %4966 = vmatprep.subr.mxu0 0.0
    %4967 = vmatpush1.xpose.msra.mxu0 0.0
    %4968 = vmatprep.subr.mxu0 0.0
    %4969 = vmatpush1.xpose.msra.mxu0 0.0
    %4970 = vmatprep.subr.mxu0 0.0
    %4971 = vmatpush1.xpose.msra.mxu0 0.0
    %4972 = vmatprep.subr.mxu0 0.0
    %4973 = vmatpush1.xpose.msra.mxu0 0.0
    %4974 = vmatprep.subr.mxu0 0.0
    %4975 = vmatpush1.xpose.msra.mxu0 0.0
    %4976 = vmatprep.subr.mxu0 0.0
    %4977 = vmatpush1.xpose.msra.mxu0 0.0
    %4978 = vmatprep.subr.mxu0 0.0
    %4979 = vmatpush1.xpose.msra.mxu0 0.0
    %4980 = vmatprep.subr.mxu0 0.0
    %4981 = vmatpush1.xpose.msra.mxu0 0.0
    %4982 = vmatprep.subr.mxu0 0.0
    %4983 = vmatpush1.xpose.msra.mxu0 0.0
    %4984 = vmatprep.subr.mxu0 0.0
    %4985 = vmatpush1.xpose.msra.mxu0 0.0
    %4986 = vmatprep.subr.mxu0 0.0
    %4987 = vmatpush1.xpose.msra.mxu0 0.0
    %4988 = vmatprep.subr.mxu0 0.0
    %4989 = vmatpush1.xpose.msra.mxu0 0.0
    %4990 = vmatprep.subr.mxu0 0.0
    %4991 = vmatpush1.xpose.msra.mxu0 0.0
    %4992 = vmatprep.subr.mxu0 0.0
    %4993 = vmatpush1.xpose.msra.mxu0 0.0
    %4994 = vmatprep.subr.mxu0 0.0
    %4995 = vmatpush1.xpose.msra.mxu0 0.0
    %4996 = vmatprep.subr.mxu0 0.0
    %4997 = vmatpush1.xpose.msra.mxu0 %v4964
    %4998 = vmatprep.subr.mxu0 0.0
    %4999 = vmatpush2.xpose.msra.mxu0 0.0
    %5000 = vmatprep.subr.mxu0 0.0
    %5001 = vmatpush2.xpose.msra.mxu0 0.0
    %5002 = vmatprep.subr.mxu0 0.0
    %5003 = vmatpush2.xpose.msra.mxu0 0.0
    %5004 = vmatprep.subr.mxu0 0.0
    %5005 = vmatpush2.xpose.msra.mxu0 0.0
    %5006 = vmatprep.subr.mxu0 0.0
    %5007 = vmatpush2.xpose.msra.mxu0 0.0
    %5008 = vmatprep.subr.mxu0 0.0
    %5009 = vmatpush2.xpose.msra.mxu0 0.0
    %5010 = vmatprep.subr.mxu0 0.0
    %5011 = vmatpush2.xpose.msra.mxu0 0.0
    %5012 = vmatprep.subr.mxu0 0.0
    %5013 = vmatpush2.xpose.msra.mxu0 0.0
    %5014 = vmatprep.subr.mxu0 0.0
    %5015 = vmatpush2.xpose.msra.mxu0 0.0
    %5016 = vmatprep.subr.mxu0 0.0
    %5017 = vmatpush2.xpose.msra.mxu0 0.0
    %5018 = vmatprep.subr.mxu0 0.0
    %5019 = vmatpush2.xpose.msra.mxu0 0.0
    %5020 = vmatprep.subr.mxu0 0.0
    %5021 = vmatpush2.xpose.msra.mxu0 0.0
    %5022 = vmatprep.subr.mxu0 0.0
    %5023 = vmatpush2.xpose.msra.mxu0 0.0
    %5024 = vmatprep.subr.mxu0 0.0
    %5025 = vmatpush2.xpose.msra.mxu0 0.0
    %5026 = vmatprep.subr.mxu0 0.0
    %5027 = vmatpush2.xpose.msra.mxu0 0.0
    %5028 = vmatprep.subr.mxu0 0.0
    %5029 = vmatpush2.xpose.msra.mxu0 0.0
    %5030 = vmatprep.mubr.f32.mxu0 0.0
    %5031 = vmatmul.mubr.f32.gmra.mxu0 %v4962
    %v5032 = vpop.f32.mrf.mxu0
    %v5033 = vadd.f32 0.0, %v5032
    %v5034 = vpop.f32.mrf.mxu0
    %5035 = vdwg.mxu0
    %5036 = vrot.lane.b32.xlu0 %v207, 104
    %v5037 = vpop.permute.xlu0 %5036
    %5038 = vrot.lane.b32.xlu0 %v193, 72
    %v5039 = vpop.permute.xlu0 %5038
    %v5040 = vsel %vm212, %v5037, 0
    %v5042 = vsel %vm212, %v5039, 0
    %5044 = vmatprep.subr.mxu0 0.0
    %5045 = vmatpush1.xpose.msra.mxu0 0.0
    %5046 = vmatprep.subr.mxu0 0.0
    %5047 = vmatpush1.xpose.msra.mxu0 0.0
    %5048 = vmatprep.subr.mxu0 0.0
    %5049 = vmatpush1.xpose.msra.mxu0 0.0
    %5050 = vmatprep.subr.mxu0 0.0
    %5051 = vmatpush1.xpose.msra.mxu0 0.0
    %5052 = vmatprep.subr.mxu0 0.0
    %5053 = vmatpush1.xpose.msra.mxu0 0.0
    %5054 = vmatprep.subr.mxu0 0.0
    %5055 = vmatpush1.xpose.msra.mxu0 0.0
    %5056 = vmatprep.subr.mxu0 0.0
    %5057 = vmatpush1.xpose.msra.mxu0 0.0
    %5058 = vmatprep.subr.mxu0 0.0
    %5059 = vmatpush1.xpose.msra.mxu0 0.0
    %5060 = vmatprep.subr.mxu0 0.0
    %5061 = vmatpush1.xpose.msra.mxu0 0.0
    %5062 = vmatprep.subr.mxu0 0.0
    %5063 = vmatpush1.xpose.msra.mxu0 0.0
    %5064 = vmatprep.subr.mxu0 0.0
    %5065 = vmatpush1.xpose.msra.mxu0 0.0
    %5066 = vmatprep.subr.mxu0 0.0
    %5067 = vmatpush1.xpose.msra.mxu0 0.0
    %5068 = vmatprep.subr.mxu0 0.0
    %5069 = vmatpush1.xpose.msra.mxu0 0.0
    %5070 = vmatprep.subr.mxu0 0.0
    %5071 = vmatpush1.xpose.msra.mxu0 0.0
    %5072 = vmatprep.subr.mxu0 0.0
    %5073 = vmatpush1.xpose.msra.mxu0 0.0
    %5074 = vmatprep.subr.mxu0 0.0
    %5075 = vmatpush1.xpose.msra.mxu0 %v5042
    %5076 = vmatprep.subr.mxu0 0.0
    %5077 = vmatpush2.xpose.msra.mxu0 0.0
    %5078 = vmatprep.subr.mxu0 0.0
    %5079 = vmatpush2.xpose.msra.mxu0 0.0
    %5080 = vmatprep.subr.mxu0 0.0
    %5081 = vmatpush2.xpose.msra.mxu0 0.0
    %5082 = vmatprep.subr.mxu0 0.0
    %5083 = vmatpush2.xpose.msra.mxu0 0.0
    %5084 = vmatprep.subr.mxu0 0.0
    %5085 = vmatpush2.xpose.msra.mxu0 0.0
    %5086 = vmatprep.subr.mxu0 0.0
    %5087 = vmatpush2.xpose.msra.mxu0 0.0
    %5088 = vmatprep.subr.mxu0 0.0
    %5089 = vmatpush2.xpose.msra.mxu0 0.0
    %5090 = vmatprep.subr.mxu0 0.0
    %5091 = vmatpush2.xpose.msra.mxu0 0.0
    %5092 = vmatprep.subr.mxu0 0.0
    %5093 = vmatpush2.xpose.msra.mxu0 0.0
    %5094 = vmatprep.subr.mxu0 0.0
    %5095 = vmatpush2.xpose.msra.mxu0 0.0
    %5096 = vmatprep.subr.mxu0 0.0
    %5097 = vmatpush2.xpose.msra.mxu0 0.0
    %5098 = vmatprep.subr.mxu0 0.0
    %5099 = vmatpush2.xpose.msra.mxu0 0.0
    %5100 = vmatprep.subr.mxu0 0.0
    %5101 = vmatpush2.xpose.msra.mxu0 0.0
    %5102 = vmatprep.subr.mxu0 0.0
    %5103 = vmatpush2.xpose.msra.mxu0 0.0
    %5104 = vmatprep.subr.mxu0 0.0
    %5105 = vmatpush2.xpose.msra.mxu0 0.0
    %5106 = vmatprep.subr.mxu0 0.0
    %5107 = vmatpush2.xpose.msra.mxu0 0.0
    %5108 = vmatprep.mubr.f32.mxu0 0.0
    %5109 = vmatmul.mubr.f32.gmra.mxu0 %v5040
    %v5110 = vpop.f32.mrf.mxu0
    %v5111 = vadd.f32 0.0, %v5110
    %v5112 = vpop.f32.mrf.mxu0
    %5113 = vdwg.mxu0
    %5114 = vrot.lane.b32.xlu0 %v208, 104
    %v5115 = vpop.permute.xlu0 %5114
    %5116 = vrot.lane.b32.xlu0 %v198, 72
    %v5117 = vpop.permute.xlu0 %5116
    %v5118 = vsel %vm212, %v5115, 0
    %v5120 = vsel %vm212, %v5117, 0
    %5122 = vmatprep.subr.mxu0 0.0
    %5123 = vmatpush1.xpose.msra.mxu0 0.0
    %5124 = vmatprep.subr.mxu0 0.0
    %5125 = vmatpush1.xpose.msra.mxu0 0.0
    %5126 = vmatprep.subr.mxu0 0.0
    %5127 = vmatpush1.xpose.msra.mxu0 0.0
    %5128 = vmatprep.subr.mxu0 0.0
    %5129 = vmatpush1.xpose.msra.mxu0 0.0
    %5130 = vmatprep.subr.mxu0 0.0
    %5131 = vmatpush1.xpose.msra.mxu0 0.0
    %5132 = vmatprep.subr.mxu0 0.0
    %5133 = vmatpush1.xpose.msra.mxu0 0.0
    %5134 = vmatprep.subr.mxu0 0.0
    %5135 = vmatpush1.xpose.msra.mxu0 0.0
    %5136 = vmatprep.subr.mxu0 0.0
    %5137 = vmatpush1.xpose.msra.mxu0 0.0
    %5138 = vmatprep.subr.mxu0 0.0
    %5139 = vmatpush1.xpose.msra.mxu0 0.0
    %5140 = vmatprep.subr.mxu0 0.0
    %5141 = vmatpush1.xpose.msra.mxu0 0.0
    %5142 = vmatprep.subr.mxu0 0.0
    %5143 = vmatpush1.xpose.msra.mxu0 0.0
    %5144 = vmatprep.subr.mxu0 0.0
    %5145 = vmatpush1.xpose.msra.mxu0 0.0
    %5146 = vmatprep.subr.mxu0 0.0
    %5147 = vmatpush1.xpose.msra.mxu0 0.0
    %5148 = vmatprep.subr.mxu0 0.0
    %5149 = vmatpush1.xpose.msra.mxu0 0.0
    %5150 = vmatprep.subr.mxu0 0.0
    %5151 = vmatpush1.xpose.msra.mxu0 0.0
    %5152 = vmatprep.subr.mxu0 0.0
    %5153 = vmatpush1.xpose.msra.mxu0 %v5120
    %5154 = vmatprep.subr.mxu0 0.0
    %5155 = vmatpush2.xpose.msra.mxu0 0.0
    %5156 = vmatprep.subr.mxu0 0.0
    %5157 = vmatpush2.xpose.msra.mxu0 0.0
    %5158 = vmatprep.subr.mxu0 0.0
    %5159 = vmatpush2.xpose.msra.mxu0 0.0
    %5160 = vmatprep.subr.mxu0 0.0
    %5161 = vmatpush2.xpose.msra.mxu0 0.0
    %5162 = vmatprep.subr.mxu0 0.0
    %5163 = vmatpush2.xpose.msra.mxu0 0.0
    %5164 = vmatprep.subr.mxu0 0.0
    %5165 = vmatpush2.xpose.msra.mxu0 0.0
    %5166 = vmatprep.subr.mxu0 0.0
    %5167 = vmatpush2.xpose.msra.mxu0 0.0
    %5168 = vmatprep.subr.mxu0 0.0
    %5169 = vmatpush2.xpose.msra.mxu0 0.0
    %5170 = vmatprep.subr.mxu0 0.0
    %5171 = vmatpush2.xpose.msra.mxu0 0.0
    %5172 = vmatprep.subr.mxu0 0.0
    %5173 = vmatpush2.xpose.msra.mxu0 0.0
    %5174 = vmatprep.subr.mxu0 0.0
    %5175 = vmatpush2.xpose.msra.mxu0 0.0
    %5176 = vmatprep.subr.mxu0 0.0
    %5177 = vmatpush2.xpose.msra.mxu0 0.0
    %5178 = vmatprep.subr.mxu0 0.0
    %5179 = vmatpush2.xpose.msra.mxu0 0.0
    %5180 = vmatprep.subr.mxu0 0.0
    %5181 = vmatpush2.xpose.msra.mxu0 0.0
    %5182 = vmatprep.subr.mxu0 0.0
    %5183 = vmatpush2.xpose.msra.mxu0 0.0
    %5184 = vmatprep.subr.mxu0 0.0
    %5185 = vmatpush2.xpose.msra.mxu0 0.0
    %5186 = vmatprep.mubr.f32.mxu0 0.0
    %5187 = vmatmul.mubr.f32.gmra.mxu0 %v5118
    %v5188 = vpop.f32.mrf.mxu0
    %v5189 = vadd.f32 0.0, %v5188
    %v5190 = vpop.f32.mrf.mxu0
    %5191 = vdwg.mxu0
    %v5192 = vsel %vm212, %v4643, -inf
    %5193 = vmax.xlane.f32.xlu0 %v5192
    %v5194 = vpop.xlane.xlu0 %5193
    %v5195 = vsel %vm212, %v4721, -inf
    %5196 = vmax.xlane.f32.xlu0 %v5195
    %v5197 = vpop.xlane.xlu0 %5196
    %v5198 = vsel %vm212, %v4799, -inf
    %5199 = vmax.xlane.f32.xlu0 %v5198
    %v5200 = vpop.xlane.xlu0 %5199
    %v5201 = vsel %vm212, %v4877, -inf
    %5202 = vmax.xlane.f32.xlu0 %v5201
    %v5203 = vpop.xlane.xlu0 %5202
    %v5204 = vsel %vm212, %v4955, -inf
    %5205 = vmax.xlane.f32.xlu0 %v5204
    %v5206 = vpop.xlane.xlu0 %5205
    %v5207 = vsel %vm212, %v5033, -inf
    %5208 = vmax.xlane.f32.xlu0 %v5207
    %v5209 = vpop.xlane.xlu0 %5208
    %v5210 = vsel %vm212, %v5111, -inf
    %5211 = vmax.xlane.f32.xlu0 %v5210
    %v5212 = vpop.xlane.xlu0 %5211
    %v5213 = vsel %vm212, %v5189, -inf
    %5214 = vmax.xlane.f32.xlu0 %v5213
    %v5215 = vpop.xlane.xlu0 %5214
    %v5216 = vsub.f32 %v4643, %v5194
    %v5217 = vsub.f32 %v4721, %v5197
    %v5218 = vsub.f32 %v4799, %v5200
    %v5219 = vsub.f32 %v4877, %v5203
    %v5220 = vsub.f32 %v4955, %v5206
    %v5221 = vsub.f32 %v5033, %v5209
    %v5222 = vsub.f32 %v5111, %v5212
    %v5223 = vsub.f32 %v5189, %v5215
    %v5224 = vmul.f32 %v5216, 1.442695
    %v5225 = vpow.pop %v5224
    %v5226 = vmul.f32 %v5217, 1.442695
    %v5227 = vpow.pop %v5226
    %v5228 = vmul.f32 %v5218, 1.442695
    %v5229 = vpow.pop %v5228
    %v5230 = vmul.f32 %v5219, 1.442695
    %v5231 = vpow.pop %v5230
    %v5232 = vmul.f32 %v5220, 1.442695
    %v5233 = vpow.pop %v5232
    %v5234 = vmul.f32 %v5221, 1.442695
    %v5235 = vpow.pop %v5234
    %v5236 = vmul.f32 %v5222, 1.442695
    %v5237 = vpow.pop %v5236
    %v5238 = vmul.f32 %v5223, 1.442695
    %v5239 = vpow.pop %v5238
    %v5240 = vsel %vm212, %v5225, 0.0
    %5241 = vadd.xlane.f32.xlu0 %v5240
    %v5242 = vpop.xlane.xlu0 %5241
    %v5243 = vsel %vm212, %v5227, 0.0
    %5244 = vadd.xlane.f32.xlu0 %v5243
    %v5245 = vpop.xlane.xlu0 %5244
    %v5246 = vsel %vm212, %v5229, 0.0
    %5247 = vadd.xlane.f32.xlu0 %v5246
    %v5248 = vpop.xlane.xlu0 %5247
    %v5249 = vsel %vm212, %v5231, 0.0
    %5250 = vadd.xlane.f32.xlu0 %v5249
    %v5251 = vpop.xlane.xlu0 %5250
    %v5252 = vsel %vm212, %v5233, 0.0
    %5253 = vadd.xlane.f32.xlu0 %v5252
    %v5254 = vpop.xlane.xlu0 %5253
    %v5255 = vsel %vm212, %v5235, 0.0
    %5256 = vadd.xlane.f32.xlu0 %v5255
    %v5257 = vpop.xlane.xlu0 %5256
    %v5258 = vsel %vm212, %v5237, 0.0
    %5259 = vadd.xlane.f32.xlu0 %v5258
    %v5260 = vpop.xlane.xlu0 %5259
    %v5261 = vsel %vm212, %v5239, 0.0
    %5262 = vadd.xlane.f32.xlu0 %v5261
    %v5263 = vpop.xlane.xlu0 %5262
    %5264 = vrot.lane.b32.xlu0 %v163, 40
    %v5265 = vpop.permute.xlu0 %5264
    %v5268 = vsel %vm212, %v5225, 0
    %5270 = vmatprep.subr.mxu0 0.0
    %5271 = vmatpush1.msra.mxu0 0.0
    %5272 = vmatprep.subr.mxu0 0.0
    %5273 = vmatpush1.msra.mxu0 0.0
    %5274 = vmatprep.subr.mxu0 0.0
    %5275 = vmatpush1.msra.mxu0 0.0
    %5276 = vmatprep.subr.mxu0 0.0
    %5277 = vmatpush1.msra.mxu0 0.0
    %5278 = vmatprep.subr.mxu0 0.0
    %5279 = vmatpush1.msra.mxu0 0.0
    %5280 = vmatprep.subr.mxu0 0.0
    %5281 = vmatpush1.msra.mxu0 0.0
    %5282 = vmatprep.subr.mxu0 0.0
    %5283 = vmatpush1.msra.mxu0 0.0
    %5284 = vmatprep.subr.mxu0 0.0
    %5285 = vmatpush1.msra.mxu0 0.0
    %5286 = vmatprep.subr.mxu0 0.0
    %5287 = vmatpush1.msra.mxu0 0.0
    %5288 = vmatprep.subr.mxu0 0.0
    %5289 = vmatpush1.msra.mxu0 0.0
    %5290 = vmatprep.subr.mxu0 0.0
    %5291 = vmatpush1.msra.mxu0 0.0
    %5292 = vmatprep.subr.mxu0 0.0
    %5293 = vmatpush1.msra.mxu0 0.0
    %5294 = vmatprep.subr.mxu0 0.0
    %5295 = vmatpush1.msra.mxu0 0.0
    %5296 = vmatprep.subr.mxu0 0.0
    %5297 = vmatpush1.msra.mxu0 0.0
    %5298 = vmatprep.subr.mxu0 0.0
    %5299 = vmatpush1.msra.mxu0 0.0
    %5300 = vmatprep.subr.mxu0 0.0
    %5301 = vmatpush1.msra.mxu0 %v5265
    %5302 = vmatprep.subr.mxu0 0.0
    %5303 = vmatpush2.msra.mxu0 0.0
    %5304 = vmatprep.subr.mxu0 0.0
    %5305 = vmatpush2.msra.mxu0 0.0
    %5306 = vmatprep.subr.mxu0 0.0
    %5307 = vmatpush2.msra.mxu0 0.0
    %5308 = vmatprep.subr.mxu0 0.0
    %5309 = vmatpush2.msra.mxu0 0.0
    %5310 = vmatprep.subr.mxu0 0.0
    %5311 = vmatpush2.msra.mxu0 0.0
    %5312 = vmatprep.subr.mxu0 0.0
    %5313 = vmatpush2.msra.mxu0 0.0
    %5314 = vmatprep.subr.mxu0 0.0
    %5315 = vmatpush2.msra.mxu0 0.0
    %5316 = vmatprep.subr.mxu0 0.0
    %5317 = vmatpush2.msra.mxu0 0.0
    %5318 = vmatprep.subr.mxu0 0.0
    %5319 = vmatpush2.msra.mxu0 0.0
    %5320 = vmatprep.subr.mxu0 0.0
    %5321 = vmatpush2.msra.mxu0 0.0
    %5322 = vmatprep.subr.mxu0 0.0
    %5323 = vmatpush2.msra.mxu0 0.0
    %5324 = vmatprep.subr.mxu0 0.0
    %5325 = vmatpush2.msra.mxu0 0.0
    %5326 = vmatprep.subr.mxu0 0.0
    %5327 = vmatpush2.msra.mxu0 0.0
    %5328 = vmatprep.subr.mxu0 0.0
    %5329 = vmatpush2.msra.mxu0 0.0
    %5330 = vmatprep.subr.mxu0 0.0
    %5331 = vmatpush2.msra.mxu0 0.0
    %5332 = vmatprep.subr.mxu0 0.0
    %5333 = vmatpush2.msra.mxu0 0.0
    %5334 = vmatprep.mubr.f32.mxu0 0.0
    %5335 = vmatmul.mubr.f32.gmra.mxu0 %v5268
    %v5336 = vpop.f32.mrf.mxu0
    %v5337 = vadd.f32 0.0, %v5336
    %v5338 = vpop.f32.mrf.mxu0
    %5339 = vdwg.mxu0
    %5340 = vrot.lane.b32.xlu0 %v168, 40
    %v5341 = vpop.permute.xlu0 %5340
    %v5344 = vsel %vm212, %v5227, 0
    %5346 = vmatprep.subr.mxu0 0.0
    %5347 = vmatpush1.msra.mxu0 0.0
    %5348 = vmatprep.subr.mxu0 0.0
    %5349 = vmatpush1.msra.mxu0 0.0
    %5350 = vmatprep.subr.mxu0 0.0
    %5351 = vmatpush1.msra.mxu0 0.0
    %5352 = vmatprep.subr.mxu0 0.0
    %5353 = vmatpush1.msra.mxu0 0.0
    %5354 = vmatprep.subr.mxu0 0.0
    %5355 = vmatpush1.msra.mxu0 0.0
    %5356 = vmatprep.subr.mxu0 0.0
    %5357 = vmatpush1.msra.mxu0 0.0
    %5358 = vmatprep.subr.mxu0 0.0
    %5359 = vmatpush1.msra.mxu0 0.0
    %5360 = vmatprep.subr.mxu0 0.0
    %5361 = vmatpush1.msra.mxu0 0.0
    %5362 = vmatprep.subr.mxu0 0.0
    %5363 = vmatpush1.msra.mxu0 0.0
    %5364 = vmatprep.subr.mxu0 0.0
    %5365 = vmatpush1.msra.mxu0 0.0
    %5366 = vmatprep.subr.mxu0 0.0
    %5367 = vmatpush1.msra.mxu0 0.0
    %5368 = vmatprep.subr.mxu0 0.0
    %5369 = vmatpush1.msra.mxu0 0.0
    %5370 = vmatprep.subr.mxu0 0.0
    %5371 = vmatpush1.msra.mxu0 0.0
    %5372 = vmatprep.subr.mxu0 0.0
    %5373 = vmatpush1.msra.mxu0 0.0
    %5374 = vmatprep.subr.mxu0 0.0
    %5375 = vmatpush1.msra.mxu0 0.0
    %5376 = vmatprep.subr.mxu0 0.0
    %5377 = vmatpush1.msra.mxu0 %v5341
    %5378 = vmatprep.subr.mxu0 0.0
    %5379 = vmatpush2.msra.mxu0 0.0
    %5380 = vmatprep.subr.mxu0 0.0
    %5381 = vmatpush2.msra.mxu0 0.0
    %5382 = vmatprep.subr.mxu0 0.0
    %5383 = vmatpush2.msra.mxu0 0.0
    %5384 = vmatprep.subr.mxu0 0.0
    %5385 = vmatpush2.msra.mxu0 0.0
    %5386 = vmatprep.subr.mxu0 0.0
    %5387 = vmatpush2.msra.mxu0 0.0
    %5388 = vmatprep.subr.mxu0 0.0
    %5389 = vmatpush2.msra.mxu0 0.0
    %5390 = vmatprep.subr.mxu0 0.0
    %5391 = vmatpush2.msra.mxu0 0.0
    %5392 = vmatprep.subr.mxu0 0.0
    %5393 = vmatpush2.msra.mxu0 0.0
    %5394 = vmatprep.subr.mxu0 0.0
    %5395 = vmatpush2.msra.mxu0 0.0
    %5396 = vmatprep.subr.mxu0 0.0
    %5397 = vmatpush2.msra.mxu0 0.0
    %5398 = vmatprep.subr.mxu0 0.0
    %5399 = vmatpush2.msra.mxu0 0.0
    %5400 = vmatprep.subr.mxu0 0.0
    %5401 = vmatpush2.msra.mxu0 0.0
    %5402 = vmatprep.subr.mxu0 0.0
    %5403 = vmatpush2.msra.mxu0 0.0
    %5404 = vmatprep.subr.mxu0 0.0
    %5405 = vmatpush2.msra.mxu0 0.0
    %5406 = vmatprep.subr.mxu0 0.0
    %5407 = vmatpush2.msra.mxu0 0.0
    %5408 = vmatprep.subr.mxu0 0.0
    %5409 = vmatpush2.msra.mxu0 0.0
    %5410 = vmatprep.mubr.f32.mxu0 0.0
    %5411 = vmatmul.mubr.f32.gmra.mxu0 %v5344
    %v5412 = vpop.f32.mrf.mxu0
    %v5413 = vadd.f32 0.0, %v5412
    %v5414 = vpop.f32.mrf.mxu0
    %5415 = vdwg.mxu0
    %5416 = vrot.lane.b32.xlu0 %v173, 40
    %v5417 = vpop.permute.xlu0 %5416
    %v5420 = vsel %vm212, %v5229, 0
    %5422 = vmatprep.subr.mxu0 0.0
    %5423 = vmatpush1.msra.mxu0 0.0
    %5424 = vmatprep.subr.mxu0 0.0
    %5425 = vmatpush1.msra.mxu0 0.0
    %5426 = vmatprep.subr.mxu0 0.0
    %5427 = vmatpush1.msra.mxu0 0.0
    %5428 = vmatprep.subr.mxu0 0.0
    %5429 = vmatpush1.msra.mxu0 0.0
    %5430 = vmatprep.subr.mxu0 0.0
    %5431 = vmatpush1.msra.mxu0 0.0
    %5432 = vmatprep.subr.mxu0 0.0
    %5433 = vmatpush1.msra.mxu0 0.0
    %5434 = vmatprep.subr.mxu0 0.0
    %5435 = vmatpush1.msra.mxu0 0.0
    %5436 = vmatprep.subr.mxu0 0.0
    %5437 = vmatpush1.msra.mxu0 0.0
    %5438 = vmatprep.subr.mxu0 0.0
    %5439 = vmatpush1.msra.mxu0 0.0
    %5440 = vmatprep.subr.mxu0 0.0
    %5441 = vmatpush1.msra.mxu0 0.0
    %5442 = vmatprep.subr.mxu0 0.0
    %5443 = vmatpush1.msra.mxu0 0.0
    %5444 = vmatprep.subr.mxu0 0.0
    %5445 = vmatpush1.msra.mxu0 0.0
    %5446 = vmatprep.subr.mxu0 0.0
    %5447 = vmatpush1.msra.mxu0 0.0
    %5448 = vmatprep.subr.mxu0 0.0
    %5449 = vmatpush1.msra.mxu0 0.0
    %5450 = vmatprep.subr.mxu0 0.0
    %5451 = vmatpush1.msra.mxu0 0.0
    %5452 = vmatprep.subr.mxu0 0.0
    %5453 = vmatpush1.msra.mxu0 %v5417
    %5454 = vmatprep.subr.mxu0 0.0
    %5455 = vmatpush2.msra.mxu0 0.0
    %5456 = vmatprep.subr.mxu0 0.0
    %5457 = vmatpush2.msra.mxu0 0.0
    %5458 = vmatprep.subr.mxu0 0.0
    %5459 = vmatpush2.msra.mxu0 0.0
    %5460 = vmatprep.subr.mxu0 0.0
    %5461 = vmatpush2.msra.mxu0 0.0
    %5462 = vmatprep.subr.mxu0 0.0
    %5463 = vmatpush2.msra.mxu0 0.0
    %5464 = vmatprep.subr.mxu0 0.0
    %5465 = vmatpush2.msra.mxu0 0.0
    %5466 = vmatprep.subr.mxu0 0.0
    %5467 = vmatpush2.msra.mxu0 0.0
    %5468 = vmatprep.subr.mxu0 0.0
    %5469 = vmatpush2.msra.mxu0 0.0
    %5470 = vmatprep.subr.mxu0 0.0
    %5471 = vmatpush2.msra.mxu0 0.0
    %5472 = vmatprep.subr.mxu0 0.0
    %5473 = vmatpush2.msra.mxu0 0.0
    %5474 = vmatprep.subr.mxu0 0.0
    %5475 = vmatpush2.msra.mxu0 0.0
    %5476 = vmatprep.subr.mxu0 0.0
    %5477 = vmatpush2.msra.mxu0 0.0
    %5478 = vmatprep.subr.mxu0 0.0
    %5479 = vmatpush2.msra.mxu0 0.0
    %5480 = vmatprep.subr.mxu0 0.0
    %5481 = vmatpush2.msra.mxu0 0.0
    %5482 = vmatprep.subr.mxu0 0.0
    %5483 = vmatpush2.msra.mxu0 0.0
    %5484 = vmatprep.subr.mxu0 0.0
    %5485 = vmatpush2.msra.mxu0 0.0
    %5486 = vmatprep.mubr.f32.mxu0 0.0
    %5487 = vmatmul.mubr.f32.gmra.mxu0 %v5420
    %v5488 = vpop.f32.mrf.mxu0
    %v5489 = vadd.f32 0.0, %v5488
    %v5490 = vpop.f32.mrf.mxu0
    %5491 = vdwg.mxu0
    %5492 = vrot.lane.b32.xlu0 %v178, 40
    %v5493 = vpop.permute.xlu0 %5492
    %v5496 = vsel %vm212, %v5231, 0
    %5498 = vmatprep.subr.mxu0 0.0
    %5499 = vmatpush1.msra.mxu0 0.0
    %5500 = vmatprep.subr.mxu0 0.0
    %5501 = vmatpush1.msra.mxu0 0.0
    %5502 = vmatprep.subr.mxu0 0.0
    %5503 = vmatpush1.msra.mxu0 0.0
    %5504 = vmatprep.subr.mxu0 0.0
    %5505 = vmatpush1.msra.mxu0 0.0
    %5506 = vmatprep.subr.mxu0 0.0
    %5507 = vmatpush1.msra.mxu0 0.0
    %5508 = vmatprep.subr.mxu0 0.0
    %5509 = vmatpush1.msra.mxu0 0.0
    %5510 = vmatprep.subr.mxu0 0.0
    %5511 = vmatpush1.msra.mxu0 0.0
    %5512 = vmatprep.subr.mxu0 0.0
    %5513 = vmatpush1.msra.mxu0 0.0
    %5514 = vmatprep.subr.mxu0 0.0
    %5515 = vmatpush1.msra.mxu0 0.0
    %5516 = vmatprep.subr.mxu0 0.0
    %5517 = vmatpush1.msra.mxu0 0.0
    %5518 = vmatprep.subr.mxu0 0.0
    %5519 = vmatpush1.msra.mxu0 0.0
    %5520 = vmatprep.subr.mxu0 0.0
    %5521 = vmatpush1.msra.mxu0 0.0
    %5522 = vmatprep.subr.mxu0 0.0
    %5523 = vmatpush1.msra.mxu0 0.0
    %5524 = vmatprep.subr.mxu0 0.0
    %5525 = vmatpush1.msra.mxu0 0.0
    %5526 = vmatprep.subr.mxu0 0.0
    %5527 = vmatpush1.msra.mxu0 0.0
    %5528 = vmatprep.subr.mxu0 0.0
    %5529 = vmatpush1.msra.mxu0 %v5493
    %5530 = vmatprep.subr.mxu0 0.0
    %5531 = vmatpush2.msra.mxu0 0.0
    %5532 = vmatprep.subr.mxu0 0.0
    %5533 = vmatpush2.msra.mxu0 0.0
    %5534 = vmatprep.subr.mxu0 0.0
    %5535 = vmatpush2.msra.mxu0 0.0
    %5536 = vmatprep.subr.mxu0 0.0
    %5537 = vmatpush2.msra.mxu0 0.0
    %5538 = vmatprep.subr.mxu0 0.0
    %5539 = vmatpush2.msra.mxu0 0.0
    %5540 = vmatprep.subr.mxu0 0.0
    %5541 = vmatpush2.msra.mxu0 0.0
    %5542 = vmatprep.subr.mxu0 0.0
    %5543 = vmatpush2.msra.mxu0 0.0
    %5544 = vmatprep.subr.mxu0 0.0
    %5545 = vmatpush2.msra.mxu0 0.0
    %5546 = vmatprep.subr.mxu0 0.0
    %5547 = vmatpush2.msra.mxu0 0.0
    %5548 = vmatprep.subr.mxu0 0.0
    %5549 = vmatpush2.msra.mxu0 0.0
    %5550 = vmatprep.subr.mxu0 0.0
    %5551 = vmatpush2.msra.mxu0 0.0
    %5552 = vmatprep.subr.mxu0 0.0
    %5553 = vmatpush2.msra.mxu0 0.0
    %5554 = vmatprep.subr.mxu0 0.0
    %5555 = vmatpush2.msra.mxu0 0.0
    %5556 = vmatprep.subr.mxu0 0.0
    %5557 = vmatpush2.msra.mxu0 0.0
    %5558 = vmatprep.subr.mxu0 0.0
    %5559 = vmatpush2.msra.mxu0 0.0
    %5560 = vmatprep.subr.mxu0 0.0
    %5561 = vmatpush2.msra.mxu0 0.0
    %5562 = vmatprep.mubr.f32.mxu0 0.0
    %5563 = vmatmul.mubr.f32.gmra.mxu0 %v5496
    %v5564 = vpop.f32.mrf.mxu0
    %v5565 = vadd.f32 0.0, %v5564
    %v5566 = vpop.f32.mrf.mxu0
    %5567 = vdwg.mxu0
    %5568 = vrot.lane.b32.xlu0 %v183, 40
    %v5569 = vpop.permute.xlu0 %5568
    %v5572 = vsel %vm212, %v5233, 0
    %5574 = vmatprep.subr.mxu0 0.0
    %5575 = vmatpush1.msra.mxu0 0.0
    %5576 = vmatprep.subr.mxu0 0.0
    %5577 = vmatpush1.msra.mxu0 0.0
    %5578 = vmatprep.subr.mxu0 0.0
    %5579 = vmatpush1.msra.mxu0 0.0
    %5580 = vmatprep.subr.mxu0 0.0
    %5581 = vmatpush1.msra.mxu0 0.0
    %5582 = vmatprep.subr.mxu0 0.0
    %5583 = vmatpush1.msra.mxu0 0.0
    %5584 = vmatprep.subr.mxu0 0.0
    %5585 = vmatpush1.msra.mxu0 0.0
    %5586 = vmatprep.subr.mxu0 0.0
    %5587 = vmatpush1.msra.mxu0 0.0
    %5588 = vmatprep.subr.mxu0 0.0
    %5589 = vmatpush1.msra.mxu0 0.0
    %5590 = vmatprep.subr.mxu0 0.0
    %5591 = vmatpush1.msra.mxu0 0.0
    %5592 = vmatprep.subr.mxu0 0.0
    %5593 = vmatpush1.msra.mxu0 0.0
    %5594 = vmatprep.subr.mxu0 0.0
    %5595 = vmatpush1.msra.mxu0 0.0
    %5596 = vmatprep.subr.mxu0 0.0
    %5597 = vmatpush1.msra.mxu0 0.0
    %5598 = vmatprep.subr.mxu0 0.0
    %5599 = vmatpush1.msra.mxu0 0.0
    %5600 = vmatprep.subr.mxu0 0.0
    %5601 = vmatpush1.msra.mxu0 0.0
    %5602 = vmatprep.subr.mxu0 0.0
    %5603 = vmatpush1.msra.mxu0 0.0
    %5604 = vmatprep.subr.mxu0 0.0
    %5605 = vmatpush1.msra.mxu0 %v5569
    %5606 = vmatprep.subr.mxu0 0.0
    %5607 = vmatpush2.msra.mxu0 0.0
    %5608 = vmatprep.subr.mxu0 0.0
    %5609 = vmatpush2.msra.mxu0 0.0
    %5610 = vmatprep.subr.mxu0 0.0
    %5611 = vmatpush2.msra.mxu0 0.0
    %5612 = vmatprep.subr.mxu0 0.0
    %5613 = vmatpush2.msra.mxu0 0.0
    %5614 = vmatprep.subr.mxu0 0.0
    %5615 = vmatpush2.msra.mxu0 0.0
    %5616 = vmatprep.subr.mxu0 0.0
    %5617 = vmatpush2.msra.mxu0 0.0
    %5618 = vmatprep.subr.mxu0 0.0
    %5619 = vmatpush2.msra.mxu0 0.0
    %5620 = vmatprep.subr.mxu0 0.0
    %5621 = vmatpush2.msra.mxu0 0.0
    %5622 = vmatprep.subr.mxu0 0.0
    %5623 = vmatpush2.msra.mxu0 0.0
    %5624 = vmatprep.subr.mxu0 0.0
    %5625 = vmatpush2.msra.mxu0 0.0
    %5626 = vmatprep.subr.mxu0 0.0
    %5627 = vmatpush2.msra.mxu0 0.0
    %5628 = vmatprep.subr.mxu0 0.0
    %5629 = vmatpush2.msra.mxu0 0.0
    %5630 = vmatprep.subr.mxu0 0.0
    %5631 = vmatpush2.msra.mxu0 0.0
    %5632 = vmatprep.subr.mxu0 0.0
    %5633 = vmatpush2.msra.mxu0 0.0
    %5634 = vmatprep.subr.mxu0 0.0
    %5635 = vmatpush2.msra.mxu0 0.0
    %5636 = vmatprep.subr.mxu0 0.0
    %5637 = vmatpush2.msra.mxu0 0.0
    %5638 = vmatprep.mubr.f32.mxu0 0.0
    %5639 = vmatmul.mubr.f32.gmra.mxu0 %v5572
    %v5640 = vpop.f32.mrf.mxu0
    %v5641 = vadd.f32 0.0, %v5640
    %v5642 = vpop.f32.mrf.mxu0
    %5643 = vdwg.mxu0
    %5644 = vrot.lane.b32.xlu0 %v188, 40
    %v5645 = vpop.permute.xlu0 %5644
    %v5648 = vsel %vm212, %v5235, 0
    %5650 = vmatprep.subr.mxu0 0.0
    %5651 = vmatpush1.msra.mxu0 0.0
    %5652 = vmatprep.subr.mxu0 0.0
    %5653 = vmatpush1.msra.mxu0 0.0
    %5654 = vmatprep.subr.mxu0 0.0
    %5655 = vmatpush1.msra.mxu0 0.0
    %5656 = vmatprep.subr.mxu0 0.0
    %5657 = vmatpush1.msra.mxu0 0.0
    %5658 = vmatprep.subr.mxu0 0.0
    %5659 = vmatpush1.msra.mxu0 0.0
    %5660 = vmatprep.subr.mxu0 0.0
    %5661 = vmatpush1.msra.mxu0 0.0
    %5662 = vmatprep.subr.mxu0 0.0
    %5663 = vmatpush1.msra.mxu0 0.0
    %5664 = vmatprep.subr.mxu0 0.0
    %5665 = vmatpush1.msra.mxu0 0.0
    %5666 = vmatprep.subr.mxu0 0.0
    %5667 = vmatpush1.msra.mxu0 0.0
    %5668 = vmatprep.subr.mxu0 0.0
    %5669 = vmatpush1.msra.mxu0 0.0
    %5670 = vmatprep.subr.mxu0 0.0
    %5671 = vmatpush1.msra.mxu0 0.0
    %5672 = vmatprep.subr.mxu0 0.0
    %5673 = vmatpush1.msra.mxu0 0.0
    %5674 = vmatprep.subr.mxu0 0.0
    %5675 = vmatpush1.msra.mxu0 0.0
    %5676 = vmatprep.subr.mxu0 0.0
    %5677 = vmatpush1.msra.mxu0 0.0
    %5678 = vmatprep.subr.mxu0 0.0
    %5679 = vmatpush1.msra.mxu0 0.0
    %5680 = vmatprep.subr.mxu0 0.0
    %5681 = vmatpush1.msra.mxu0 %v5645
    %5682 = vmatprep.subr.mxu0 0.0
    %5683 = vmatpush2.msra.mxu0 0.0
    %5684 = vmatprep.subr.mxu0 0.0
    %5685 = vmatpush2.msra.mxu0 0.0
    %5686 = vmatprep.subr.mxu0 0.0
    %5687 = vmatpush2.msra.mxu0 0.0
    %5688 = vmatprep.subr.mxu0 0.0
    %5689 = vmatpush2.msra.mxu0 0.0
    %5690 = vmatprep.subr.mxu0 0.0
    %5691 = vmatpush2.msra.mxu0 0.0
    %5692 = vmatprep.subr.mxu0 0.0
    %5693 = vmatpush2.msra.mxu0 0.0
    %5694 = vmatprep.subr.mxu0 0.0
    %5695 = vmatpush2.msra.mxu0 0.0
    %5696 = vmatprep.subr.mxu0 0.0
    %5697 = vmatpush2.msra.mxu0 0.0
    %5698 = vmatprep.subr.mxu0 0.0
    %5699 = vmatpush2.msra.mxu0 0.0
    %5700 = vmatprep.subr.mxu0 0.0
    %5701 = vmatpush2.msra.mxu0 0.0
    %5702 = vmatprep.subr.mxu0 0.0
    %5703 = vmatpush2.msra.mxu0 0.0
    %5704 = vmatprep.subr.mxu0 0.0
    %5705 = vmatpush2.msra.mxu0 0.0
    %5706 = vmatprep.subr.mxu0 0.0
    %5707 = vmatpush2.msra.mxu0 0.0
    %5708 = vmatprep.subr.mxu0 0.0
    %5709 = vmatpush2.msra.mxu0 0.0
    %5710 = vmatprep.subr.mxu0 0.0
    %5711 = vmatpush2.msra.mxu0 0.0
    %5712 = vmatprep.subr.mxu0 0.0
    %5713 = vmatpush2.msra.mxu0 0.0
    %5714 = vmatprep.mubr.f32.mxu0 0.0
    %5715 = vmatmul.mubr.f32.gmra.mxu0 %v5648
    %v5716 = vpop.f32.mrf.mxu0
    %v5717 = vadd.f32 0.0, %v5716
    %v5718 = vpop.f32.mrf.mxu0
    %5719 = vdwg.mxu0
    %5720 = vrot.lane.b32.xlu0 %v193, 40
    %v5721 = vpop.permute.xlu0 %5720
    %v5724 = vsel %vm212, %v5237, 0
    %5726 = vmatprep.subr.mxu0 0.0
    %5727 = vmatpush1.msra.mxu0 0.0
    %5728 = vmatprep.subr.mxu0 0.0
    %5729 = vmatpush1.msra.mxu0 0.0
    %5730 = vmatprep.subr.mxu0 0.0
    %5731 = vmatpush1.msra.mxu0 0.0
    %5732 = vmatprep.subr.mxu0 0.0
    %5733 = vmatpush1.msra.mxu0 0.0
    %5734 = vmatprep.subr.mxu0 0.0
    %5735 = vmatpush1.msra.mxu0 0.0
    %5736 = vmatprep.subr.mxu0 0.0
    %5737 = vmatpush1.msra.mxu0 0.0
    %5738 = vmatprep.subr.mxu0 0.0
    %5739 = vmatpush1.msra.mxu0 0.0
    %5740 = vmatprep.subr.mxu0 0.0
    %5741 = vmatpush1.msra.mxu0 0.0
    %5742 = vmatprep.subr.mxu0 0.0
    %5743 = vmatpush1.msra.mxu0 0.0
    %5744 = vmatprep.subr.mxu0 0.0
    %5745 = vmatpush1.msra.mxu0 0.0
    %5746 = vmatprep.subr.mxu0 0.0
    %5747 = vmatpush1.msra.mxu0 0.0
    %5748 = vmatprep.subr.mxu0 0.0
    %5749 = vmatpush1.msra.mxu0 0.0
    %5750 = vmatprep.subr.mxu0 0.0
    %5751 = vmatpush1.msra.mxu0 0.0
    %5752 = vmatprep.subr.mxu0 0.0
    %5753 = vmatpush1.msra.mxu0 0.0
    %5754 = vmatprep.subr.mxu0 0.0
    %5755 = vmatpush1.msra.mxu0 0.0
    %5756 = vmatprep.subr.mxu0 0.0
    %5757 = vmatpush1.msra.mxu0 %v5721
    %5758 = vmatprep.subr.mxu0 0.0
    %5759 = vmatpush2.msra.mxu0 0.0
    %5760 = vmatprep.subr.mxu0 0.0
    %5761 = vmatpush2.msra.mxu0 0.0
    %5762 = vmatprep.subr.mxu0 0.0
    %5763 = vmatpush2.msra.mxu0 0.0
    %5764 = vmatprep.subr.mxu0 0.0
    %5765 = vmatpush2.msra.mxu0 0.0
    %5766 = vmatprep.subr.mxu0 0.0
    %5767 = vmatpush2.msra.mxu0 0.0
    %5768 = vmatprep.subr.mxu0 0.0
    %5769 = vmatpush2.msra.mxu0 0.0
    %5770 = vmatprep.subr.mxu0 0.0
    %5771 = vmatpush2.msra.mxu0 0.0
    %5772 = vmatprep.subr.mxu0 0.0
    %5773 = vmatpush2.msra.mxu0 0.0
    %5774 = vmatprep.subr.mxu0 0.0
    %5775 = vmatpush2.msra.mxu0 0.0
    %5776 = vmatprep.subr.mxu0 0.0
    %5777 = vmatpush2.msra.mxu0 0.0
    %5778 = vmatprep.subr.mxu0 0.0
    %5779 = vmatpush2.msra.mxu0 0.0
    %5780 = vmatprep.subr.mxu0 0.0
    %5781 = vmatpush2.msra.mxu0 0.0
    %5782 = vmatprep.subr.mxu0 0.0
    %5783 = vmatpush2.msra.mxu0 0.0
    %5784 = vmatprep.subr.mxu0 0.0
    %5785 = vmatpush2.msra.mxu0 0.0
    %5786 = vmatprep.subr.mxu0 0.0
    %5787 = vmatpush2.msra.mxu0 0.0
    %5788 = vmatprep.subr.mxu0 0.0
    %5789 = vmatpush2.msra.mxu0 0.0
    %5790 = vmatprep.mubr.f32.mxu0 0.0
    %5791 = vmatmul.mubr.f32.gmra.mxu0 %v5724
    %v5792 = vpop.f32.mrf.mxu0
    %v5793 = vadd.f32 0.0, %v5792
    %v5794 = vpop.f32.mrf.mxu0
    %5795 = vdwg.mxu0
    %5796 = vrot.lane.b32.xlu0 %v198, 40
    %v5797 = vpop.permute.xlu0 %5796
    %v5800 = vsel %vm212, %v5239, 0
    %5802 = vmatprep.subr.mxu0 0.0
    %5803 = vmatpush1.msra.mxu0 0.0
    %5804 = vmatprep.subr.mxu0 0.0
    %5805 = vmatpush1.msra.mxu0 0.0
    %5806 = vmatprep.subr.mxu0 0.0
    %5807 = vmatpush1.msra.mxu0 0.0
    %5808 = vmatprep.subr.mxu0 0.0
    %5809 = vmatpush1.msra.mxu0 0.0
    %5810 = vmatprep.subr.mxu0 0.0
    %5811 = vmatpush1.msra.mxu0 0.0
    %5812 = vmatprep.subr.mxu0 0.0
    %5813 = vmatpush1.msra.mxu0 0.0
    %5814 = vmatprep.subr.mxu0 0.0
    %5815 = vmatpush1.msra.mxu0 0.0
    %5816 = vmatprep.subr.mxu0 0.0
    %5817 = vmatpush1.msra.mxu0 0.0
    %5818 = vmatprep.subr.mxu0 0.0
    %5819 = vmatpush1.msra.mxu0 0.0
    %5820 = vmatprep.subr.mxu0 0.0
    %5821 = vmatpush1.msra.mxu0 0.0
    %5822 = vmatprep.subr.mxu0 0.0
    %5823 = vmatpush1.msra.mxu0 0.0
    %5824 = vmatprep.subr.mxu0 0.0
    %5825 = vmatpush1.msra.mxu0 0.0
    %5826 = vmatprep.subr.mxu0 0.0
    %5827 = vmatpush1.msra.mxu0 0.0
    %5828 = vmatprep.subr.mxu0 0.0
    %5829 = vmatpush1.msra.mxu0 0.0
    %5830 = vmatprep.subr.mxu0 0.0
    %5831 = vmatpush1.msra.mxu0 0.0
    %5832 = vmatprep.subr.mxu0 0.0
    %5833 = vmatpush1.msra.mxu0 %v5797
    %5834 = vmatprep.subr.mxu0 0.0
    %5835 = vmatpush2.msra.mxu0 0.0
    %5836 = vmatprep.subr.mxu0 0.0
    %5837 = vmatpush2.msra.mxu0 0.0
    %5838 = vmatprep.subr.mxu0 0.0
    %5839 = vmatpush2.msra.mxu0 0.0
    %5840 = vmatprep.subr.mxu0 0.0
    %5841 = vmatpush2.msra.mxu0 0.0
    %5842 = vmatprep.subr.mxu0 0.0
    %5843 = vmatpush2.msra.mxu0 0.0
    %5844 = vmatprep.subr.mxu0 0.0
    %5845 = vmatpush2.msra.mxu0 0.0
    %5846 = vmatprep.subr.mxu0 0.0
    %5847 = vmatpush2.msra.mxu0 0.0
    %5848 = vmatprep.subr.mxu0 0.0
    %5849 = vmatpush2.msra.mxu0 0.0
    %5850 = vmatprep.subr.mxu0 0.0
    %5851 = vmatpush2.msra.mxu0 0.0
    %5852 = vmatprep.subr.mxu0 0.0
    %5853 = vmatpush2.msra.mxu0 0.0
    %5854 = vmatprep.subr.mxu0 0.0
    %5855 = vmatpush2.msra.mxu0 0.0
    %5856 = vmatprep.subr.mxu0 0.0
    %5857 = vmatpush2.msra.mxu0 0.0
    %5858 = vmatprep.subr.mxu0 0.0
    %5859 = vmatpush2.msra.mxu0 0.0
    %5860 = vmatprep.subr.mxu0 0.0
    %5861 = vmatpush2.msra.mxu0 0.0
    %5862 = vmatprep.subr.mxu0 0.0
    %5863 = vmatpush2.msra.mxu0 0.0
    %5864 = vmatprep.subr.mxu0 0.0
    %5865 = vmatpush2.msra.mxu0 0.0
    %5866 = vmatprep.mubr.f32.mxu0 0.0
    %5867 = vmatmul.mubr.f32.gmra.mxu0 %v5800
    %v5868 = vpop.f32.mrf.mxu0
    %v5869 = vadd.f32 0.0, %v5868
    %v5870 = vpop.f32.mrf.mxu0
    %5871 = vdwg.mxu0
    %v5872 = vrcp.pop %v5242
    %v5873 = vmul.f32 %v5337, %v5872
    %v5874 = vrcp.pop %v5245
    %v5875 = vmul.f32 %v5413, %v5874
    %v5876 = vrcp.pop %v5248
    %v5877 = vmul.f32 %v5489, %v5876
    %v5878 = vrcp.pop %v5251
    %v5879 = vmul.f32 %v5565, %v5878
    %v5880 = vrcp.pop %v5254
    %v5881 = vmul.f32 %v5641, %v5880
    %v5882 = vrcp.pop %v5257
    %v5883 = vmul.f32 %v5717, %v5882
    %v5884 = vrcp.pop %v5260
    %v5885 = vmul.f32 %v5793, %v5884
    %v5886 = vrcp.pop %v5263
    %v5887 = vmul.f32 %v5869, %v5886
    %v5888 = vld [vmem:[#allocation7 + $0x18] sm:$0xff]
    %v5890 = vsel %vm212, %v5873, 0
    %v5893 = vsel %vm212, %v5875, 0
    %v5896 = vsel %vm212, %v5877, 0
    %v5899 = vsel %vm212, %v5879, 0
    %v5902 = vsel %vm212, %v5881, 0
    %v5905 = vsel %vm212, %v5883, 0
    %v5908 = vsel %vm212, %v5885, 0
    %v5911 = vsel %vm212, %v5887, 0
    %5913 = vmatprep.subr.mxu0 0.0
    %5914 = vmatpush1.msra.mxu0 0.0
    %5915 = vmatprep.subr.mxu0 0.0
    %5916 = vmatpush1.msra.mxu0 0.0
    %5917 = vmatprep.subr.mxu0 0.0
    %5918 = vmatpush1.msra.mxu0 0.0
    %5919 = vmatprep.subr.mxu0 0.0
    %5920 = vmatpush1.msra.mxu0 0.0
    %5921 = vmatprep.subr.mxu0 0.0
    %5922 = vmatpush1.msra.mxu0 0.0
    %5923 = vmatprep.subr.mxu0 0.0
    %5924 = vmatpush1.msra.mxu0 0.0
    %5925 = vmatprep.subr.mxu0 0.0
    %5926 = vmatpush1.msra.mxu0 0.0
    %5927 = vmatprep.subr.mxu0 0.0
    %5928 = vmatpush1.msra.mxu0 0.0
    %5929 = vmatprep.subr.mxu0 0.0
    %5930 = vmatpush1.msra.mxu0 0.0
    %5931 = vmatprep.subr.mxu0 0.0
    %5932 = vmatpush1.msra.mxu0 0.0
    %5933 = vmatprep.subr.mxu0 0.0
    %5934 = vmatpush1.msra.mxu0 0.0
    %5935 = vmatprep.subr.mxu0 0.0
    %5936 = vmatpush1.msra.mxu0 0.0
    %5937 = vmatprep.subr.mxu0 0.0
    %5938 = vmatpush1.msra.mxu0 0.0
    %5939 = vmatprep.subr.mxu0 0.0
    %5940 = vmatpush1.msra.mxu0 0.0
    %5941 = vmatprep.subr.mxu0 0.0
    %5942 = vmatpush1.msra.mxu0 0.0
    %5943 = vmatprep.subr.mxu0 0.0
    %5944 = vmatpush1.msra.mxu0 %v5888
    %5945 = vmatprep.subr.mxu0 0.0
    %5946 = vmatpush2.msra.mxu0 0.0
    %5947 = vmatprep.subr.mxu0 0.0
    %5948 = vmatpush2.msra.mxu0 0.0
    %5949 = vmatprep.subr.mxu0 0.0
    %5950 = vmatpush2.msra.mxu0 0.0
    %5951 = vmatprep.subr.mxu0 0.0
    %5952 = vmatpush2.msra.mxu0 0.0
    %5953 = vmatprep.subr.mxu0 0.0
    %5954 = vmatpush2.msra.mxu0 0.0
    %5955 = vmatprep.subr.mxu0 0.0
    %5956 = vmatpush2.msra.mxu0 0.0
    %5957 = vmatprep.subr.mxu0 0.0
    %5958 = vmatpush2.msra.mxu0 0.0
    %5959 = vmatprep.subr.mxu0 0.0
    %5960 = vmatpush2.msra.mxu0 0.0
    %5961 = vmatprep.subr.mxu0 0.0
    %5962 = vmatpush2.msra.mxu0 0.0
    %5963 = vmatprep.subr.mxu0 0.0
    %5964 = vmatpush2.msra.mxu0 0.0
    %5965 = vmatprep.subr.mxu0 0.0
    %5966 = vmatpush2.msra.mxu0 0.0
    %5967 = vmatprep.subr.mxu0 0.0
    %5968 = vmatpush2.msra.mxu0 0.0
    %5969 = vmatprep.subr.mxu0 0.0
    %5970 = vmatpush2.msra.mxu0 0.0
    %5971 = vmatprep.subr.mxu0 0.0
    %5972 = vmatpush2.msra.mxu0 0.0
    %5973 = vmatprep.subr.mxu0 0.0
    %5974 = vmatpush2.msra.mxu0 0.0
    %5975 = vmatprep.subr.mxu0 0.0
    %5976 = vmatpush2.msra.mxu0 0.0
    %5977 = vmatprep.mubr.f32.mxu0 0.0
    %5978 = vmatmul.mubr.f32.gmra.mxu0 %v5890
    %v5979 = vpop.f32.mrf.mxu0
    %v5980 = vadd.f32 0.0, %v5979
    %v5981 = vpop.f32.mrf.mxu0
    %5982 = vmatprep.mubr.f32.mxu0 0.0
    %5983 = vmatmul.mubr.f32.gmra.mxu0 %v5893
    %v5984 = vpop.f32.mrf.mxu0
    %v5985 = vadd.f32 0.0, %v5984
    %v5986 = vpop.f32.mrf.mxu0
    %5987 = vmatprep.mubr.f32.mxu0 0.0
    %5988 = vmatmul.mubr.f32.gmra.mxu0 %v5896
    %v5989 = vpop.f32.mrf.mxu0
    %v5990 = vadd.f32 0.0, %v5989
    %v5991 = vpop.f32.mrf.mxu0
    %5992 = vmatprep.mubr.f32.mxu0 0.0
    %5993 = vmatmul.mubr.f32.gmra.mxu0 %v5899
    %v5994 = vpop.f32.mrf.mxu0
    %v5995 = vadd.f32 0.0, %v5994
    %v5996 = vpop.f32.mrf.mxu0
    %5997 = vmatprep.mubr.f32.mxu0 0.0
    %5998 = vmatmul.mubr.f32.gmra.mxu0 %v5902
    %v5999 = vpop.f32.mrf.mxu0
    %v6000 = vadd.f32 0.0, %v5999
    %v6001 = vpop.f32.mrf.mxu0
    %6002 = vmatprep.mubr.f32.mxu0 0.0
    %6003 = vmatmul.mubr.f32.gmra.mxu0 %v5905
    %v6004 = vpop.f32.mrf.mxu0
    %v6005 = vadd.f32 0.0, %v6004
    %v6006 = vpop.f32.mrf.mxu0
    %6007 = vmatprep.mubr.f32.mxu0 0.0
    %6008 = vmatmul.mubr.f32.gmra.mxu0 %v5908
    %v6009 = vpop.f32.mrf.mxu0
    %v6010 = vadd.f32 0.0, %v6009
    %v6011 = vpop.f32.mrf.mxu0
    %6012 = vmatprep.mubr.f32.mxu0 0.0
    %6013 = vmatmul.mubr.f32.gmra.mxu0 %v5911
    %v6014 = vpop.f32.mrf.mxu0
    %v6015 = vadd.f32 0.0, %v6014
    %v6016 = vpop.f32.mrf.mxu0
    %6017 = vdwg.mxu0
    %v6018 = vadd.f32 %v4560, %v5980
    %v6019 = vadd.f32 %v4561, %v5985
    %v6020 = vadd.f32 %v4562, %v5990
    %v6021 = vadd.f32 %v4563, %v5995
    %v6022 = vadd.f32 %v4564, %v6000
    %v6023 = vadd.f32 %v4565, %v6005
    %v6024 = vadd.f32 %v4566, %v6010
    %v6025 = vadd.f32 %v4567, %v6015
    %v6026 = vld [vmem:[%s3] sm:$0x1]
    %v6028 = vlaneseq
    %v6029 = vshrl.u32 %v6028, 7
    %v6030 = vsub.s32 0, %v6029
    %v6031 = vrot.slane %v6026, %v6030
    %v6033 = vadd.f32 %v6018, %v6031
    %v6034 = vadd.f32 %v6019, %v6031
    %v6035 = vadd.f32 %v6020, %v6031
    %v6036 = vadd.f32 %v6021, %v6031
    %v6037 = vadd.f32 %v6022, %v6031
    %v6038 = vadd.f32 %v6023, %v6031
    %v6039 = vadd.f32 %v6024, %v6031
    %v6040 = vadd.f32 %v6025, %v6031
    %6041 = vst.msk [vmem:[#allocation8] sm:$0xff] %vm71, %v6033
    %6042 = vst.msk [vmem:[#allocation8 + $0x8] sm:$0xff] %vm71, %v6034
    %6043 = vst.msk [vmem:[#allocation8 + $0x10] sm:$0xff] %vm71, %v6035
    %6044 = vst.msk [vmem:[#allocation8 + $0x18] sm:$0xff] %vm71, %v6036
    %6045 = vst.msk [vmem:[#allocation8 + $0x20] sm:$0xff] %vm71, %v6037
    %6046 = vst.msk [vmem:[#allocation8 + $0x28] sm:$0xff] %vm71, %v6038
    %6047 = vst.msk [vmem:[#allocation8 + $0x30] sm:$0xff] %vm71, %v6039
    %6048 = vst.msk [vmem:[#allocation8 + $0x38] sm:$0xff] %vm71, %v6040
    // Predicated region
    $region30: #{tpu_custom_call.1} parent=1 // pred_check
      _
    $region31: #{tpu_custom_call.1} parent=1 // pred_check_branch
      %6050 = sbr.rel (0) target = $region33
    $region32: #{tpu_custom_call.1} parent=1 // pred_region
      %s6052 = ssub.s32 1024, 1024
      %6053 = vsyncadd [#allocation4], %s6052
      %s6054 = sshll.u32 [#allocation8], 4
      %s6055 = int_to_ptr.vmem [resolvable:$true] %s6054
      %6060 = dma.vmem_to_hbm [thread:$0]  %s6055, 1024, %s4, [#allocation4], 128, 128, 8
    $region33: #{tpu_custom_call.1} parent=1 // pred_fallthru
      _
    // Predicated region
    $region34: #{tpu_custom_call.1} parent=1 // pred_check
      _
    $region35: #{tpu_custom_call.1} parent=1 // pred_check_branch
      %6062 = sbr.rel (0) target = $region37
    $region36: #{tpu_custom_call.1} parent=1 // pred_region
      %6063 = dma.done [#allocation4], 1024
    $region37: #{tpu_custom_call.1} parent=1 // pred_fallthru
      _
    %6064 = vsyncpa [#allocation3], 1
    %6065 = vsyncpa [#allocation6], 1
    %6066 = vsyncpa [#allocation4], 1

</llo_original>
